<compile_context>
chip_gen: v6e
topology: v6e:2x2x1
jax: 0.10.0
libtpu: 0.0.40
codegen_flags: <defaults>
</compile_context>

<pallas_src>
import jax
import jax.numpy as jnp
from jax.experimental import pallas as pl
from jax.experimental.pallas import tpu as pltpu

EPS = 1e-5


def _round_up(x, m):
    return ((x + m - 1) // m) * m


def _make_ncf_kernel(batch, tile_b, num_items, use_emb_cache):
    """Builds the phase-structured NCF kernel (batch/tile sizes are static)."""
    inv_b = 1.0 / float(batch)
    bf16 = jnp.bfloat16

    def kernel(idx_ref, emb_ref,
               w1_ref, b1_ref, g1_ref, be1_ref,
               w2_ref, b2_ref, g2_ref, be2_ref,
               w3_ref, b3_ref,
               w4_ref, b4_ref,
               out_ref,
               sum1_ref, sq1_ref, sum2_ref, sq2_ref,
               w1s_ref, b1s_ref, w2s_ref, b2s_ref,
               *maybe_cache):
        emb_cache_ref = maybe_cache[0] if use_emb_cache else None

        p = pl.program_id(0)   # phase: 0 = BN1 stats, 1 = BN2 stats, 2 = finalize
        t = pl.program_id(1)   # batch tile

        @pl.when((p == 0) & (t == 0))
        def _init_stats():
            sum1_ref[...] = jnp.zeros_like(sum1_ref)
            sq1_ref[...] = jnp.zeros_like(sq1_ref)
            sum2_ref[...] = jnp.zeros_like(sum2_ref)
            sq2_ref[...] = jnp.zeros_like(sq2_ref)

        # Valid-row mask: padded rows must not contribute to batch statistics.
        row_ids = t * tile_b + jax.lax.broadcasted_iota(jnp.int32, (tile_b, 1), 0)
        valid = row_ids < batch

        def gather_emb():
            # In-kernel embedding gather as a one-hot matmul (table is tiny & resident).
            # TODO(synk): for a large vocabulary use a scalar-prefetch / DMA row gather.
            iota_items = jax.lax.broadcasted_iota(jnp.int32, (tile_b, num_items), 1)
            onehot = (idx_ref[...] == iota_items).astype(bf16)
            return jnp.dot(onehot, emb_ref[...],
                           preferred_element_type=jnp.float32).astype(bf16)

        def load_emb():
            if use_emb_cache:
                return emb_cache_ref[t]          # cached bf16 rows written in phase 0
            return gather_emb()

        def bn_scale_shift(sum_ref, sq_ref, gamma, beta):
            # Fused BN (training mode): biased var via E[x^2] - E[x]^2, one scale+shift.
            mean = sum_ref[...] * inv_b
            var = jnp.maximum(sq_ref[...] * inv_b - mean * mean, 0.0)
            scale = gamma * jax.lax.rsqrt(var + EPS)
            shift = beta - mean * scale
            return scale, shift

        # ---------------- phase 0: BN1 statistics ----------------
        @pl.when(p == 0)
        def _phase0():
            emb = gather_emb()
            if use_emb_cache:
                emb_cache_ref[t] = emb
            h1 = jnp.dot(emb, w1_ref[...],
                         preferred_element_type=jnp.float32) + b1_ref[...]
            h1m = jnp.where(valid, h1, 0.0)
            sum1_ref[...] += jnp.sum(h1m, axis=0, keepdims=True)
            sq1_ref[...] += jnp.sum(h1m * h1m, axis=0, keepdims=True)

        # ---- fold BN1 into fc1 (once, before any phase-1/2 tile uses it) ----
        @pl.when((p == 1) & (t == 0))
        def _fold_bn1():
            scale1, shift1 = bn_scale_shift(sum1_ref, sq1_ref, g1_ref[...], be1_ref[...])
            w1s_ref[...] = (w1_ref[...].astype(jnp.float32) * scale1).astype(bf16)
            b1s_ref[...] = b1_ref[...] * scale1 + shift1

        # ---- fold BN2 into fc2 (once, before any phase-2 tile uses it) ----
        @pl.when((p == 2) & (t == 0))
        def _fold_bn2():
            scale2, shift2 = bn_scale_shift(sum2_ref, sq2_ref, g2_ref[...], be2_ref[...])
            w2s_ref[...] = (w2_ref[...].astype(jnp.float32) * scale2).astype(bf16)
            b2s_ref[...] = b2_ref[...] * scale2 + shift2

        def compute_a1():
            emb = load_emb()
            h1 = jnp.dot(emb, w1s_ref[...],
                         preferred_element_type=jnp.float32) + b1s_ref[...]
            # TODO(synk): nn.Dropout(0.3) training-mode mask omitted (identity).
            return jnp.maximum(h1, 0.0)

        # ---------------- phase 1: BN2 statistics ----------------
        @pl.when(p == 1)
        def _phase1():
            a1 = compute_a1().astype(bf16)
            h2 = jnp.dot(a1, w2_ref[...],
                         preferred_element_type=jnp.float32) + b2_ref[...]
            h2m = jnp.where(valid, h2, 0.0)
            sum2_ref[...] += jnp.sum(h2m, axis=0, keepdims=True)
            sq2_ref[...] += jnp.sum(h2m * h2m, axis=0, keepdims=True)

        # ---------------- phase 2: finalize ----------------
        @pl.when(p == 2)
        def _phase2():
            a1 = compute_a1().astype(bf16)
            a2 = jnp.maximum(
                jnp.dot(a1, w2s_ref[...],
                        preferred_element_type=jnp.float32) + b2s_ref[...],
                0.0).astype(bf16)
            h3 = jnp.maximum(
                jnp.dot(a2, w3_ref[...],
                        preferred_element_type=jnp.float32) + b3_ref[...],
                0.0)
            # fc4: degenerate N=1 matmul as VPU multiply + lane reduction.
            h4 = jnp.sum(h3 * w4_ref[...], axis=-1, keepdims=True) + b4_ref[...]
            # Lane-dense output row: (tile_b, 1) -> (1, tile_b) is a tiny XLU transpose.
            out_ref[...] = jnp.transpose(jax.nn.sigmoid(h4))

    return kernel


def ncf_forward(item_indices, params, tile_b=1024):
    """item_indices: int [B]. Returns float32 [B] (squeezed sigmoid output)."""
    B = int(item_indices.shape[0])
    num_items, embed_dim = params["emb"].shape
    d1 = params["w1"].shape[1]
    d2 = params["w2"].shape[1]
    d3 = params["w3"].shape[1]

    # Tile size: 128-aligned (lane-dense output rows), no over-padding for small B.
    tile_b = max(128, (int(tile_b) // 128) * 128)
    tile_b = min(tile_b, _round_up(B, 128))
    num_tiles = pl.cdiv(B, tile_b)
    b_pad = num_tiles * tile_b

    idx = item_indices.astype(jnp.int32).reshape(B, 1)
    if b_pad != B:
        idx = jnp.pad(idx, ((0, b_pad - B), (0, 0)))  # padded rows masked out of BN stats

    # Cache the gathered embeddings across phases unless it would blow VMEM.
    use_emb_cache = (b_pad * embed_dim * 2) <= (8 * 1024 * 1024)

    kernel = _make_ncf_kernel(B, tile_b, num_items, use_emb_cache)

    bf16 = jnp.bfloat16
    emb_t = params["emb"].astype(bf16)
    w1 = params["w1"].astype(bf16)
    w2 = params["w2"].astype(bf16)
    w3 = params["w3"].astype(bf16)

    def resident(shape):
        # Fetched once, stays in VMEM across the whole grid.
        return pl.BlockSpec(shape, lambda p, t: (0, 0))

    in_specs = [
        pl.BlockSpec((tile_b, 1), lambda p, t: (t, 0)),      # item indices (tiled)
        resident((num_items, embed_dim)),                    # embedding table (bf16)
        resident((embed_dim, d1)), resident((1, d1)), resident((1, d1)), resident((1, d1)),
        resident((d1, d2)), resident((1, d2)), resident((1, d2)), resident((1, d2)),
        resident((d2, d3)), resident((1, d3)),
        resident((1, d3)), resident((1, 1)),
    ]
    # Lane-dense (1, tile_b) output rows; block index held at 0 during phases 0/1 so
    # no stale writebacks happen before phase 2 fills each tile.
    out_specs = pl.BlockSpec((1, tile_b), lambda p, t: (0, jnp.where(p == 2, t, 0)))

    scratch_shapes = [
        pltpu.VMEM((1, d1), jnp.float32),   # sum(h1)
        pltpu.VMEM((1, d1), jnp.float32),   # sum(h1^2)
        pltpu.VMEM((1, d2), jnp.float32),   # sum(h2)
        pltpu.VMEM((1, d2), jnp.float32),   # sum(h2^2)
        pltpu.VMEM((embed_dim, d1), bf16),  # BN1-folded fc1 weights
        pltpu.VMEM((1, d1), jnp.float32),   # BN1-folded fc1 bias
        pltpu.VMEM((d1, d2), bf16),         # BN2-folded fc2 weights
        pltpu.VMEM((1, d2), jnp.float32),   # BN2-folded fc2 bias
    ]
    if use_emb_cache:
        scratch_shapes.append(pltpu.VMEM((num_tiles, tile_b, embed_dim), bf16))

    grid_spec = pltpu.PrefetchScalarGridSpec(
        num_scalar_prefetch=0,
        grid=(3, num_tiles),  # (phase, batch-tile)
        in_specs=in_specs,
        out_specs=out_specs,
        scratch_shapes=scratch_shapes,
    )

    out = pl.pallas_call(
        kernel,
        out_shape=jax.ShapeDtypeStruct((1, b_pad), jnp.float32),
        grid_spec=grid_spec,
        compiler_params=pltpu.CompilerParams(
            # Cross-tile BN accumulators + phase ordering + folded-weight scratch
            # require serial execution.  TODO(synk): per-core partial BN stats to
            # use v7x's second TensorCore.
            dimension_semantics=("arbitrary", "arbitrary"),
            vmem_limit_bytes=48 * 1024 * 1024,
        ),
    )(idx, emb_t,
      w1, params["b1"], params["g1"], params["be1"],
      w2, params["b2"], params["g2"], params["be2"],
      w3, params["b3"],
      params["w4"], params["b4"])

    return out[0, :B]


def ncf_reference(item_indices, params):
    """Pure-JAX f32 reference (training-mode BN, dropout as identity)."""
    emb = jnp.take(params["emb"], item_indices, axis=0)
    h1 = emb @ params["w1"] + params["b1"]
    m1 = jnp.mean(h1, axis=0, keepdims=True)
    v1 = jnp.mean((h1 - m1) ** 2, axis=0, keepdims=True)
    h1 = jnp.maximum((h1 - m1) * jax.lax.rsqrt(v1 + EPS) * params["g1"] + params["be1"], 0.0)
    h2 = h1 @ params["w2"] + params["b2"]
    m2 = jnp.mean(h2, axis=0, keepdims=True)
    v2 = jnp.mean((h2 - m2) ** 2, axis=0, keepdims=True)
    h2 = jnp.maximum((h2 - m2) * jax.lax.rsqrt(v2 + EPS) * params["g2"] + params["be2"], 0.0)
    h3 = jnp.maximum(h2 @ params["w3"] + params["b3"], 0.0)
    h4 = jnp.sum(h3 * params["w4"], axis=-1, keepdims=True) + params["b4"]
    return jax.nn.sigmoid(h4)[:, 0]


def init_params(key, num_items=100, embed_dim=64):
    """Deterministic synthetic parameters (shapes match the PyTorch module)."""
    ks = jax.random.split(key, 10)

    def linear(kw, kb, fan_in, fan_out):
        bound = 1.0 / jnp.sqrt(fan_in)
        w = jax.random.uniform(kw, (fan_in, fan_out), jnp.float32, -bound, bound)
        b = jax.random.uniform(kb, (1, fan_out), jnp.float32, -bound, bound)
        return w, b

    emb = jax.random.normal(ks[0], (num_items, embed_dim), jnp.float32)
    w1, b1 = linear(ks[1], ks[2], embed_dim, 256)
    w2, b2 = linear(ks[3], ks[4], 256, 128)
    w3, b3 = linear(ks[5], ks[6], 128, 64)
    w4_t, b4 = linear(ks[7], ks[8], 64, 1)
    return {
        "emb": emb,
        "w1": w1, "b1": b1, "g1": jnp.ones((1, 256), jnp.float32), "be1": jnp.zeros((1, 256), jnp.float32),
        "w2": w2, "b2": b2, "g2": jnp.ones((1, 128), jnp.float32), "be2": jnp.zeros((1, 128), jnp.float32),
        "w3": w3, "b3": b3,
        "w4": w4_t.T,   # stored as [1, 64] row for the VPU multiply + reduce form
        "b4": b4.reshape(1, 1),
    }


if __name__ == "__main__":
    key = jax.random.PRNGKey(0)
    pkey, ikey = jax.random.split(key)

    num_items, embed_dim, batch = 100, 64, 8
    params = init_params(pkey, num_items=num_items, embed_dim=embed_dim)
    item_indices = jax.random.randint(ikey, (batch,), 0, num_items, dtype=jnp.int32)

    out = ncf_forward(item_indices, params)
    jax.block_until_ready(out)
    assert out.shape == (batch,)
    assert bool(jnp.all(jnp.isfinite(out)))

    ref = ncf_reference(item_indices, params)
    # bf16 matmul path vs. f32 reference -> slightly looser tolerance.
    assert bool(jnp.allclose(out, ref, atol=2e-2, rtol=2e-2)), (out, ref)

    print("KERNEL_OK")
</pallas_src>

<mosaic_0001>
module attributes {stable_mosaic.version = 11 : i64} {
  func.func @kernel(%arg0: i32, %arg1: i32, %arg2: memref<128x1xi32, #tpu.memory_space<vmem>>, %arg3: memref<100x64xbf16, #tpu.memory_space<vmem>>, %arg4: memref<64x256xbf16, #tpu.memory_space<vmem>>, %arg5: memref<1x256xf32, #tpu.memory_space<vmem>>, %arg6: memref<1x256xf32, #tpu.memory_space<vmem>>, %arg7: memref<1x256xf32, #tpu.memory_space<vmem>>, %arg8: memref<256x128xbf16, #tpu.memory_space<vmem>>, %arg9: memref<1x128xf32, #tpu.memory_space<vmem>>, %arg10: memref<1x128xf32, #tpu.memory_space<vmem>>, %arg11: memref<1x128xf32, #tpu.memory_space<vmem>>, %arg12: memref<128x64xbf16, #tpu.memory_space<vmem>>, %arg13: memref<1x64xf32, #tpu.memory_space<vmem>>, %arg14: memref<1x64xf32, #tpu.memory_space<vmem>>, %arg15: memref<1x1xf32, #tpu.memory_space<vmem>>, %arg16: memref<1x128xf32, #tpu.memory_space<vmem>>, %arg17: memref<1x256xf32, #tpu.memory_space<vmem>>, %arg18: memref<1x256xf32, #tpu.memory_space<vmem>>, %arg19: memref<1x128xf32, #tpu.memory_space<vmem>>, %arg20: memref<1x128xf32, #tpu.memory_space<vmem>>, %arg21: memref<64x256xbf16, #tpu.memory_space<vmem>>, %arg22: memref<1x256xf32, #tpu.memory_space<vmem>>, %arg23: memref<256x128xbf16, #tpu.memory_space<vmem>>, %arg24: memref<1x128xf32, #tpu.memory_space<vmem>>, %arg25: memref<1x128x64xbf16, #tpu.memory_space<vmem>>) attributes {dimension_semantics = [#tpu.dimension_semantics<arbitrary>, #tpu.dimension_semantics<arbitrary>], iteration_bounds = array<i64: 3, 1>, scalar_prefetch = 0 : i64, scratch_operands = 9 : i64, tpu.core_type = #tpu.core_type<tc>, window_params = [{transform_indices = @transform_0, window_bounds = array<i64: 128, 1>}, {pipeline_mode = #tpu.pipeline_mode<synchronous>, transform_indices = @transform_1, window_bounds = array<i64: 100, 64>}, {pipeline_mode = #tpu.pipeline_mode<synchronous>, transform_indices = @transform_2, window_bounds = array<i64: 64, 256>}, {pipeline_mode = #tpu.pipeline_mode<synchronous>, transform_indices = @transform_3, window_bounds = array<i64: 1, 256>}, {pipeline_mode = #tpu.pipeline_mode<synchronous>, transform_indices = @transform_4, window_bounds = array<i64: 1, 256>}, {pipeline_mode = #tpu.pipeline_mode<synchronous>, transform_indices = @transform_5, window_bounds = array<i64: 1, 256>}, {pipeline_mode = #tpu.pipeline_mode<synchronous>, transform_indices = @transform_6, window_bounds = array<i64: 256, 128>}, {pipeline_mode = #tpu.pipeline_mode<synchronous>, transform_indices = @transform_7, window_bounds = array<i64: 1, 128>}, {pipeline_mode = #tpu.pipeline_mode<synchronous>, transform_indices = @transform_8, window_bounds = array<i64: 1, 128>}, {pipeline_mode = #tpu.pipeline_mode<synchronous>, transform_indices = @transform_9, window_bounds = array<i64: 1, 128>}, {pipeline_mode = #tpu.pipeline_mode<synchronous>, transform_indices = @transform_10, window_bounds = array<i64: 128, 64>}, {pipeline_mode = #tpu.pipeline_mode<synchronous>, transform_indices = @transform_11, window_bounds = array<i64: 1, 64>}, {pipeline_mode = #tpu.pipeline_mode<synchronous>, transform_indices = @transform_12, window_bounds = array<i64: 1, 64>}, {pipeline_mode = #tpu.pipeline_mode<synchronous>, transform_indices = @transform_13, window_bounds = array<i64: 1, 1>}, {transform_indices = @transform_14, window_bounds = array<i64: 1, 128>}]} {
    %c0_i32 = arith.constant 0 : i32
    %0 = arith.cmpi eq, %arg0, %c0_i32 : i32
    %c0_i32_0 = arith.constant 0 : i32
    %1 = arith.cmpi eq, %arg1, %c0_i32_0 : i32
    %2 = arith.andi %0, %1 : i1
    %3 = arith.extui %2 : i1 to i32
    %c0_i32_1 = arith.constant 0 : i32
    %4 = arith.cmpi ne, %3, %c0_i32_1 : i32
    scf.if %4 {
      %cst = arith.constant 0.000000e+00 : f32
      %30 = vector.broadcast %cst : f32 to vector<1x256xf32>
      %c0 = arith.constant 0 : index
      %c0_12 = arith.constant 0 : index
      %31 = vector.load %arg17[%c0, %c0_12] : memref<1x256xf32, #tpu.memory_space<vmem>>, vector<1x256xf32>
      tpu.vector_store %arg17[%c0, %c0_12], %30 {strides = array<i32>} : memref<1x256xf32, #tpu.memory_space<vmem>>, vector<1x256xf32>,
      %cst_13 = arith.constant 0.000000e+00 : f32
      %32 = vector.broadcast %cst_13 : f32 to vector<1x256xf32>
      %c0_14 = arith.constant 0 : index
      %c0_15 = arith.constant 0 : index
      %33 = vector.load %arg18[%c0_14, %c0_15] : memref<1x256xf32, #tpu.memory_space<vmem>>, vector<1x256xf32>
      tpu.vector_store %arg18[%c0_14, %c0_15], %32 {strides = array<i32>} : memref<1x256xf32, #tpu.memory_space<vmem>>, vector<1x256xf32>,
      %cst_16 = arith.constant 0.000000e+00 : f32
      %34 = vector.broadcast %cst_16 : f32 to vector<1x128xf32>
      %c0_17 = arith.constant 0 : index
      %c0_18 = arith.constant 0 : index
      %35 = vector.load %arg19[%c0_17, %c0_18] : memref<1x128xf32, #tpu.memory_space<vmem>>, vector<1x128xf32>
      tpu.vector_store %arg19[%c0_17, %c0_18], %34 {strides = array<i32>} : memref<1x128xf32, #tpu.memory_space<vmem>>, vector<1x128xf32>,
      %cst_19 = arith.constant 0.000000e+00 : f32
      %36 = vector.broadcast %cst_19 : f32 to vector<1x128xf32>
      %c0_20 = arith.constant 0 : index
      %c0_21 = arith.constant 0 : index
      %37 = vector.load %arg20[%c0_20, %c0_21] : memref<1x128xf32, #tpu.memory_space<vmem>>, vector<1x128xf32>
      tpu.vector_store %arg20[%c0_20, %c0_21], %36 {strides = array<i32>} : memref<1x128xf32, #tpu.memory_space<vmem>>, vector<1x128xf32>,
    } else {
    }
    %c128_i32 = arith.constant 128 : i32
    %5 = arith.muli %arg1, %c128_i32 : i32
    %6 = tpu.iota {dimensions = array<i32: 0>} : vector<128x1xi32>
    %7 = vector.broadcast %5 : i32 to vector<128x1xi32>
    %8 = arith.addi %7, %6 : vector<128x1xi32>
    %c8_i32 = arith.constant 8 : i32
    %9 = vector.broadcast %c8_i32 : i32 to vector<128x1xi32>
    %10 = arith.cmpi slt, %8, %9 : vector<128x1xi32>
    %c0_i32_2 = arith.constant 0 : i32
    %11 = arith.cmpi eq, %arg0, %c0_i32_2 : i32
    %12 = arith.extui %11 : i1 to i32
    %c0_i32_3 = arith.constant 0 : i32
    %13 = arith.cmpi ne, %12, %c0_i32_3 : i32
    scf.if %13 {
      %30 = tpu.iota {dimensions = array<i32: 1>} : vector<128x100xi32>
      %c0 = arith.constant 0 : index
      %c0_12 = arith.constant 0 : index
      %31 = vector.load %arg2[%c0, %c0_12] : memref<128x1xi32, #tpu.memory_space<vmem>>, vector<128x1xi32>
      %32 = vector.broadcast %31 : vector<128x1xi32> to vector<128x100xi32>
      %33 = arith.cmpi eq, %32, %30 : vector<128x100xi32>
      %34 = arith.extui %33 : vector<128x100xi1> to vector<128x100xi32>
      %35 = arith.sitofp %34 : vector<128x100xi32> to vector<128x100xf32>
      %36 = arith.truncf %35 : vector<128x100xf32> to vector<128x100xbf16>
      %c0_13 = arith.constant 0 : index
      %c0_14 = arith.constant 0 : index
      %37 = vector.load %arg3[%c0_13, %c0_14] : memref<100x64xbf16, #tpu.memory_space<vmem>>, vector<100x64xbf16>
      %cst = arith.constant dense<0.000000e+00> : vector<128x64xf32>
      %38 = tpu.matmul %36, %37, %cst {dimension_numbers = #tpu.dot_dimension_numbers<[1], [0], [0], [1], [0, 0, 1, 1], [], []>} : vector<128x100xbf16>, vector<100x64xbf16>, vector<128x64xf32> -> vector<128x64xf32>
      %39 = arith.truncf %38 : vector<128x64xf32> to vector<128x64xbf16>
      %40 = arith.index_cast %arg1 : i32 to index
      %c0_15 = arith.constant 0 : index
      %c0_16 = arith.constant 0 : index
      %41 = vector.load %arg25[%40, %c0_15, %c0_16] : memref<1x128x64xbf16, #tpu.memory_space<vmem>>, vector<1x128x64xbf16>
      %42 = vector.shape_cast %41 : vector<1x128x64xbf16> to vector<128x64xbf16>
      %43 = vector.shape_cast %39 : vector<128x64xbf16> to vector<1x128x64xbf16>
      tpu.vector_store %arg25[%40, %c0_15, %c0_16], %43 {strides = array<i32>} : memref<1x128x64xbf16, #tpu.memory_space<vmem>>, vector<1x128x64xbf16>,
      %c0_17 = arith.constant 0 : index
      %c0_18 = arith.constant 0 : index
      %44 = vector.load %arg4[%c0_17, %c0_18] : memref<64x256xbf16, #tpu.memory_space<vmem>>, vector<64x256xbf16>
      %cst_19 = arith.constant dense<0.000000e+00> : vector<128x256xf32>
      %45 = tpu.matmul %39, %44, %cst_19 {dimension_numbers = #tpu.dot_dimension_numbers<[1], [0], [0], [1], [0, 0, 1, 1], [], []>} : vector<128x64xbf16>, vector<64x256xbf16>, vector<128x256xf32> -> vector<128x256xf32>
      %c0_20 = arith.constant 0 : index
      %c0_21 = arith.constant 0 : index
      %46 = vector.load %arg5[%c0_20, %c0_21] : memref<1x256xf32, #tpu.memory_space<vmem>>, vector<1x256xf32>
      %47 = vector.broadcast %46 : vector<1x256xf32> to vector<128x256xf32>
      %48 = arith.addf %45, %47 : vector<128x256xf32>
      %cst_22 = arith.constant 0.000000e+00 : f32
      %49 = vector.shape_cast %10 : vector<128x1xi1> to vector<128x1xi1>
      %50 = vector.broadcast %49 : vector<128x1xi1> to vector<128x256xi1>
      %51 = vector.broadcast %cst_22 : f32 to vector<128x256xf32>
      %52 = arith.select %50, %48, %51 : vector<128x256xi1>, vector<128x256xf32>
      %c0_23 = arith.constant 0 : index
      %c0_24 = arith.constant 0 : index
      %53 = vector.load %arg17[%c0_23, %c0_24] : memref<1x256xf32, #tpu.memory_space<vmem>>, vector<1x256xf32>
      %cst_25 = arith.constant dense<0.000000e+00> : vector<256xf32>
      %54 = vector.multi_reduction <add>, %52, %cst_25 [0] : vector<128x256xf32> to vector<256xf32>
      %55 = vector.shape_cast %54 : vector<256xf32> to vector<1x256xf32>
      %56 = arith.addf %53, %55 : vector<1x256xf32>
      %c0_26 = arith.constant 0 : index
      %c0_27 = arith.constant 0 : index
      %57 = vector.load %arg17[%c0_26, %c0_27] : memref<1x256xf32, #tpu.memory_space<vmem>>, vector<1x256xf32>
      tpu.vector_store %arg17[%c0_26, %c0_27], %56 {strides = array<i32>} : memref<1x256xf32, #tpu.memory_space<vmem>>, vector<1x256xf32>,
      %c0_28 = arith.constant 0 : index
      %c0_29 = arith.constant 0 : index
      %58 = vector.load %arg18[%c0_28, %c0_29] : memref<1x256xf32, #tpu.memory_space<vmem>>, vector<1x256xf32>
      %59 = arith.mulf %52, %52 : vector<128x256xf32>
      %cst_30 = arith.constant dense<0.000000e+00> : vector<256xf32>
      %60 = vector.multi_reduction <add>, %59, %cst_30 [0] : vector<128x256xf32> to vector<256xf32>
      %61 = vector.shape_cast %60 : vector<256xf32> to vector<1x256xf32>
      %62 = arith.addf %58, %61 : vector<1x256xf32>
      %c0_31 = arith.constant 0 : index
      %c0_32 = arith.constant 0 : index
      %63 = vector.load %arg18[%c0_31, %c0_32] : memref<1x256xf32, #tpu.memory_space<vmem>>, vector<1x256xf32>
      tpu.vector_store %arg18[%c0_31, %c0_32], %62 {strides = array<i32>} : memref<1x256xf32, #tpu.memory_space<vmem>>, vector<1x256xf32>,
    } else {
    }
    %c1_i32 = arith.constant 1 : i32
    %14 = arith.cmpi eq, %arg0, %c1_i32 : i32
    %c0_i32_4 = arith.constant 0 : i32
    %15 = arith.cmpi eq, %arg1, %c0_i32_4 : i32
    %16 = arith.andi %14, %15 : i1
    %17 = arith.extui %16 : i1 to i32
    %c0_i32_5 = arith.constant 0 : i32
    %18 = arith.cmpi ne, %17, %c0_i32_5 : i32
    scf.if %18 {
      %c0 = arith.constant 0 : index
      %c0_12 = arith.constant 0 : index
      %30 = vector.load %arg6[%c0, %c0_12] : memref<1x256xf32, #tpu.memory_space<vmem>>, vector<1x256xf32>
      %c0_13 = arith.constant 0 : index
      %c0_14 = arith.constant 0 : index
      %31 = vector.load %arg7[%c0_13, %c0_14] : memref<1x256xf32, #tpu.memory_space<vmem>>, vector<1x256xf32>
      %c0_15 = arith.constant 0 : index
      %c0_16 = arith.constant 0 : index
      %32 = vector.load %arg17[%c0_15, %c0_16] : memref<1x256xf32, #tpu.memory_space<vmem>>, vector<1x256xf32>
      %cst = arith.constant 1.250000e-01 : f32
      %33 = vector.broadcast %cst : f32 to vector<1x256xf32>
      %34 = arith.mulf %32, %33 : vector<1x256xf32>
      %c0_17 = arith.constant 0 : index
      %c0_18 = arith.constant 0 : index
      %35 = vector.load %arg18[%c0_17, %c0_18] : memref<1x256xf32, #tpu.memory_space<vmem>>, vector<1x256xf32>
      %cst_19 = arith.constant 1.250000e-01 : f32
      %36 = vector.broadcast %cst_19 : f32 to vector<1x256xf32>
      %37 = arith.mulf %35, %36 : vector<1x256xf32>
      %38 = arith.mulf %34, %34 : vector<1x256xf32>
      %39 = arith.subf %37, %38 : vector<1x256xf32>
      %cst_20 = arith.constant 0.000000e+00 : f32
      %40 = vector.broadcast %cst_20 : f32 to vector<1x256xf32>
      %41 = arith.maximumf %39, %40 : vector<1x256xf32>
      %cst_21 = arith.constant 9.99999974E-6 : f32
      %42 = vector.broadcast %cst_21 : f32 to vector<1x256xf32>
      %43 = arith.addf %41, %42 : vector<1x256xf32>
      %44 = math.rsqrt %43 : vector<1x256xf32>
      %45 = arith.mulf %30, %44 : vector<1x256xf32>
      %46 = arith.mulf %34, %45 : vector<1x256xf32>
      %47 = arith.subf %31, %46 : vector<1x256xf32>
      %c0_22 = arith.constant 0 : index
      %c0_23 = arith.constant 0 : index
      %48 = vector.load %arg4[%c0_22, %c0_23] : memref<64x256xbf16, #tpu.memory_space<vmem>>, vector<64x256xbf16>
      %49 = arith.extf %48 : vector<64x256xbf16> to vector<64x256xf32>
      %50 = vector.broadcast %45 : vector<1x256xf32> to vector<64x256xf32>
      %51 = arith.mulf %49, %50 : vector<64x256xf32>
      %52 = arith.truncf %51 : vector<64x256xf32> to vector<64x256xbf16>
      %c0_24 = arith.constant 0 : index
      %c0_25 = arith.constant 0 : index
      %53 = vector.load %arg21[%c0_24, %c0_25] : memref<64x256xbf16, #tpu.memory_space<vmem>>, vector<64x256xbf16>
      tpu.vector_store %arg21[%c0_24, %c0_25], %52 {strides = array<i32>} : memref<64x256xbf16, #tpu.memory_space<vmem>>, vector<64x256xbf16>,
      %c0_26 = arith.constant 0 : index
      %c0_27 = arith.constant 0 : index
      %54 = vector.load %arg5[%c0_26, %c0_27] : memref<1x256xf32, #tpu.memory_space<vmem>>, vector<1x256xf32>
      %55 = arith.mulf %54, %45 : vector<1x256xf32>
      %56 = arith.addf %55, %47 : vector<1x256xf32>
      %c0_28 = arith.constant 0 : index
      %c0_29 = arith.constant 0 : index
      %57 = vector.load %arg22[%c0_28, %c0_29] : memref<1x256xf32, #tpu.memory_space<vmem>>, vector<1x256xf32>
      tpu.vector_store %arg22[%c0_28, %c0_29], %56 {strides = array<i32>} : memref<1x256xf32, #tpu.memory_space<vmem>>, vector<1x256xf32>,
    } else {
    }
    %c2_i32 = arith.constant 2 : i32
    %19 = arith.cmpi eq, %arg0, %c2_i32 : i32
    %c0_i32_6 = arith.constant 0 : i32
    %20 = arith.cmpi eq, %arg1, %c0_i32_6 : i32
    %21 = arith.andi %19, %20 : i1
    %22 = arith.extui %21 : i1 to i32
    %c0_i32_7 = arith.constant 0 : i32
    %23 = arith.cmpi ne, %22, %c0_i32_7 : i32
    scf.if %23 {
      %c0 = arith.constant 0 : index
      %c0_12 = arith.constant 0 : index
      %30 = vector.load %arg10[%c0, %c0_12] : memref<1x128xf32, #tpu.memory_space<vmem>>, vector<1x128xf32>
      %c0_13 = arith.constant 0 : index
      %c0_14 = arith.constant 0 : index
      %31 = vector.load %arg11[%c0_13, %c0_14] : memref<1x128xf32, #tpu.memory_space<vmem>>, vector<1x128xf32>
      %c0_15 = arith.constant 0 : index
      %c0_16 = arith.constant 0 : index
      %32 = vector.load %arg19[%c0_15, %c0_16] : memref<1x128xf32, #tpu.memory_space<vmem>>, vector<1x128xf32>
      %cst = arith.constant 1.250000e-01 : f32
      %33 = vector.broadcast %cst : f32 to vector<1x128xf32>
      %34 = arith.mulf %32, %33 : vector<1x128xf32>
      %c0_17 = arith.constant 0 : index
      %c0_18 = arith.constant 0 : index
      %35 = vector.load %arg20[%c0_17, %c0_18] : memref<1x128xf32, #tpu.memory_space<vmem>>, vector<1x128xf32>
      %cst_19 = arith.constant 1.250000e-01 : f32
      %36 = vector.broadcast %cst_19 : f32 to vector<1x128xf32>
      %37 = arith.mulf %35, %36 : vector<1x128xf32>
      %38 = arith.mulf %34, %34 : vector<1x128xf32>
      %39 = arith.subf %37, %38 : vector<1x128xf32>
      %cst_20 = arith.constant 0.000000e+00 : f32
      %40 = vector.broadcast %cst_20 : f32 to vector<1x128xf32>
      %41 = arith.maximumf %39, %40 : vector<1x128xf32>
      %cst_21 = arith.constant 9.99999974E-6 : f32
      %42 = vector.broadcast %cst_21 : f32 to vector<1x128xf32>
      %43 = arith.addf %41, %42 : vector<1x128xf32>
      %44 = math.rsqrt %43 : vector<1x128xf32>
      %45 = arith.mulf %30, %44 : vector<1x128xf32>
      %46 = arith.mulf %34, %45 : vector<1x128xf32>
      %47 = arith.subf %31, %46 : vector<1x128xf32>
      %c0_22 = arith.constant 0 : index
      %c0_23 = arith.constant 0 : index
      %48 = vector.load %arg8[%c0_22, %c0_23] : memref<256x128xbf16, #tpu.memory_space<vmem>>, vector<256x128xbf16>
      %49 = arith.extf %48 : vector<256x128xbf16> to vector<256x128xf32>
      %50 = vector.broadcast %45 : vector<1x128xf32> to vector<256x128xf32>
      %51 = arith.mulf %49, %50 : vector<256x128xf32>
      %52 = arith.truncf %51 : vector<256x128xf32> to vector<256x128xbf16>
      %c0_24 = arith.constant 0 : index
      %c0_25 = arith.constant 0 : index
      %53 = vector.load %arg23[%c0_24, %c0_25] : memref<256x128xbf16, #tpu.memory_space<vmem>>, vector<256x128xbf16>
      tpu.vector_store %arg23[%c0_24, %c0_25], %52 {strides = array<i32>} : memref<256x128xbf16, #tpu.memory_space<vmem>>, vector<256x128xbf16>,
      %c0_26 = arith.constant 0 : index
      %c0_27 = arith.constant 0 : index
      %54 = vector.load %arg9[%c0_26, %c0_27] : memref<1x128xf32, #tpu.memory_space<vmem>>, vector<1x128xf32>
      %55 = arith.mulf %54, %45 : vector<1x128xf32>
      %56 = arith.addf %55, %47 : vector<1x128xf32>
      %c0_28 = arith.constant 0 : index
      %c0_29 = arith.constant 0 : index
      %57 = vector.load %arg24[%c0_28, %c0_29] : memref<1x128xf32, #tpu.memory_space<vmem>>, vector<1x128xf32>
      tpu.vector_store %arg24[%c0_28, %c0_29], %56 {strides = array<i32>} : memref<1x128xf32, #tpu.memory_space<vmem>>, vector<1x128xf32>,
    } else {
    }
    %c1_i32_8 = arith.constant 1 : i32
    %24 = arith.cmpi eq, %arg0, %c1_i32_8 : i32
    %25 = arith.extui %24 : i1 to i32
    %c0_i32_9 = arith.constant 0 : i32
    %26 = arith.cmpi ne, %25, %c0_i32_9 : i32
    scf.if %26 {
      %30 = arith.index_cast %arg1 : i32 to index
      %c0 = arith.constant 0 : index
      %c0_12 = arith.constant 0 : index
      %31 = vector.load %arg25[%30, %c0, %c0_12] : memref<1x128x64xbf16, #tpu.memory_space<vmem>>, vector<1x128x64xbf16>
      %32 = vector.shape_cast %31 : vector<1x128x64xbf16> to vector<128x64xbf16>
      %c0_13 = arith.constant 0 : index
      %c0_14 = arith.constant 0 : index
      %33 = vector.load %arg21[%c0_13, %c0_14] : memref<64x256xbf16, #tpu.memory_space<vmem>>, vector<64x256xbf16>
      %cst = arith.constant dense<0.000000e+00> : vector<128x256xf32>
      %34 = tpu.matmul %32, %33, %cst {dimension_numbers = #tpu.dot_dimension_numbers<[1], [0], [0], [1], [0, 0, 1, 1], [], []>} : vector<128x64xbf16>, vector<64x256xbf16>, vector<128x256xf32> -> vector<128x256xf32>
      %c0_15 = arith.constant 0 : index
      %c0_16 = arith.constant 0 : index
      %35 = vector.load %arg22[%c0_15, %c0_16] : memref<1x256xf32, #tpu.memory_space<vmem>>, vector<1x256xf32>
      %36 = vector.broadcast %35 : vector<1x256xf32> to vector<128x256xf32>
      %37 = arith.addf %34, %36 : vector<128x256xf32>
      %cst_17 = arith.constant 0.000000e+00 : f32
      %38 = vector.broadcast %cst_17 : f32 to vector<128x256xf32>
      %39 = arith.maximumf %37, %38 : vector<128x256xf32>
      %40 = arith.truncf %39 : vector<128x256xf32> to vector<128x256xbf16>
      %c0_18 = arith.constant 0 : index
      %c0_19 = arith.constant 0 : index
      %41 = vector.load %arg8[%c0_18, %c0_19] : memref<256x128xbf16, #tpu.memory_space<vmem>>, vector<256x128xbf16>
      %cst_20 = arith.constant dense<0.000000e+00> : vector<128x128xf32>
      %42 = tpu.matmul %40, %41, %cst_20 {dimension_numbers = #tpu.dot_dimension_numbers<[1], [0], [0], [1], [0, 0, 1, 1], [], []>} : vector<128x256xbf16>, vector<256x128xbf16>, vector<128x128xf32> -> vector<128x128xf32>
      %c0_21 = arith.constant 0 : index
      %c0_22 = arith.constant 0 : index
      %43 = vector.load %arg9[%c0_21, %c0_22] : memref<1x128xf32, #tpu.memory_space<vmem>>, vector<1x128xf32>
      %44 = vector.broadcast %43 : vector<1x128xf32> to vector<128x128xf32>
      %45 = arith.addf %42, %44 : vector<128x128xf32>
      %cst_23 = arith.constant 0.000000e+00 : f32
      %46 = vector.shape_cast %10 : vector<128x1xi1> to vector<128x1xi1>
      %47 = vector.broadcast %46 : vector<128x1xi1> to vector<128x128xi1>
      %48 = vector.broadcast %cst_23 : f32 to vector<128x128xf32>
      %49 = arith.select %47, %45, %48 : vector<128x128xi1>, vector<128x128xf32>
      %c0_24 = arith.constant 0 : index
      %c0_25 = arith.constant 0 : index
      %50 = vector.load %arg19[%c0_24, %c0_25] : memref<1x128xf32, #tpu.memory_space<vmem>>, vector<1x128xf32>
      %cst_26 = arith.constant dense<0.000000e+00> : vector<128xf32>
      %51 = vector.multi_reduction <add>, %49, %cst_26 [0] : vector<128x128xf32> to vector<128xf32>
      %52 = vector.shape_cast %51 : vector<128xf32> to vector<1x128xf32>
      %53 = arith.addf %50, %52 : vector<1x128xf32>
      %c0_27 = arith.constant 0 : index
      %c0_28 = arith.constant 0 : index
      %54 = vector.load %arg19[%c0_27, %c0_28] : memref<1x128xf32, #tpu.memory_space<vmem>>, vector<1x128xf32>
      tpu.vector_store %arg19[%c0_27, %c0_28], %53 {strides = array<i32>} : memref<1x128xf32, #tpu.memory_space<vmem>>, vector<1x128xf32>,
      %c0_29 = arith.constant 0 : index
      %c0_30 = arith.constant 0 : index
      %55 = vector.load %arg20[%c0_29, %c0_30] : memref<1x128xf32, #tpu.memory_space<vmem>>, vector<1x128xf32>
      %56 = arith.mulf %49, %49 : vector<128x128xf32>
      %cst_31 = arith.constant dense<0.000000e+00> : vector<128xf32>
      %57 = vector.multi_reduction <add>, %56, %cst_31 [0] : vector<128x128xf32> to vector<128xf32>
      %58 = vector.shape_cast %57 : vector<128xf32> to vector<1x128xf32>
      %59 = arith.addf %55, %58 : vector<1x128xf32>
      %c0_32 = arith.constant 0 : index
      %c0_33 = arith.constant 0 : index
      %60 = vector.load %arg20[%c0_32, %c0_33] : memref<1x128xf32, #tpu.memory_space<vmem>>, vector<1x128xf32>
      tpu.vector_store %arg20[%c0_32, %c0_33], %59 {strides = array<i32>} : memref<1x128xf32, #tpu.memory_space<vmem>>, vector<1x128xf32>,
    } else {
    }
    %c2_i32_10 = arith.constant 2 : i32
    %27 = arith.cmpi eq, %arg0, %c2_i32_10 : i32
    %28 = arith.extui %27 : i1 to i32
    %c0_i32_11 = arith.constant 0 : i32
    %29 = arith.cmpi ne, %28, %c0_i32_11 : i32
    scf.if %29 {
      %30 = arith.index_cast %arg1 : i32 to index
      %c0 = arith.constant 0 : index
      %c0_12 = arith.constant 0 : index
      %31 = vector.load %arg25[%30, %c0, %c0_12] : memref<1x128x64xbf16, #tpu.memory_space<vmem>>, vector<1x128x64xbf16>
      %32 = vector.shape_cast %31 : vector<1x128x64xbf16> to vector<128x64xbf16>
      %c0_13 = arith.constant 0 : index
      %c0_14 = arith.constant 0 : index
      %33 = vector.load %arg21[%c0_13, %c0_14] : memref<64x256xbf16, #tpu.memory_space<vmem>>, vector<64x256xbf16>
      %cst = arith.constant dense<0.000000e+00> : vector<128x256xf32>
      %34 = tpu.matmul %32, %33, %cst {dimension_numbers = #tpu.dot_dimension_numbers<[1], [0], [0], [1], [0, 0, 1, 1], [], []>} : vector<128x64xbf16>, vector<64x256xbf16>, vector<128x256xf32> -> vector<128x256xf32>
      %c0_15 = arith.constant 0 : index
      %c0_16 = arith.constant 0 : index
      %35 = vector.load %arg22[%c0_15, %c0_16] : memref<1x256xf32, #tpu.memory_space<vmem>>, vector<1x256xf32>
      %36 = vector.broadcast %35 : vector<1x256xf32> to vector<128x256xf32>
      %37 = arith.addf %34, %36 : vector<128x256xf32>
      %cst_17 = arith.constant 0.000000e+00 : f32
      %38 = vector.broadcast %cst_17 : f32 to vector<128x256xf32>
      %39 = arith.maximumf %37, %38 : vector<128x256xf32>
      %40 = arith.truncf %39 : vector<128x256xf32> to vector<128x256xbf16>
      %c0_18 = arith.constant 0 : index
      %c0_19 = arith.constant 0 : index
      %41 = vector.load %arg23[%c0_18, %c0_19] : memref<256x128xbf16, #tpu.memory_space<vmem>>, vector<256x128xbf16>
      %cst_20 = arith.constant dense<0.000000e+00> : vector<128x128xf32>
      %42 = tpu.matmul %40, %41, %cst_20 {dimension_numbers = #tpu.dot_dimension_numbers<[1], [0], [0], [1], [0, 0, 1, 1], [], []>} : vector<128x256xbf16>, vector<256x128xbf16>, vector<128x128xf32> -> vector<128x128xf32>
      %c0_21 = arith.constant 0 : index
      %c0_22 = arith.constant 0 : index
      %43 = vector.load %arg24[%c0_21, %c0_22] : memref<1x128xf32, #tpu.memory_space<vmem>>, vector<1x128xf32>
      %44 = vector.broadcast %43 : vector<1x128xf32> to vector<128x128xf32>
      %45 = arith.addf %42, %44 : vector<128x128xf32>
      %cst_23 = arith.constant 0.000000e+00 : f32
      %46 = vector.broadcast %cst_23 : f32 to vector<128x128xf32>
      %47 = arith.maximumf %45, %46 : vector<128x128xf32>
      %48 = arith.truncf %47 : vector<128x128xf32> to vector<128x128xbf16>
      %c0_24 = arith.constant 0 : index
      %c0_25 = arith.constant 0 : index
      %49 = vector.load %arg12[%c0_24, %c0_25] : memref<128x64xbf16, #tpu.memory_space<vmem>>, vector<128x64xbf16>
      %cst_26 = arith.constant dense<0.000000e+00> : vector<128x64xf32>
      %50 = tpu.matmul %48, %49, %cst_26 {dimension_numbers = #tpu.dot_dimension_numbers<[1], [0], [0], [1], [0, 0, 1, 1], [], []>} : vector<128x128xbf16>, vector<128x64xbf16>, vector<128x64xf32> -> vector<128x64xf32>
      %c0_27 = arith.constant 0 : index
      %c0_28 = arith.constant 0 : index
      %51 = vector.load %arg13[%c0_27, %c0_28] : memref<1x64xf32, #tpu.memory_space<vmem>>, vector<1x64xf32>
      %52 = vector.broadcast %51 : vector<1x64xf32> to vector<128x64xf32>
      %53 = arith.addf %50, %52 : vector<128x64xf32>
      %cst_29 = arith.constant 0.000000e+00 : f32
      %54 = vector.broadcast %cst_29 : f32 to vector<128x64xf32>
      %55 = arith.maximumf %53, %54 : vector<128x64xf32>
      %c0_30 = arith.constant 0 : index
      %c0_31 = arith.constant 0 : index
      %56 = vector.load %arg14[%c0_30, %c0_31] : memref<1x64xf32, #tpu.memory_space<vmem>>, vector<1x64xf32>
      %57 = vector.broadcast %56 : vector<1x64xf32> to vector<128x64xf32>
      %58 = arith.mulf %55, %57 : vector<128x64xf32>
      %cst_32 = arith.constant dense<0.000000e+00> : vector<128xf32>
      %59 = vector.multi_reduction <add>, %58, %cst_32 [1] : vector<128x64xf32> to vector<128xf32>
      %60 = vector.shape_cast %59 : vector<128xf32> to vector<128x1xf32>
      %c0_33 = arith.constant 0 : index
      %c0_34 = arith.constant 0 : index
      %61 = vector.load %arg15[%c0_33, %c0_34] : memref<1x1xf32, #tpu.memory_space<vmem>>, vector<1x1xf32>
      %62 = vector.broadcast %61 : vector<1x1xf32> to vector<128x1xf32>
      %63 = arith.addf %60, %62 : vector<128x1xf32>
      %64 = arith.negf %63 : vector<128x1xf32>
      %65 = math.exp %64 : vector<128x1xf32>
      %cst_35 = arith.constant 1.000000e+00 : f32
      %66 = vector.broadcast %cst_35 : f32 to vector<128x1xf32>
      %67 = arith.addf %66, %65 : vector<128x1xf32>
      %68 = arith.divf %66, %67 : vector<128x1xf32>
      %69 = tpu.transpose %68, [1, 0] : vector<128x1xf32> -> vector<1x128xf32>
      %c0_36 = arith.constant 0 : index
      %c0_37 = arith.constant 0 : index
      %70 = vector.load %arg16[%c0_36, %c0_37] : memref<1x128xf32, #tpu.memory_space<vmem>>, vector<1x128xf32>
      tpu.vector_store %arg16[%c0_36, %c0_37], %69 {strides = array<i32>} : memref<1x128xf32, #tpu.memory_space<vmem>>, vector<1x128xf32>,
    } else {
    }
    return
  }
  func.func @transform_0(%arg0: i32, %arg1: i32) -> (i32, i32) {
    %c0_i32 = arith.constant 0 : i32
    %c0_i32_0 = arith.constant 0 : i32
    return %arg1, %c0_i32 : i32, i32
  }
  func.func @transform_1(%arg0: i32, %arg1: i32) -> (i32, i32) {
    %c0_i32 = arith.constant 0 : i32
    %c0_i32_0 = arith.constant 0 : i32
    %c0_i32_1 = arith.constant 0 : i32
    return %c0_i32, %c0_i32_0 : i32, i32
  }
  func.func @transform_2(%arg0: i32, %arg1: i32) -> (i32, i32) {
    %c0_i32 = arith.constant 0 : i32
    %c0_i32_0 = arith.constant 0 : i32
    %c0_i32_1 = arith.constant 0 : i32
    return %c0_i32, %c0_i32_0 : i32, i32
  }
  func.func @transform_3(%arg0: i32, %arg1: i32) -> (i32, i32) {
    %c0_i32 = arith.constant 0 : i32
    %c0_i32_0 = arith.constant 0 : i32
    %c0_i32_1 = arith.constant 0 : i32
    return %c0_i32, %c0_i32_0 : i32, i32
  }
  func.func @transform_4(%arg0: i32, %arg1: i32) -> (i32, i32) {
    %c0_i32 = arith.constant 0 : i32
    %c0_i32_0 = arith.constant 0 : i32
    %c0_i32_1 = arith.constant 0 : i32
    return %c0_i32, %c0_i32_0 : i32, i32
  }
  func.func @transform_5(%arg0: i32, %arg1: i32) -> (i32, i32) {
    %c0_i32 = arith.constant 0 : i32
    %c0_i32_0 = arith.constant 0 : i32
    %c0_i32_1 = arith.constant 0 : i32
    return %c0_i32, %c0_i32_0 : i32, i32
  }
  func.func @transform_6(%arg0: i32, %arg1: i32) -> (i32, i32) {
    %c0_i32 = arith.constant 0 : i32
    %c0_i32_0 = arith.constant 0 : i32
    %c0_i32_1 = arith.constant 0 : i32
    return %c0_i32, %c0_i32_0 : i32, i32
  }
  func.func @transform_7(%arg0: i32, %arg1: i32) -> (i32, i32) {
    %c0_i32 = arith.constant 0 : i32
    %c0_i32_0 = arith.constant 0 : i32
    %c0_i32_1 = arith.constant 0 : i32
    return %c0_i32, %c0_i32_0 : i32, i32
  }
  func.func @transform_8(%arg0: i32, %arg1: i32) -> (i32, i32) {
    %c0_i32 = arith.constant 0 : i32
    %c0_i32_0 = arith.constant 0 : i32
    %c0_i32_1 = arith.constant 0 : i32
    return %c0_i32, %c0_i32_0 : i32, i32
  }
  func.func @transform_9(%arg0: i32, %arg1: i32) -> (i32, i32) {
    %c0_i32 = arith.constant 0 : i32
    %c0_i32_0 = arith.constant 0 : i32
    %c0_i32_1 = arith.constant 0 : i32
    return %c0_i32, %c0_i32_0 : i32, i32
  }
  func.func @transform_10(%arg0: i32, %arg1: i32) -> (i32, i32) {
    %c0_i32 = arith.constant 0 : i32
    %c0_i32_0 = arith.constant 0 : i32
    %c0_i32_1 = arith.constant 0 : i32
    return %c0_i32, %c0_i32_0 : i32, i32
  }
  func.func @transform_11(%arg0: i32, %arg1: i32) -> (i32, i32) {
    %c0_i32 = arith.constant 0 : i32
    %c0_i32_0 = arith.constant 0 : i32
    %c0_i32_1 = arith.constant 0 : i32
    return %c0_i32, %c0_i32_0 : i32, i32
  }
  func.func @transform_12(%arg0: i32, %arg1: i32) -> (i32, i32) {
    %c0_i32 = arith.constant 0 : i32
    %c0_i32_0 = arith.constant 0 : i32
    %c0_i32_1 = arith.constant 0 : i32
    return %c0_i32, %c0_i32_0 : i32, i32
  }
  func.func @transform_13(%arg0: i32, %arg1: i32) -> (i32, i32) {
    %c0_i32 = arith.constant 0 : i32
    %c0_i32_0 = arith.constant 0 : i32
    %c0_i32_1 = arith.constant 0 : i32
    return %c0_i32, %c0_i32_0 : i32, i32
  }
  func.func @transform_14(%arg0: i32, %arg1: i32) -> (i32, i32) {
    %c2_i32 = arith.constant 2 : i32
    %0 = arith.cmpi eq, %arg0, %c2_i32 : i32
    %c0_i32 = arith.constant 0 : i32
    %1 = arith.select %0, %arg1, %c0_i32 : i32
    %c0_i32_0 = arith.constant 0 : i32
    %c0_i32_1 = arith.constant 0 : i32
    return %c0_i32_0, %1 : i32, i32
  }
}

</mosaic_0001>

<llo_original>
// kernel: tpu_custom_call.1
$region0: #{tpu_custom_call.1}
  #allocation0 [shape = 'u32[]', space=smem, size = 0x4, offset = 0x4, fixed_abs, tag = 'smem constant byte address 0x4 - core index']
  #allocation1 [shape = 'u32[144,128]{1,0:T(1,128)}', space=vmem, size = 0x12000, scoped, tag = 'internal scratch']
  #allocation2 [shape = 'f32[1,256]{1,0:T(1,128)}', space=vmem, size = 0x400, scoped, tag = 'scratch operand']
  #allocation3 [shape = 'f32[1,256]{1,0:T(1,128)}', space=vmem, size = 0x400, scoped, tag = 'scratch operand']
  #allocation4 [shape = 'f32[1,128]{1,0:T(1,128)}', space=vmem, size = 0x200, scoped, tag = 'scratch operand']
  #allocation5 [shape = 'f32[1,128]{1,0:T(1,128)}', space=vmem, size = 0x200, scoped, tag = 'scratch operand']
  #allocation6 [shape = 'bf16[64,256]{1,0:T(8,128)(2,1)}', space=vmem, size = 0x8000, scoped, tag = 'scratch operand']
  #allocation7 [shape = 'f32[1,256]{1,0:T(1,128)}', space=vmem, size = 0x400, scoped, tag = 'scratch operand']
  #allocation8 [shape = 'bf16[256,128]{1,0:T(8,128)(2,1)}', space=vmem, size = 0x10000, scoped, tag = 'scratch operand']
  #allocation9 [shape = 'f32[1,128]{1,0:T(1,128)}', space=vmem, size = 0x200, scoped, tag = 'scratch operand']
  #allocation10 [shape = 'bf16[1,128,64]{2,1,0:T(8,128)(2,1)}', space=vmem, size = 0x8000, scoped, tag = 'scratch operand']
  #allocation11 [shape = 'f32[1,1]{1,0:T(1,128)S(1)}', space=vmem, size = 0x200, scoped, tag = 'scoped memory for tpu_custom_call.1']
  %s0 = inlined_call_operand.vmem [shape: s32[128,1], index: 0, kind: input, shape index: {}]
  %s1 = inlined_call_operand.vmem [shape: bf16[100,64], index: 1, kind: input, shape index: {}]
  %s2 = inlined_call_operand.vmem [shape: bf16[64,256], index: 2, kind: input, shape index: {}]
  %s3 = inlined_call_operand.vmem [shape: f32[1,256], index: 3, kind: input, shape index: {}]
  %s4 = inlined_call_operand.vmem [shape: f32[1,256], index: 4, kind: input, shape index: {}]
  %s5 = inlined_call_operand.vmem [shape: f32[1,256], index: 5, kind: input, shape index: {}]
  %s6 = inlined_call_operand.vmem [shape: bf16[256,128], index: 6, kind: input, shape index: {}]
  %s7 = inlined_call_operand.vmem [shape: f32[1,128], index: 7, kind: input, shape index: {}]
  %s8 = inlined_call_operand.vmem [shape: f32[1,128], index: 8, kind: input, shape index: {}]
  %s9 = inlined_call_operand.vmem [shape: f32[1,128], index: 9, kind: input, shape index: {}]
  %s10 = inlined_call_operand.vmem [shape: bf16[128,64], index: 10, kind: input, shape index: {}]
  %s11 = inlined_call_operand.vmem [shape: f32[1,64], index: 11, kind: input, shape index: {}]
  %s12 = inlined_call_operand.vmem [shape: f32[1,64], index: 12, kind: input, shape index: {}]
  %s13 = inlined_call_operand.<no memory space> [shape: f32[1,1], index: 13, kind: input, shape index: {}]
  %s14 = inlined_call_operand.hbm [shape: f32[1,128], index: 14, kind: output, shape index: {}]
  %s15 = sld [smem:[#allocation0]]
  $region113: #{tpu_custom_call.1} parent=0
    _
  %s17 = ssub.s32 1, %s15
  %s18 = scalar_select 0, %s17, %s15
  %v19 = vstv %s13
  %20 = vst [vmem:[#allocation11] sm:$0x1] %v19
  $region1: #{tpu_custom_call.1} parent=0
    #allocation12 [shape = 'u8[1024]{0}', space=vmem, size = 0x400, scoped, tag = 'output window, operand 0']
    #allocation13 [shape = 's32[2]{0}', space=sflag, size = 0x8, scoped, tag = 'scoped memory for tpu_custom_call.1']
    %21 = vsyncpa [#allocation13], 0
    %s22 = scalar_lea.sflag [#allocation13], 1
    %23 = vsyncpa %s22, 0
    loop: start=0, step=1, limit=5
    $region2: #{tpu_custom_call.1} parent=1 // loop_pre_header
      _
    $region3: #{tpu_custom_call.1} parent=1 // loop_header
      %s25 = sphi 0, %s29
      %p26 = scmp.ge.s32.totalorder %s25, 5
      %s32 = sphi 0, %s44
      %s33 = sphi 0, %s40
      %s34 = sphi 0, %s32
      %s35 = sphi 0, %s33
      %s36 = sphi 0, %s34
      %s37 = sphi 0, %s35
      %s47 = sphi 0, %s49
      %s50 = sphi 0, %s47
      %s51 = sphi 0, %s50
      %s67 = sphi 0, %s51
      %s71 = sphi 0, %s71
      %s73 = sphi 0, %s71
      %s74 = sphi 0, %s73
      %s88 = sphi 0, %s74
      %s92 = sphi 0, %s92
      %s94 = sphi 0, %s92
      %s95 = sphi 0, %s94
      %s109 = sphi 0, %s95
      %s113 = sphi 0, %s113
      %s115 = sphi 0, %s113
      %s116 = sphi 0, %s115
      %s130 = sphi 0, %s116
      %s134 = sphi 0, %s134
      %s136 = sphi 0, %s134
      %s137 = sphi 0, %s136
      %s151 = sphi 0, %s137
      %s155 = sphi 0, %s155
      %s157 = sphi 0, %s155
      %s158 = sphi 0, %s157
      %s172 = sphi 0, %s158
      %s176 = sphi 0, %s176
      %s178 = sphi 0, %s176
      %s179 = sphi 0, %s178
      %s193 = sphi 0, %s179
      %s197 = sphi 0, %s197
      %s199 = sphi 0, %s197
      %s200 = sphi 0, %s199
      %s214 = sphi 0, %s200
      %s218 = sphi 0, %s218
      %s220 = sphi 0, %s218
      %s221 = sphi 0, %s220
      %s235 = sphi 0, %s221
      %s239 = sphi 0, %s239
      %s241 = sphi 0, %s239
      %s242 = sphi 0, %s241
      %s256 = sphi 0, %s242
      %s260 = sphi 0, %s260
      %s262 = sphi 0, %s260
      %s263 = sphi 0, %s262
      %s277 = sphi 0, %s263
      %s281 = sphi 0, %s281
      %s283 = sphi 0, %s281
      %s284 = sphi 0, %s283
      %s298 = sphi 0, %s284
      %s302 = sphi 0, %s302
      %s304 = sphi 0, %s302
      %s305 = sphi 0, %s304
      %s319 = sphi 0, %s305
      %s323 = sphi 0, %s323
      %s325 = sphi 0, %s323
      %s326 = sphi 0, %s325
      %s340 = sphi 0, %s326
      %s350 = sphi 0, %s352
      %s353 = sphi 0, %s350
      %s354 = sphi 0, %s353
      %s370 = sphi 0, %s354
    $region4: #{tpu_custom_call.1} parent=1 // loop_header_branch
      %28 = sbr.rel (%p26) target = $region8
    $region5: #{tpu_custom_call.1} parent=1 // loop_body
      %s30 = ssub.s32 %s25, 1
      %s31 = ssub.s32 %s25, 2
      %s38 = sadd.s32 1, %s33
      %p39 = scmp.ge.s32.totalorder %s38, 1
      %s40 = scalar_select %p39, 0, %s38
      %s41 = sadd.s32 1, %s32
      %s42 = scalar_select %p39, %s41, %s32
      %p43 = scmp.ge.s32.totalorder %s42, 3
      %s44 = scalar_select %p43, 0, %s42
      %s45 = ssub.s32 %s33, %s40
      %p46 = scmp.eq.s32.totalorder %s45, 0
      %s48 = sadd.s32 %s47, 1
      %s49 = scalar_select %p46, %s47, %s48
      %p52 = pneg %p46
      %p53 = scmp.eq.s32.totalorder %s25, 2
      %p54 = por %p52, %p53
      %p55 = scmp.ne.s32.totalorder %s47, %s50
      %p56 = scmp.eq.s32.totalorder %s25, 0
      %p57 = por %p55, %p56
      %p58 = scmp.ne.s32.totalorder %s47, %s50
      %p59 = scmp.eq.s32.totalorder %s30, 2
      %p60 = por %p58, %p59
      %p61 = scmp.ne.s32.totalorder %s50, %s51
      %p62 = scmp.eq.s32.totalorder %s30, 0
      %p63 = por %p61, %p62
      %p64 = scmp.ne.s32.totalorder %s50, %s51
      %p65 = scmp.eq.s32.totalorder %s31, 2
      %p66 = por %p64, %p65
      %p68 = scmp.ne.s32.totalorder %s51, %s67
      %p69 = scmp.eq.s32.totalorder %s31, 0
      %p70 = por %p68, %p69
      %s72 = sadd.s32 %s71, 1
      %p75 = scmp.eq.s32.totalorder %s25, 2
      %p76 = scmp.ne.s32.totalorder %s71, %s73
      %p77 = scmp.eq.s32.totalorder %s25, 0
      %p78 = por %p76, %p77
      %p79 = scmp.ne.s32.totalorder %s71, %s73
      %p80 = scmp.eq.s32.totalorder %s30, 2
      %p81 = por %p79, %p80
      %p82 = scmp.ne.s32.totalorder %s73, %s74
      %p83 = scmp.eq.s32.totalorder %s30, 0
      %p84 = por %p82, %p83
      %p85 = scmp.ne.s32.totalorder %s73, %s74
      %p86 = scmp.eq.s32.totalorder %s31, 2
      %p87 = por %p85, %p86
      %p89 = scmp.ne.s32.totalorder %s74, %s88
      %p90 = scmp.eq.s32.totalorder %s31, 0
      %p91 = por %p89, %p90
      %s93 = sadd.s32 %s92, 1
      %p96 = scmp.eq.s32.totalorder %s25, 2
      %p97 = scmp.ne.s32.totalorder %s92, %s94
      %p98 = scmp.eq.s32.totalorder %s25, 0
      %p99 = por %p97, %p98
      %p100 = scmp.ne.s32.totalorder %s92, %s94
      %p101 = scmp.eq.s32.totalorder %s30, 2
      %p102 = por %p100, %p101
      %p103 = scmp.ne.s32.totalorder %s94, %s95
      %p104 = scmp.eq.s32.totalorder %s30, 0
      %p105 = por %p103, %p104
      %p106 = scmp.ne.s32.totalorder %s94, %s95
      %p107 = scmp.eq.s32.totalorder %s31, 2
      %p108 = por %p106, %p107
      %p110 = scmp.ne.s32.totalorder %s95, %s109
      %p111 = scmp.eq.s32.totalorder %s31, 0
      %p112 = por %p110, %p111
      %s114 = sadd.s32 %s113, 1
      %p117 = scmp.eq.s32.totalorder %s25, 2
      %p118 = scmp.ne.s32.totalorder %s113, %s115
      %p119 = scmp.eq.s32.totalorder %s25, 0
      %p120 = por %p118, %p119
      %p121 = scmp.ne.s32.totalorder %s113, %s115
      %p122 = scmp.eq.s32.totalorder %s30, 2
      %p123 = por %p121, %p122
      %p124 = scmp.ne.s32.totalorder %s115, %s116
      %p125 = scmp.eq.s32.totalorder %s30, 0
      %p126 = por %p124, %p125
      %p127 = scmp.ne.s32.totalorder %s115, %s116
      %p128 = scmp.eq.s32.totalorder %s31, 2
      %p129 = por %p127, %p128
      %p131 = scmp.ne.s32.totalorder %s116, %s130
      %p132 = scmp.eq.s32.totalorder %s31, 0
      %p133 = por %p131, %p132
      %s135 = sadd.s32 %s134, 1
      %p138 = scmp.eq.s32.totalorder %s25, 2
      %p139 = scmp.ne.s32.totalorder %s134, %s136
      %p140 = scmp.eq.s32.totalorder %s25, 0
      %p141 = por %p139, %p140
      %p142 = scmp.ne.s32.totalorder %s134, %s136
      %p143 = scmp.eq.s32.totalorder %s30, 2
      %p144 = por %p142, %p143
      %p145 = scmp.ne.s32.totalorder %s136, %s137
      %p146 = scmp.eq.s32.totalorder %s30, 0
      %p147 = por %p145, %p146
      %p148 = scmp.ne.s32.totalorder %s136, %s137
      %p149 = scmp.eq.s32.totalorder %s31, 2
      %p150 = por %p148, %p149
      %p152 = scmp.ne.s32.totalorder %s137, %s151
      %p153 = scmp.eq.s32.totalorder %s31, 0
      %p154 = por %p152, %p153
      %s156 = sadd.s32 %s155, 1
      %p159 = scmp.eq.s32.totalorder %s25, 2
      %p160 = scmp.ne.s32.totalorder %s155, %s157
      %p161 = scmp.eq.s32.totalorder %s25, 0
      %p162 = por %p160, %p161
      %p163 = scmp.ne.s32.totalorder %s155, %s157
      %p164 = scmp.eq.s32.totalorder %s30, 2
      %p165 = por %p163, %p164
      %p166 = scmp.ne.s32.totalorder %s157, %s158
      %p167 = scmp.eq.s32.totalorder %s30, 0
      %p168 = por %p166, %p167
      %p169 = scmp.ne.s32.totalorder %s157, %s158
      %p170 = scmp.eq.s32.totalorder %s31, 2
      %p171 = por %p169, %p170
      %p173 = scmp.ne.s32.totalorder %s158, %s172
      %p174 = scmp.eq.s32.totalorder %s31, 0
      %p175 = por %p173, %p174
      %s177 = sadd.s32 %s176, 1
      %p180 = scmp.eq.s32.totalorder %s25, 2
      %p181 = scmp.ne.s32.totalorder %s176, %s178
      %p182 = scmp.eq.s32.totalorder %s25, 0
      %p183 = por %p181, %p182
      %p184 = scmp.ne.s32.totalorder %s176, %s178
      %p185 = scmp.eq.s32.totalorder %s30, 2
      %p186 = por %p184, %p185
      %p187 = scmp.ne.s32.totalorder %s178, %s179
      %p188 = scmp.eq.s32.totalorder %s30, 0
      %p189 = por %p187, %p188
      %p190 = scmp.ne.s32.totalorder %s178, %s179
      %p191 = scmp.eq.s32.totalorder %s31, 2
      %p192 = por %p190, %p191
      %p194 = scmp.ne.s32.totalorder %s179, %s193
      %p195 = scmp.eq.s32.totalorder %s31, 0
      %p196 = por %p194, %p195
      %s198 = sadd.s32 %s197, 1
      %p201 = scmp.eq.s32.totalorder %s25, 2
      %p202 = scmp.ne.s32.totalorder %s197, %s199
      %p203 = scmp.eq.s32.totalorder %s25, 0
      %p204 = por %p202, %p203
      %p205 = scmp.ne.s32.totalorder %s197, %s199
      %p206 = scmp.eq.s32.totalorder %s30, 2
      %p207 = por %p205, %p206
      %p208 = scmp.ne.s32.totalorder %s199, %s200
      %p209 = scmp.eq.s32.totalorder %s30, 0
      %p210 = por %p208, %p209
      %p211 = scmp.ne.s32.totalorder %s199, %s200
      %p212 = scmp.eq.s32.totalorder %s31, 2
      %p213 = por %p211, %p212
      %p215 = scmp.ne.s32.totalorder %s200, %s214
      %p216 = scmp.eq.s32.totalorder %s31, 0
      %p217 = por %p215, %p216
      %s219 = sadd.s32 %s218, 1
      %p222 = scmp.eq.s32.totalorder %s25, 2
      %p223 = scmp.ne.s32.totalorder %s218, %s220
      %p224 = scmp.eq.s32.totalorder %s25, 0
      %p225 = por %p223, %p224
      %p226 = scmp.ne.s32.totalorder %s218, %s220
      %p227 = scmp.eq.s32.totalorder %s30, 2
      %p228 = por %p226, %p227
      %p229 = scmp.ne.s32.totalorder %s220, %s221
      %p230 = scmp.eq.s32.totalorder %s30, 0
      %p231 = por %p229, %p230
      %p232 = scmp.ne.s32.totalorder %s220, %s221
      %p233 = scmp.eq.s32.totalorder %s31, 2
      %p234 = por %p232, %p233
      %p236 = scmp.ne.s32.totalorder %s221, %s235
      %p237 = scmp.eq.s32.totalorder %s31, 0
      %p238 = por %p236, %p237
      %s240 = sadd.s32 %s239, 1
      %p243 = scmp.eq.s32.totalorder %s25, 2
      %p244 = scmp.ne.s32.totalorder %s239, %s241
      %p245 = scmp.eq.s32.totalorder %s25, 0
      %p246 = por %p244, %p245
      %p247 = scmp.ne.s32.totalorder %s239, %s241
      %p248 = scmp.eq.s32.totalorder %s30, 2
      %p249 = por %p247, %p248
      %p250 = scmp.ne.s32.totalorder %s241, %s242
      %p251 = scmp.eq.s32.totalorder %s30, 0
      %p252 = por %p250, %p251
      %p253 = scmp.ne.s32.totalorder %s241, %s242
      %p254 = scmp.eq.s32.totalorder %s31, 2
      %p255 = por %p253, %p254
      %p257 = scmp.ne.s32.totalorder %s242, %s256
      %p258 = scmp.eq.s32.totalorder %s31, 0
      %p259 = por %p257, %p258
      %s261 = sadd.s32 %s260, 1
      %p264 = scmp.eq.s32.totalorder %s25, 2
      %p265 = scmp.ne.s32.totalorder %s260, %s262
      %p266 = scmp.eq.s32.totalorder %s25, 0
      %p267 = por %p265, %p266
      %p268 = scmp.ne.s32.totalorder %s260, %s262
      %p269 = scmp.eq.s32.totalorder %s30, 2
      %p270 = por %p268, %p269
      %p271 = scmp.ne.s32.totalorder %s262, %s263
      %p272 = scmp.eq.s32.totalorder %s30, 0
      %p273 = por %p271, %p272
      %p274 = scmp.ne.s32.totalorder %s262, %s263
      %p275 = scmp.eq.s32.totalorder %s31, 2
      %p276 = por %p274, %p275
      %p278 = scmp.ne.s32.totalorder %s263, %s277
      %p279 = scmp.eq.s32.totalorder %s31, 0
      %p280 = por %p278, %p279
      %s282 = sadd.s32 %s281, 1
      %p285 = scmp.eq.s32.totalorder %s25, 2
      %p286 = scmp.ne.s32.totalorder %s281, %s283
      %p287 = scmp.eq.s32.totalorder %s25, 0
      %p288 = por %p286, %p287
      %p289 = scmp.ne.s32.totalorder %s281, %s283
      %p290 = scmp.eq.s32.totalorder %s30, 2
      %p291 = por %p289, %p290
      %p292 = scmp.ne.s32.totalorder %s283, %s284
      %p293 = scmp.eq.s32.totalorder %s30, 0
      %p294 = por %p292, %p293
      %p295 = scmp.ne.s32.totalorder %s283, %s284
      %p296 = scmp.eq.s32.totalorder %s31, 2
      %p297 = por %p295, %p296
      %p299 = scmp.ne.s32.totalorder %s284, %s298
      %p300 = scmp.eq.s32.totalorder %s31, 0
      %p301 = por %p299, %p300
      %s303 = sadd.s32 %s302, 1
      %p306 = scmp.eq.s32.totalorder %s25, 2
      %p307 = scmp.ne.s32.totalorder %s302, %s304
      %p308 = scmp.eq.s32.totalorder %s25, 0
      %p309 = por %p307, %p308
      %p310 = scmp.ne.s32.totalorder %s302, %s304
      %p311 = scmp.eq.s32.totalorder %s30, 2
      %p312 = por %p310, %p311
      %p313 = scmp.ne.s32.totalorder %s304, %s305
      %p314 = scmp.eq.s32.totalorder %s30, 0
      %p315 = por %p313, %p314
      %p316 = scmp.ne.s32.totalorder %s304, %s305
      %p317 = scmp.eq.s32.totalorder %s31, 2
      %p318 = por %p316, %p317
      %p320 = scmp.ne.s32.totalorder %s305, %s319
      %p321 = scmp.eq.s32.totalorder %s31, 0
      %p322 = por %p320, %p321
      %s324 = sadd.s32 %s323, 1
      %p327 = scmp.eq.s32.totalorder %s25, 2
      %p328 = scmp.ne.s32.totalorder %s323, %s325
      %p329 = scmp.eq.s32.totalorder %s25, 0
      %p330 = por %p328, %p329
      %p331 = scmp.ne.s32.totalorder %s323, %s325
      %p332 = scmp.eq.s32.totalorder %s30, 2
      %p333 = por %p331, %p332
      %p334 = scmp.ne.s32.totalorder %s325, %s326
      %p335 = scmp.eq.s32.totalorder %s30, 0
      %p336 = por %p334, %p335
      %p337 = scmp.ne.s32.totalorder %s325, %s326
      %p338 = scmp.eq.s32.totalorder %s31, 2
      %p339 = por %p337, %p338
      %p341 = scmp.ne.s32.totalorder %s326, %s340
      %p342 = scmp.eq.s32.totalorder %s31, 0
      %p343 = por %p341, %p342
      %p344 = scmp.eq.s32.totalorder %s32, 2
      %s345 = scalar_select %p344, %s33, 0
      %p346 = scmp.eq.s32.totalorder %s44, 2
      %s347 = scalar_select %p346, %s40, 0
      %s348 = ssub.s32 %s345, %s347
      %p349 = scmp.eq.s32.totalorder %s348, 0
      %s351 = sadd.s32 %s350, 1
      %s352 = scalar_select %p349, %s350, %s351
      %p355 = pneg %p349
      %p356 = scmp.eq.s32.totalorder %s25, 2
      %p357 = por %p355, %p356
      %p358 = scmp.ne.s32.totalorder %s350, %s353
      %p359 = scmp.eq.s32.totalorder %s25, 0
      %p360 = por %p358, %p359
      %p361 = scmp.ne.s32.totalorder %s350, %s353
      %p362 = scmp.eq.s32.totalorder %s30, 2
      %p363 = por %p361, %p362
      %p364 = scmp.ne.s32.totalorder %s353, %s354
      %p365 = scmp.eq.s32.totalorder %s30, 0
      %p366 = por %p364, %p365
      %p367 = scmp.ne.s32.totalorder %s353, %s354
      %p368 = scmp.eq.s32.totalorder %s31, 2
      %p369 = por %p367, %p368
      %p371 = scmp.ne.s32.totalorder %s354, %s370
      %p372 = scmp.eq.s32.totalorder %s31, 0
      %p373 = por %p371, %p372
      %p374 = scmp.le.s32.totalorder 1, %s25
      %p375 = scmp.lt.s32.totalorder %s25, 4
      %p376 = pnand %p374, %p375
      %p377 = pneg %p376
      // Predicated region
      $region9: #{tpu_custom_call.1} parent=5 // pred_check
        _
      $region10: #{tpu_custom_call.1} parent=5 // pred_check_branch
        %379 = sbr.rel (%p376) target = $region12
      $region11: #{tpu_custom_call.1} parent=5 // pred_region
        %s380 = ssub.s32 %s25, 1
        // Predicated region
        $region13: #{tpu_custom_call.1} parent=11 // pred_check
          %p381 = pneg %p63
        $region14: #{tpu_custom_call.1} parent=11 // pred_check_branch
          %383 = sbr.rel (%p381) target = $region16
        $region15: #{tpu_custom_call.1} parent=11 // pred_region
          %s384 = smul.u32 16, %s35
          %p385 = scmp.lt.s32.totalorder %s384, 15
          %s386 = scalar_select %p385, %s384, 15
          %s387 = smul.addr %s386, 8
          %s388 = scalar_lea.vmem %s0, %s387
          %s389 = smul.u32 16, %s35
        $region16: #{tpu_custom_call.1} parent=11 // pred_fallthru
          _
        // Predicated region
        $region17: #{tpu_custom_call.1} parent=11 // pred_check
          %p390 = pneg %p84
        $region18: #{tpu_custom_call.1} parent=11 // pred_check_branch
          %392 = sbr.rel (%p390) target = $region20
        $region19: #{tpu_custom_call.1} parent=11 // pred_region
          _
        $region20: #{tpu_custom_call.1} parent=11 // pred_fallthru
          _
        // Predicated region
        $region21: #{tpu_custom_call.1} parent=11 // pred_check
          %p393 = pneg %p105
        $region22: #{tpu_custom_call.1} parent=11 // pred_check_branch
          %395 = sbr.rel (%p393) target = $region24
        $region23: #{tpu_custom_call.1} parent=11 // pred_region
          _
        $region24: #{tpu_custom_call.1} parent=11 // pred_fallthru
          _
        // Predicated region
        $region25: #{tpu_custom_call.1} parent=11 // pred_check
          %p396 = pneg %p126
        $region26: #{tpu_custom_call.1} parent=11 // pred_check_branch
          %398 = sbr.rel (%p396) target = $region28
        $region27: #{tpu_custom_call.1} parent=11 // pred_region
          _
        $region28: #{tpu_custom_call.1} parent=11 // pred_fallthru
          _
        // Predicated region
        $region29: #{tpu_custom_call.1} parent=11 // pred_check
          %p399 = pneg %p147
        $region30: #{tpu_custom_call.1} parent=11 // pred_check_branch
          %401 = sbr.rel (%p399) target = $region32
        $region31: #{tpu_custom_call.1} parent=11 // pred_region
          _
        $region32: #{tpu_custom_call.1} parent=11 // pred_fallthru
          _
        // Predicated region
        $region33: #{tpu_custom_call.1} parent=11 // pred_check
          %p402 = pneg %p168
        $region34: #{tpu_custom_call.1} parent=11 // pred_check_branch
          %404 = sbr.rel (%p402) target = $region36
        $region35: #{tpu_custom_call.1} parent=11 // pred_region
          _
        $region36: #{tpu_custom_call.1} parent=11 // pred_fallthru
          _
        // Predicated region
        $region37: #{tpu_custom_call.1} parent=11 // pred_check
          %p405 = pneg %p189
        $region38: #{tpu_custom_call.1} parent=11 // pred_check_branch
          %407 = sbr.rel (%p405) target = $region40
        $region39: #{tpu_custom_call.1} parent=11 // pred_region
          _
        $region40: #{tpu_custom_call.1} parent=11 // pred_fallthru
          _
        // Predicated region
        $region41: #{tpu_custom_call.1} parent=11 // pred_check
          %p408 = pneg %p210
        $region42: #{tpu_custom_call.1} parent=11 // pred_check_branch
          %410 = sbr.rel (%p408) target = $region44
        $region43: #{tpu_custom_call.1} parent=11 // pred_region
          _
        $region44: #{tpu_custom_call.1} parent=11 // pred_fallthru
          _
        // Predicated region
        $region45: #{tpu_custom_call.1} parent=11 // pred_check
          %p411 = pneg %p231
        $region46: #{tpu_custom_call.1} parent=11 // pred_check_branch
          %413 = sbr.rel (%p411) target = $region48
        $region47: #{tpu_custom_call.1} parent=11 // pred_region
          _
        $region48: #{tpu_custom_call.1} parent=11 // pred_fallthru
          _
        // Predicated region
        $region49: #{tpu_custom_call.1} parent=11 // pred_check
          %p414 = pneg %p252
        $region50: #{tpu_custom_call.1} parent=11 // pred_check_branch
          %416 = sbr.rel (%p414) target = $region52
        $region51: #{tpu_custom_call.1} parent=11 // pred_region
          _
        $region52: #{tpu_custom_call.1} parent=11 // pred_fallthru
          _
        // Predicated region
        $region53: #{tpu_custom_call.1} parent=11 // pred_check
          %p417 = pneg %p273
        $region54: #{tpu_custom_call.1} parent=11 // pred_check_branch
          %419 = sbr.rel (%p417) target = $region56
        $region55: #{tpu_custom_call.1} parent=11 // pred_region
          _
        $region56: #{tpu_custom_call.1} parent=11 // pred_fallthru
          _
        // Predicated region
        $region57: #{tpu_custom_call.1} parent=11 // pred_check
          %p420 = pneg %p294
        $region58: #{tpu_custom_call.1} parent=11 // pred_check_branch
          %422 = sbr.rel (%p420) target = $region60
        $region59: #{tpu_custom_call.1} parent=11 // pred_region
          _
        $region60: #{tpu_custom_call.1} parent=11 // pred_fallthru
          _
        // Predicated region
        $region61: #{tpu_custom_call.1} parent=11 // pred_check
          %p423 = pneg %p315
        $region62: #{tpu_custom_call.1} parent=11 // pred_check_branch
          %425 = sbr.rel (%p423) target = $region64
        $region63: #{tpu_custom_call.1} parent=11 // pred_region
          _
        $region64: #{tpu_custom_call.1} parent=11 // pred_fallthru
          _
        // Predicated region
        $region65: #{tpu_custom_call.1} parent=11 // pred_check
          %p426 = pneg %p336
        $region66: #{tpu_custom_call.1} parent=11 // pred_check_branch
          %428 = sbr.rel (%p426) target = $region68
        $region67: #{tpu_custom_call.1} parent=11 // pred_region
          _
        $region68: #{tpu_custom_call.1} parent=11 // pred_fallthru
          _
      $region12: #{tpu_custom_call.1} parent=5 // pred_fallthru
        _
      %p429 = scmp.lt.s32.totalorder %s25, 3
      // Predicated region
      $region69: #{tpu_custom_call.1} parent=5 // pred_check
        %p430 = pneg %p429
      $region70: #{tpu_custom_call.1} parent=5 // pred_check_branch
        %432 = sbr.rel (%p430) target = $region72
      $region71: #{tpu_custom_call.1} parent=5 // pred_region
        _
      $region72: #{tpu_custom_call.1} parent=5 // pred_fallthru
        _
      %p433 = scmp.le.s32.totalorder 1, %s25
      %p434 = scmp.lt.s32.totalorder %s25, 4
      %p435 = pnand %p433, %p434
      %p436 = pneg %p435
      // Predicated region
      $region73: #{tpu_custom_call.1} parent=5 // pred_check
        _
      $region74: #{tpu_custom_call.1} parent=5 // pred_check_branch
        %438 = sbr.rel (%p435) target = $region76
      $region75: #{tpu_custom_call.1} parent=5 // pred_region
        %s439 = ssub.s32 %s25, 1
        %s440 = smul.u32 16, %s35
        %p441 = scmp.lt.s32.totalorder %s440, 15
        %s442 = scalar_select %p441, %s440, 15
        %s443 = smul.addr %s442, 8
        %s444 = scalar_lea.vmem %s0, %s443
        %p445 = pneg %p63
        %p446 = pneg %p60
        %p447 = pneg %p84
        %p448 = pneg %p81
        %p449 = pneg %p105
        %p450 = pneg %p102
        %p451 = pneg %p126
        %p452 = pneg %p123
        %p453 = pneg %p147
        %p454 = pneg %p144
        %p455 = pneg %p168
        %p456 = pneg %p165
        %p457 = pneg %p189
        %p458 = pneg %p186
        %p459 = pneg %p210
        %p460 = pneg %p207
        %p461 = pneg %p231
        %p462 = pneg %p228
        %p463 = pneg %p252
        %p464 = pneg %p249
        %p465 = pneg %p273
        %p466 = pneg %p270
        %p467 = pneg %p294
        %p468 = pneg %p291
        %p469 = pneg %p315
        %p470 = pneg %p312
        %p471 = pneg %p336
        %p472 = pneg %p333
        %p473 = pneg %p366
        %p474 = pneg %p363
        %s475 = sand.u32 %s353, 1
        %s476 = scalar_lea.sflag [#allocation13], %s475
        %s477 = sand.u32 %s353, 1
        %s478 = scalar_lea.vmem [#allocation12], %s477
        %s479 = smul.u32 16, %s35
        %p480 = scmp.lt.s32.totalorder %s479, 15
        %s481 = scalar_select %p480, %s479, 15
        %s482 = smul.addr %s481, 8
        %s483 = scalar_lea.vmem %s0, %s482
        %s484 = smul.u32 16, %s35
        %p485 = scmp.eq.s32.totalorder %s34, 2
        %s486 = scalar_select %p485, %s35, 0
        %p488 = scmp.eq.s32.totalorder %s34, 0
        %p489 = scmp.eq.s32.totalorder %s35, 0
        %p490 = pnand %p488, %p489
        %p491 = pneg %p490
        // Predicated region
        $region77: #{tpu_custom_call.1} parent=75 // pred_check
          _
        $region78: #{tpu_custom_call.1} parent=75 // pred_check_branch
          %493 = sbr.rel (%p490) target = $region80
        $region79: #{tpu_custom_call.1} parent=75 // pred_region
          %v494 = vlaneseq
          %vm495 = vcmp.ge.s32.totalorder %v494, 0
          %vm496 = vcmp.lt.s32.totalorder %v494, 256
          %vm497 = vmand %vm495, %vm496
          %498 = vst.msk [vmem:[#allocation2] sm:$0x3] %vm497, 0.0
          %499 = vst.msk [vmem:[#allocation3] sm:$0x3] %vm497, 0.0
          %500 = vst [vmem:[#allocation4] sm:$0x1] 0.0
          %501 = vst [vmem:[#allocation5] sm:$0x1] 0.0
        $region80: #{tpu_custom_call.1} parent=75 // pred_fallthru
          _
        %s502 = smul.u32 %s35, 128
        %v503 = vlaneseq
        %v504 = vshrl.u32 %v503, 7
        %v505 = vadd.s32 %v504, 8
        %v506 = vadd.s32 %v504, 16
        %v507 = vadd.s32 %v504, 24
        %v508 = vadd.s32 %v504, 32
        %v509 = vadd.s32 %v504, 40
        %v510 = vadd.s32 %v504, 48
        %v511 = vadd.s32 %v504, 56
        %v512 = vadd.s32 %v504, 64
        %v513 = vadd.s32 %v504, 72
        %v514 = vadd.s32 %v504, 80
        %v515 = vadd.s32 %v504, 88
        %v516 = vadd.s32 %v504, 96
        %v517 = vadd.s32 %v504, 104
        %v518 = vadd.s32 %v504, 112
        %v519 = vadd.s32 %v504, 120
        %v520 = vstv %s502
        %v521 = vadd.s32 %v520, %v504
        %v522 = vadd.s32 %v520, %v505
        %v523 = vadd.s32 %v520, %v506
        %v524 = vadd.s32 %v520, %v507
        %v525 = vadd.s32 %v520, %v508
        %v526 = vadd.s32 %v520, %v509
        %v527 = vadd.s32 %v520, %v510
        %v528 = vadd.s32 %v520, %v511
        %v529 = vadd.s32 %v520, %v512
        %v530 = vadd.s32 %v520, %v513
        %v531 = vadd.s32 %v520, %v514
        %v532 = vadd.s32 %v520, %v515
        %v533 = vadd.s32 %v520, %v516
        %v534 = vadd.s32 %v520, %v517
        %v535 = vadd.s32 %v520, %v518
        %v536 = vadd.s32 %v520, %v519
        %vm537 = vcmp.lt.s32.totalorder %v521, 8
        %vm538 = vcmp.lt.s32.totalorder %v522, 8
        %vm539 = vcmp.lt.s32.totalorder %v523, 8
        %vm540 = vcmp.lt.s32.totalorder %v524, 8
        %vm541 = vcmp.lt.s32.totalorder %v525, 8
        %vm542 = vcmp.lt.s32.totalorder %v526, 8
        %vm543 = vcmp.lt.s32.totalorder %v527, 8
        %vm544 = vcmp.lt.s32.totalorder %v528, 8
        %vm545 = vcmp.lt.s32.totalorder %v529, 8
        %vm546 = vcmp.lt.s32.totalorder %v530, 8
        %vm547 = vcmp.lt.s32.totalorder %v531, 8
        %vm548 = vcmp.lt.s32.totalorder %v532, 8
        %vm549 = vcmp.lt.s32.totalorder %v533, 8
        %vm550 = vcmp.lt.s32.totalorder %v534, 8
        %vm551 = vcmp.lt.s32.totalorder %v535, 8
        %vm552 = vcmp.lt.s32.totalorder %v536, 8
        // Predicated region
        $region81: #{tpu_custom_call.1} parent=75 // pred_check
          %p553 = pneg %p488
        $region82: #{tpu_custom_call.1} parent=75 // pred_check_branch
          %555 = sbr.rel (%p553) target = $region84
        $region83: #{tpu_custom_call.1} parent=75 // pred_region
          %v556 = vlaneseq
          %v557 = vand.u32 %v556, 127
          %v558 = vld [vmem:[%s483] sm:$0xff]
          %v559 = vld [vmem:[%s483 + $0x8] sm:$0xff]
          %v560 = vld [vmem:[%s483 + $0x10] sm:$0xff]
          %v561 = vld [vmem:[%s483 + $0x18] sm:$0xff]
          %v562 = vld [vmem:[%s483 + $0x20] sm:$0xff]
          %v563 = vld [vmem:[%s483 + $0x28] sm:$0xff]
          %v564 = vld [vmem:[%s483 + $0x30] sm:$0xff]
          %v565 = vld [vmem:[%s483 + $0x38] sm:$0xff]
          %v566 = vld [vmem:[%s483 + $0x40] sm:$0xff]
          %v567 = vld [vmem:[%s483 + $0x48] sm:$0xff]
          %v568 = vld [vmem:[%s483 + $0x50] sm:$0xff]
          %v569 = vld [vmem:[%s483 + $0x58] sm:$0xff]
          %v570 = vld [vmem:[%s483 + $0x60] sm:$0xff]
          %v571 = vld [vmem:[%s483 + $0x68] sm:$0xff]
          %v572 = vld [vmem:[%s483 + $0x70] sm:$0xff]
          %v573 = vld [vmem:[%s483 + $0x78] sm:$0xff]
          %574 = vset.pattern.permute.xlu0 0
          %575 = vperm.xlu0 %574, %v558
          %v576 = vpop.permute.xlu0 %575
          %577 = vset.pattern.permute.xlu0 0
          %578 = vperm.xlu0 %577, %v559
          %v579 = vpop.permute.xlu0 %578
          %580 = vset.pattern.permute.xlu0 0
          %581 = vperm.xlu0 %580, %v560
          %v582 = vpop.permute.xlu0 %581
          %583 = vset.pattern.permute.xlu0 0
          %584 = vperm.xlu0 %583, %v561
          %v585 = vpop.permute.xlu0 %584
          %586 = vset.pattern.permute.xlu0 0
          %587 = vperm.xlu0 %586, %v562
          %v588 = vpop.permute.xlu0 %587
          %589 = vset.pattern.permute.xlu0 0
          %590 = vperm.xlu0 %589, %v563
          %v591 = vpop.permute.xlu0 %590
          %592 = vset.pattern.permute.xlu0 0
          %593 = vperm.xlu0 %592, %v564
          %v594 = vpop.permute.xlu0 %593
          %595 = vset.pattern.permute.xlu0 0
          %596 = vperm.xlu0 %595, %v565
          %v597 = vpop.permute.xlu0 %596
          %598 = vset.pattern.permute.xlu0 0
          %599 = vperm.xlu0 %598, %v566
          %v600 = vpop.permute.xlu0 %599
          %601 = vset.pattern.permute.xlu0 0
          %602 = vperm.xlu0 %601, %v567
          %v603 = vpop.permute.xlu0 %602
          %604 = vset.pattern.permute.xlu0 0
          %605 = vperm.xlu0 %604, %v568
          %v606 = vpop.permute.xlu0 %605
          %607 = vset.pattern.permute.xlu0 0
          %608 = vperm.xlu0 %607, %v569
          %v609 = vpop.permute.xlu0 %608
          %610 = vset.pattern.permute.xlu0 0
          %611 = vperm.xlu0 %610, %v570
          %v612 = vpop.permute.xlu0 %611
          %613 = vset.pattern.permute.xlu0 0
          %614 = vperm.xlu0 %613, %v571
          %v615 = vpop.permute.xlu0 %614
          %616 = vset.pattern.permute.xlu0 0
          %617 = vperm.xlu0 %616, %v572
          %v618 = vpop.permute.xlu0 %617
          %619 = vset.pattern.permute.xlu0 0
          %620 = vperm.xlu0 %619, %v573
          %v621 = vpop.permute.xlu0 %620
          %vm622 = vcmp.eq.s32.totalorder %v576, %v557
          %vm623 = vcmp.eq.s32.totalorder %v579, %v557
          %vm624 = vcmp.eq.s32.totalorder %v582, %v557
          %vm625 = vcmp.eq.s32.totalorder %v585, %v557
          %vm626 = vcmp.eq.s32.totalorder %v588, %v557
          %vm627 = vcmp.eq.s32.totalorder %v591, %v557
          %vm628 = vcmp.eq.s32.totalorder %v594, %v557
          %vm629 = vcmp.eq.s32.totalorder %v597, %v557
          %vm630 = vcmp.eq.s32.totalorder %v600, %v557
          %vm631 = vcmp.eq.s32.totalorder %v603, %v557
          %vm632 = vcmp.eq.s32.totalorder %v606, %v557
          %vm633 = vcmp.eq.s32.totalorder %v609, %v557
          %vm634 = vcmp.eq.s32.totalorder %v612, %v557
          %vm635 = vcmp.eq.s32.totalorder %v615, %v557
          %vm636 = vcmp.eq.s32.totalorder %v618, %v557
          %vm637 = vcmp.eq.s32.totalorder %v621, %v557
          %v638 = vsel %vm622, 1, 0
          %v639 = vsel %vm623, 1, 0
          %v640 = vsel %vm624, 1, 0
          %v641 = vsel %vm625, 1, 0
          %v642 = vsel %vm626, 1, 0
          %v643 = vsel %vm627, 1, 0
          %v644 = vsel %vm628, 1, 0
          %v645 = vsel %vm629, 1, 0
          %v646 = vsel %vm630, 1, 0
          %v647 = vsel %vm631, 1, 0
          %v648 = vsel %vm632, 1, 0
          %v649 = vsel %vm633, 1, 0
          %v650 = vsel %vm634, 1, 0
          %v651 = vsel %vm635, 1, 0
          %v652 = vsel %vm636, 1, 0
          %v653 = vsel %vm637, 1, 0
          %v654 = vcvt.s32.f32 %v638
          %v655 = vcvt.s32.f32 %v639
          %v656 = vcvt.s32.f32 %v640
          %v657 = vcvt.s32.f32 %v641
          %v658 = vcvt.s32.f32 %v642
          %v659 = vcvt.s32.f32 %v643
          %v660 = vcvt.s32.f32 %v644
          %v661 = vcvt.s32.f32 %v645
          %v662 = vcvt.s32.f32 %v646
          %v663 = vcvt.s32.f32 %v647
          %v664 = vcvt.s32.f32 %v648
          %v665 = vcvt.s32.f32 %v649
          %v666 = vcvt.s32.f32 %v650
          %v667 = vcvt.s32.f32 %v651
          %v668 = vcvt.s32.f32 %v652
          %v669 = vcvt.s32.f32 %v653
          %v670 = vpack.c.bf16 %v655, %v654
          %v671 = vpack.c.bf16 %v657, %v656
          %v672 = vpack.c.bf16 %v659, %v658
          %v673 = vpack.c.bf16 %v661, %v660
          %v674 = vpack.c.bf16 %v663, %v662
          %v675 = vpack.c.bf16 %v665, %v664
          %v676 = vpack.c.bf16 %v667, %v666
          %v677 = vpack.c.bf16 %v669, %v668
          %v678 = vld [vmem:[%s1] sm:$0xf]
          %v679 = vld [vmem:[%s1 + $0x4] sm:$0xf]
          %v680 = vld [vmem:[%s1 + $0x8] sm:$0xf]
          %v681 = vld [vmem:[%s1 + $0xc] sm:$0xf]
          %v682 = vld [vmem:[%s1 + $0x10] sm:$0xf]
          %v683 = vld [vmem:[%s1 + $0x14] sm:$0xf]
          %v684 = vld [vmem:[%s1 + $0x18] sm:$0xf]
          %v685 = vld [vmem:[%s1 + $0x1c] sm:$0xf]
          %v686 = vld [vmem:[%s1 + $0x20] sm:$0xf]
          %v687 = vld [vmem:[%s1 + $0x24] sm:$0xf]
          %v688 = vld [vmem:[%s1 + $0x28] sm:$0xf]
          %v689 = vld [vmem:[%s1 + $0x2c] sm:$0xf]
          %v690 = vld [vmem:[%s1 + $0x30] sm:$0x3]
          %v704 = vunpack.c.l.b16 %v678
          %v705 = vunpack.c.l.b16 %v679
          %v706 = vunpack.c.l.b16 %v680
          %v707 = vunpack.c.l.b16 %v681
          %v708 = vunpack.c.l.b16 %v682
          %v709 = vunpack.c.l.b16 %v683
          %v710 = vunpack.c.l.b16 %v684
          %v711 = vunpack.c.l.b16 %v685
          %v712 = vunpack.c.l.b16 %v686
          %v713 = vunpack.c.l.b16 %v687
          %v714 = vunpack.c.l.b16 %v688
          %v715 = vunpack.c.l.b16 %v689
          %v716 = vunpack.c.l.b16 %v690
          %v717 = vpack.c.b16 %v705, %v704
          %v718 = vpack.c.b16 %v707, %v706
          %v719 = vpack.c.b16 %v709, %v708
          %v720 = vpack.c.b16 %v711, %v710
          %v721 = vpack.c.b16 %v713, %v712
          %v722 = vpack.c.b16 %v715, %v714
          %v723 = vpack.c.b16 %v716, %v716
          %vm730 = vcmask 818176
          %v732 = vsel %vm730, %v670, 0
          %v735 = vsel %vm730, %v671, 0
          %v738 = vsel %vm730, %v672, 0
          %v741 = vsel %vm730, %v673, 0
          %v744 = vsel %vm730, %v674, 0
          %v747 = vsel %vm730, %v675, 0
          %v750 = vsel %vm730, %v676, 0
          %v753 = vsel %vm730, %v677, 0
          %vm755 = vcmask 1041408
          %v757 = vsel %vm755, %v723, 0
          %759 = vmatprep.subr.bf16.mxu0 0
          %760 = vmatpush1.bf16.msra.mxu0 0
          %761 = vmatprep.subr.bf16.mxu0 0
          %762 = vmatpush1.bf16.msra.mxu0 %v757
          %763 = vmatprep.subr.bf16.mxu0 0
          %764 = vmatpush1.bf16.msra.mxu0 %v722
          %765 = vmatprep.subr.bf16.mxu0 0
          %766 = vmatpush1.bf16.msra.mxu0 %v721
          %767 = vmatprep.subr.bf16.mxu0 0
          %768 = vmatpush1.bf16.msra.mxu0 %v720
          %769 = vmatprep.subr.bf16.mxu0 0
          %770 = vmatpush1.bf16.msra.mxu0 %v719
          %771 = vmatprep.subr.bf16.mxu0 0
          %772 = vmatpush1.bf16.msra.mxu0 %v718
          %773 = vmatprep.subr.bf16.mxu0 0
          %774 = vmatpush1.bf16.msra.mxu0 %v717
          %775 = vmatprep.subr.bf16.mxu0 0
          %776 = vmatpush2.bf16.msra.mxu0 0
          %777 = vmatprep.subr.bf16.mxu0 0
          %778 = vmatpush2.bf16.msra.mxu0 0
          %779 = vmatprep.subr.bf16.mxu0 0
          %780 = vmatpush2.bf16.msra.mxu0 0
          %781 = vmatprep.subr.bf16.mxu0 0
          %782 = vmatpush2.bf16.msra.mxu0 0
          %783 = vmatprep.subr.bf16.mxu0 0
          %784 = vmatpush2.bf16.msra.mxu0 0
          %785 = vmatprep.subr.bf16.mxu0 0
          %786 = vmatpush2.bf16.msra.mxu0 0
          %787 = vmatprep.subr.bf16.mxu0 0
          %788 = vmatpush2.bf16.msra.mxu0 0
          %789 = vmatprep.subr.bf16.mxu0 0
          %790 = vmatpush2.bf16.msra.mxu0 0
          %791 = vmatprep.mubr.bf16.mxu0 0
          %792 = vmatmul.mubr.bf16.gmra.mxu0 %v732
          %v793 = vpop.f32.mrf.mxu0
          %v794 = vadd.f32 0.0, %v793
          %v795 = vpop.f32.mrf.mxu0
          %v796 = vpop.f32.mrf.mxu0
          %v797 = vadd.f32 0.0, %v796
          %v798 = vpop.f32.mrf.mxu0
          %799 = vmatprep.mubr.bf16.mxu0 0
          %800 = vmatmul.mubr.bf16.gmra.mxu0 %v735
          %v801 = vpop.f32.mrf.mxu0
          %v802 = vadd.f32 0.0, %v801
          %v803 = vpop.f32.mrf.mxu0
          %v804 = vpop.f32.mrf.mxu0
          %v805 = vadd.f32 0.0, %v804
          %v806 = vpop.f32.mrf.mxu0
          %807 = vmatprep.mubr.bf16.mxu0 0
          %808 = vmatmul.mubr.bf16.gmra.mxu0 %v738
          %v809 = vpop.f32.mrf.mxu0
          %v810 = vadd.f32 0.0, %v809
          %v811 = vpop.f32.mrf.mxu0
          %v812 = vpop.f32.mrf.mxu0
          %v813 = vadd.f32 0.0, %v812
          %v814 = vpop.f32.mrf.mxu0
          %815 = vmatprep.mubr.bf16.mxu0 0
          %816 = vmatmul.mubr.bf16.gmra.mxu0 %v741
          %v817 = vpop.f32.mrf.mxu0
          %v818 = vadd.f32 0.0, %v817
          %v819 = vpop.f32.mrf.mxu0
          %v820 = vpop.f32.mrf.mxu0
          %v821 = vadd.f32 0.0, %v820
          %v822 = vpop.f32.mrf.mxu0
          %823 = vmatprep.mubr.bf16.mxu0 0
          %824 = vmatmul.mubr.bf16.gmra.mxu0 %v744
          %v825 = vpop.f32.mrf.mxu0
          %v826 = vadd.f32 0.0, %v825
          %v827 = vpop.f32.mrf.mxu0
          %v828 = vpop.f32.mrf.mxu0
          %v829 = vadd.f32 0.0, %v828
          %v830 = vpop.f32.mrf.mxu0
          %831 = vmatprep.mubr.bf16.mxu0 0
          %832 = vmatmul.mubr.bf16.gmra.mxu0 %v747
          %v833 = vpop.f32.mrf.mxu0
          %v834 = vadd.f32 0.0, %v833
          %v835 = vpop.f32.mrf.mxu0
          %v836 = vpop.f32.mrf.mxu0
          %v837 = vadd.f32 0.0, %v836
          %v838 = vpop.f32.mrf.mxu0
          %839 = vmatprep.mubr.bf16.mxu0 0
          %840 = vmatmul.mubr.bf16.gmra.mxu0 %v750
          %v841 = vpop.f32.mrf.mxu0
          %v842 = vadd.f32 0.0, %v841
          %v843 = vpop.f32.mrf.mxu0
          %v844 = vpop.f32.mrf.mxu0
          %v845 = vadd.f32 0.0, %v844
          %v846 = vpop.f32.mrf.mxu0
          %847 = vmatprep.mubr.bf16.mxu0 0
          %848 = vmatmul.mubr.bf16.gmra.mxu0 %v753
          %v849 = vpop.f32.mrf.mxu0
          %v850 = vadd.f32 0.0, %v849
          %v851 = vpop.f32.mrf.mxu0
          %v852 = vpop.f32.mrf.mxu0
          %v853 = vadd.f32 0.0, %v852
          %v854 = vpop.f32.mrf.mxu0
          %855 = vdwg.mxu0
          %v856 = vpack.c.bf16 %v797, %v794
          %v857 = vpack.c.bf16 %v805, %v802
          %v858 = vpack.c.bf16 %v813, %v810
          %v859 = vpack.c.bf16 %v821, %v818
          %v860 = vpack.c.bf16 %v829, %v826
          %v861 = vpack.c.bf16 %v837, %v834
          %v862 = vpack.c.bf16 %v845, %v842
          %v863 = vpack.c.bf16 %v853, %v850
          %v872 = vunpack.c.l.b16 %v856
          %v873 = vunpack.c.h.b16 %v856
          %v874 = vunpack.c.l.b16 %v857
          %v875 = vunpack.c.h.b16 %v857
          %v876 = vunpack.c.l.b16 %v858
          %v877 = vunpack.c.h.b16 %v858
          %v878 = vunpack.c.l.b16 %v859
          %v879 = vunpack.c.h.b16 %v859
          %v880 = vunpack.c.l.b16 %v860
          %v881 = vunpack.c.h.b16 %v860
          %v882 = vunpack.c.l.b16 %v861
          %v883 = vunpack.c.h.b16 %v861
          %v884 = vunpack.c.l.b16 %v862
          %v885 = vunpack.c.h.b16 %v862
          %v886 = vunpack.c.l.b16 %v863
          %v887 = vunpack.c.h.b16 %v863
          %v888 = vpack.c.b16 %v872, %v872
          %v889 = vpack.c.b16 %v873, %v873
          %v890 = vpack.c.b16 %v874, %v874
          %v891 = vpack.c.b16 %v875, %v875
          %v892 = vpack.c.b16 %v876, %v876
          %v893 = vpack.c.b16 %v877, %v877
          %v894 = vpack.c.b16 %v878, %v878
          %v895 = vpack.c.b16 %v879, %v879
          %v896 = vpack.c.b16 %v880, %v880
          %v897 = vpack.c.b16 %v881, %v881
          %v898 = vpack.c.b16 %v882, %v882
          %v899 = vpack.c.b16 %v883, %v883
          %v900 = vpack.c.b16 %v884, %v884
          %v901 = vpack.c.b16 %v885, %v885
          %v902 = vpack.c.b16 %v886, %v886
          %v903 = vpack.c.b16 %v887, %v887
          %s920 = smul.u32 %s35, 16
          %s921 = smul.addr %s920, 4
          %s922 = scalar_lea.vmem [#allocation10], %s921
          %vm923 = vcmask 519168
          %924 = vst.msk [vmem:[%s922] sm:$0xf] %vm923, %v888
          %925 = vst.msk [vmem:[%s922 + $0x4] sm:$0xf] %vm923, %v889
          %926 = vst.msk [vmem:[%s922 + $0x8] sm:$0xf] %vm923, %v890
          %927 = vst.msk [vmem:[%s922 + $0xc] sm:$0xf] %vm923, %v891
          %928 = vst.msk [vmem:[%s922 + $0x10] sm:$0xf] %vm923, %v892
          %929 = vst.msk [vmem:[%s922 + $0x14] sm:$0xf] %vm923, %v893
          %930 = vst.msk [vmem:[%s922 + $0x18] sm:$0xf] %vm923, %v894
          %931 = vst.msk [vmem:[%s922 + $0x1c] sm:$0xf] %vm923, %v895
          %932 = vst.msk [vmem:[%s922 + $0x20] sm:$0xf] %vm923, %v896
          %933 = vst.msk [vmem:[%s922 + $0x24] sm:$0xf] %vm923, %v897
          %934 = vst.msk [vmem:[%s922 + $0x28] sm:$0xf] %vm923, %v898
          %935 = vst.msk [vmem:[%s922 + $0x2c] sm:$0xf] %vm923, %v899
          %936 = vst.msk [vmem:[%s922 + $0x30] sm:$0xf] %vm923, %v900
          %937 = vst.msk [vmem:[%s922 + $0x34] sm:$0xf] %vm923, %v901
          %938 = vst.msk [vmem:[%s922 + $0x38] sm:$0xf] %vm923, %v902
          %939 = vst.msk [vmem:[%s922 + $0x3c] sm:$0xf] %vm923, %v903
          %v940 = vld [vmem:[%s2] sm:$0xff]
          %v941 = vld [vmem:[%s2 + $0x8] sm:$0xff]
          %v942 = vld [vmem:[%s2 + $0x10] sm:$0xff]
          %v943 = vld [vmem:[%s2 + $0x18] sm:$0xff]
          %v944 = vld [vmem:[%s2 + $0x20] sm:$0xff]
          %v945 = vld [vmem:[%s2 + $0x28] sm:$0xff]
          %v946 = vld [vmem:[%s2 + $0x30] sm:$0xff]
          %v947 = vld [vmem:[%s2 + $0x38] sm:$0xff]
          %v948 = vld [vmem:[%s3] sm:$0x3]
          %v950 = vlaneseq
          %v951 = vshrl.u32 %v950, 7
          %v952 = vsub.s32 0, %v951
          %v953 = vrot.slane %v948, %v952
          %v954 = vlaneseq
          %v955 = vshrl.u32 %v954, 7
          %v956 = vsub.s32 1, %v955
          %v957 = vrot.slane %v948, %v956
          %v968 = vunpack.c.l.b16 %v940
          %v969 = vunpack.c.h.b16 %v940
          %v970 = vunpack.c.l.b16 %v941
          %v971 = vunpack.c.h.b16 %v941
          %v972 = vunpack.c.l.b16 %v942
          %v973 = vunpack.c.h.b16 %v942
          %v974 = vunpack.c.l.b16 %v943
          %v975 = vunpack.c.h.b16 %v943
          %v976 = vunpack.c.l.b16 %v944
          %v977 = vunpack.c.h.b16 %v944
          %v978 = vunpack.c.l.b16 %v945
          %v979 = vunpack.c.h.b16 %v945
          %v980 = vunpack.c.l.b16 %v946
          %v981 = vunpack.c.h.b16 %v946
          %v982 = vunpack.c.l.b16 %v947
          %v983 = vunpack.c.h.b16 %v947
          %v984 = vpack.c.b16 %v970, %v968
          %v985 = vpack.c.b16 %v971, %v969
          %v986 = vpack.c.b16 %v974, %v972
          %v987 = vpack.c.b16 %v975, %v973
          %v988 = vpack.c.b16 %v978, %v976
          %v989 = vpack.c.b16 %v979, %v977
          %v990 = vpack.c.b16 %v982, %v980
          %v991 = vpack.c.b16 %v983, %v981
          %vm1000 = vcmask 523264
          %v1002 = vsel %vm1000, %v856, 0
          %v1005 = vsel %vm1000, %v857, 0
          %v1008 = vsel %vm1000, %v858, 0
          %v1011 = vsel %vm1000, %v859, 0
          %v1014 = vsel %vm1000, %v860, 0
          %v1017 = vsel %vm1000, %v861, 0
          %v1020 = vsel %vm1000, %v862, 0
          %v1023 = vsel %vm1000, %v863, 0
          %1025 = vmatprep.subr.bf16.mxu0 0
          %1026 = vmatpush1.bf16.msra.mxu0 0
          %1027 = vmatprep.subr.bf16.mxu0 0
          %1028 = vmatpush1.bf16.msra.mxu0 0
          %1029 = vmatprep.subr.bf16.mxu0 0
          %1030 = vmatpush1.bf16.msra.mxu0 0
          %1031 = vmatprep.subr.bf16.mxu0 0
          %1032 = vmatpush1.bf16.msra.mxu0 0
          %1033 = vmatprep.subr.bf16.mxu0 %v991
          %1034 = vmatpush1.bf16.msra.mxu0 %v990
          %1035 = vmatprep.subr.bf16.mxu0 %v989
          %1036 = vmatpush1.bf16.msra.mxu0 %v988
          %1037 = vmatprep.subr.bf16.mxu0 %v987
          %1038 = vmatpush1.bf16.msra.mxu0 %v986
          %1039 = vmatprep.subr.bf16.mxu0 %v985
          %1040 = vmatpush1.bf16.msra.mxu0 %v984
          %1041 = vmatprep.subr.bf16.mxu0 0
          %1042 = vmatpush2.bf16.msra.mxu0 0
          %1043 = vmatprep.subr.bf16.mxu0 0
          %1044 = vmatpush2.bf16.msra.mxu0 0
          %1045 = vmatprep.subr.bf16.mxu0 0
          %1046 = vmatpush2.bf16.msra.mxu0 0
          %1047 = vmatprep.subr.bf16.mxu0 0
          %1048 = vmatpush2.bf16.msra.mxu0 0
          %1049 = vmatprep.subr.bf16.mxu0 0
          %1050 = vmatpush2.bf16.msra.mxu0 0
          %1051 = vmatprep.subr.bf16.mxu0 0
          %1052 = vmatpush2.bf16.msra.mxu0 0
          %1053 = vmatprep.subr.bf16.mxu0 0
          %1054 = vmatpush2.bf16.msra.mxu0 0
          %1055 = vmatprep.subr.bf16.mxu0 0
          %1056 = vmatpush2.bf16.msra.mxu0 0
          %1057 = vmatprep.mubr.bf16.mxu0 0
          %1058 = vmatmul.mubr.bf16.gmra.mxu0 %v1002
          %v1059 = vpop.f32.mrf.mxu0
          %v1060 = vadd.f32 %v953, %v1059
          %v1061 = vpop.f32.mrf.mxu0
          %v1062 = vadd.f32 %v957, %v1061
          %v1063 = vpop.f32.mrf.mxu0
          %v1064 = vadd.f32 %v953, %v1063
          %v1065 = vpop.f32.mrf.mxu0
          %v1066 = vadd.f32 %v957, %v1065
          %1067 = vmatprep.mubr.bf16.mxu0 0
          %1068 = vmatmul.mubr.bf16.gmra.mxu0 %v1005
          %v1069 = vpop.f32.mrf.mxu0
          %v1070 = vadd.f32 %v953, %v1069
          %v1071 = vpop.f32.mrf.mxu0
          %v1072 = vadd.f32 %v957, %v1071
          %v1073 = vpop.f32.mrf.mxu0
          %v1074 = vadd.f32 %v953, %v1073
          %v1075 = vpop.f32.mrf.mxu0
          %v1076 = vadd.f32 %v957, %v1075
          %1077 = vmatprep.mubr.bf16.mxu0 0
          %1078 = vmatmul.mubr.bf16.gmra.mxu0 %v1008
          %v1079 = vpop.f32.mrf.mxu0
          %v1080 = vadd.f32 %v953, %v1079
          %v1081 = vpop.f32.mrf.mxu0
          %v1082 = vadd.f32 %v957, %v1081
          %v1083 = vpop.f32.mrf.mxu0
          %v1084 = vadd.f32 %v953, %v1083
          %v1085 = vpop.f32.mrf.mxu0
          %v1086 = vadd.f32 %v957, %v1085
          %1087 = vmatprep.mubr.bf16.mxu0 0
          %1088 = vmatmul.mubr.bf16.gmra.mxu0 %v1011
          %v1089 = vpop.f32.mrf.mxu0
          %v1090 = vadd.f32 %v953, %v1089
          %v1091 = vpop.f32.mrf.mxu0
          %v1092 = vadd.f32 %v957, %v1091
          %v1093 = vpop.f32.mrf.mxu0
          %v1094 = vadd.f32 %v953, %v1093
          %v1095 = vpop.f32.mrf.mxu0
          %v1096 = vadd.f32 %v957, %v1095
          %1097 = vmatprep.mubr.bf16.mxu0 0
          %1098 = vmatmul.mubr.bf16.gmra.mxu0 %v1014
          %v1099 = vpop.f32.mrf.mxu0
          %v1100 = vadd.f32 %v953, %v1099
          %v1101 = vpop.f32.mrf.mxu0
          %v1102 = vadd.f32 %v957, %v1101
          %v1103 = vpop.f32.mrf.mxu0
          %v1104 = vadd.f32 %v953, %v1103
          %v1105 = vpop.f32.mrf.mxu0
          %v1106 = vadd.f32 %v957, %v1105
          %1107 = vmatprep.mubr.bf16.mxu0 0
          %1108 = vmatmul.mubr.bf16.gmra.mxu0 %v1017
          %v1109 = vpop.f32.mrf.mxu0
          %v1110 = vadd.f32 %v953, %v1109
          %v1111 = vpop.f32.mrf.mxu0
          %v1112 = vadd.f32 %v957, %v1111
          %v1113 = vpop.f32.mrf.mxu0
          %v1114 = vadd.f32 %v953, %v1113
          %v1115 = vpop.f32.mrf.mxu0
          %v1116 = vadd.f32 %v957, %v1115
          %1117 = vmatprep.mubr.bf16.mxu0 0
          %1118 = vmatmul.mubr.bf16.gmra.mxu0 %v1020
          %v1119 = vpop.f32.mrf.mxu0
          %v1120 = vadd.f32 %v953, %v1119
          %v1121 = vpop.f32.mrf.mxu0
          %v1122 = vadd.f32 %v957, %v1121
          %v1123 = vpop.f32.mrf.mxu0
          %v1124 = vadd.f32 %v953, %v1123
          %v1125 = vpop.f32.mrf.mxu0
          %v1126 = vadd.f32 %v957, %v1125
          %1127 = vmatprep.mubr.bf16.mxu0 0
          %1128 = vmatmul.mubr.bf16.gmra.mxu0 %v1023
          %v1129 = vpop.f32.mrf.mxu0
          %v1130 = vadd.f32 %v953, %v1129
          %v1131 = vpop.f32.mrf.mxu0
          %v1132 = vadd.f32 %v957, %v1131
          %v1133 = vpop.f32.mrf.mxu0
          %v1134 = vadd.f32 %v953, %v1133
          %v1135 = vpop.f32.mrf.mxu0
          %v1136 = vadd.f32 %v957, %v1135
          %1137 = vdwg.mxu0
          %v1138 = vsel %vm537, 1, 0
          %v1139 = vsel %vm538, 1, 0
          %v1140 = vsel %vm539, 1, 0
          %v1141 = vsel %vm540, 1, 0
          %v1142 = vsel %vm541, 1, 0
          %v1143 = vsel %vm542, 1, 0
          %v1144 = vsel %vm543, 1, 0
          %v1145 = vsel %vm544, 1, 0
          %v1146 = vsel %vm545, 1, 0
          %v1147 = vsel %vm546, 1, 0
          %v1148 = vsel %vm547, 1, 0
          %v1149 = vsel %vm548, 1, 0
          %v1150 = vsel %vm549, 1, 0
          %v1151 = vsel %vm550, 1, 0
          %v1152 = vsel %vm551, 1, 0
          %v1153 = vsel %vm552, 1, 0
          %vm1154 = vcmp.eq.s32.totalorder %v1138, 1
          %vm1155 = vcmp.eq.s32.totalorder %v1139, 1
          %vm1156 = vcmp.eq.s32.totalorder %v1140, 1
          %vm1157 = vcmp.eq.s32.totalorder %v1141, 1
          %vm1158 = vcmp.eq.s32.totalorder %v1142, 1
          %vm1159 = vcmp.eq.s32.totalorder %v1143, 1
          %vm1160 = vcmp.eq.s32.totalorder %v1144, 1
          %vm1161 = vcmp.eq.s32.totalorder %v1145, 1
          %vm1162 = vcmp.eq.s32.totalorder %v1146, 1
          %vm1163 = vcmp.eq.s32.totalorder %v1147, 1
          %vm1164 = vcmp.eq.s32.totalorder %v1148, 1
          %vm1165 = vcmp.eq.s32.totalorder %v1149, 1
          %vm1166 = vcmp.eq.s32.totalorder %v1150, 1
          %vm1167 = vcmp.eq.s32.totalorder %v1151, 1
          %vm1168 = vcmp.eq.s32.totalorder %v1152, 1
          %vm1169 = vcmp.eq.s32.totalorder %v1153, 1
          %v1170 = vsel %vm1154, %v1060, 0.0
          %v1171 = vsel %vm1154, %v1062, 0.0
          %v1172 = vsel %vm1155, %v1064, 0.0
          %v1173 = vsel %vm1155, %v1066, 0.0
          %v1174 = vsel %vm1156, %v1070, 0.0
          %v1175 = vsel %vm1156, %v1072, 0.0
          %v1176 = vsel %vm1157, %v1074, 0.0
          %v1177 = vsel %vm1157, %v1076, 0.0
          %v1178 = vsel %vm1158, %v1080, 0.0
          %v1179 = vsel %vm1158, %v1082, 0.0
          %v1180 = vsel %vm1159, %v1084, 0.0
          %v1181 = vsel %vm1159, %v1086, 0.0
          %v1182 = vsel %vm1160, %v1090, 0.0
          %v1183 = vsel %vm1160, %v1092, 0.0
          %v1184 = vsel %vm1161, %v1094, 0.0
          %v1185 = vsel %vm1161, %v1096, 0.0
          %v1186 = vsel %vm1162, %v1100, 0.0
          %v1187 = vsel %vm1162, %v1102, 0.0
          %v1188 = vsel %vm1163, %v1104, 0.0
          %v1189 = vsel %vm1163, %v1106, 0.0
          %v1190 = vsel %vm1164, %v1110, 0.0
          %v1191 = vsel %vm1164, %v1112, 0.0
          %v1192 = vsel %vm1165, %v1114, 0.0
          %v1193 = vsel %vm1165, %v1116, 0.0
          %v1194 = vsel %vm1166, %v1120, 0.0
          %v1195 = vsel %vm1166, %v1122, 0.0
          %v1196 = vsel %vm1167, %v1124, 0.0
          %v1197 = vsel %vm1167, %v1126, 0.0
          %v1198 = vsel %vm1168, %v1130, 0.0
          %v1199 = vsel %vm1168, %v1132, 0.0
          %v1200 = vsel %vm1169, %v1134, 0.0
          %v1201 = vsel %vm1169, %v1136, 0.0
          %v1202 = vld [vmem:[#allocation2] sm:$0x3]
          %v1203 = vadd.f32 %v1170, %v1172
          %v1204 = vadd.f32 %v1203, %v1174
          %v1205 = vadd.f32 %v1204, %v1176
          %v1206 = vadd.f32 %v1205, %v1178
          %v1207 = vadd.f32 %v1206, %v1180
          %v1208 = vadd.f32 %v1207, %v1182
          %v1209 = vadd.f32 %v1208, %v1184
          %v1210 = vadd.f32 %v1209, %v1186
          %v1211 = vadd.f32 %v1210, %v1188
          %v1212 = vadd.f32 %v1211, %v1190
          %v1213 = vadd.f32 %v1212, %v1192
          %v1214 = vadd.f32 %v1213, %v1194
          %v1215 = vadd.f32 %v1214, %v1196
          %v1216 = vadd.f32 %v1215, %v1198
          %v1217 = vadd.f32 %v1216, %v1200
          %v1218 = vrot.slane %v1217, 4
          %v1219 = vadd.f32 %v1217, %v1218
          %v1220 = vrot.slane %v1219, 2
          %v1221 = vadd.f32 %v1219, %v1220
          %v1222 = vrot.slane %v1221, 1
          %v1223 = vadd.f32 %v1221, %v1222
          %v1224 = vadd.f32 %v1171, %v1173
          %v1225 = vadd.f32 %v1224, %v1175
          %v1226 = vadd.f32 %v1225, %v1177
          %v1227 = vadd.f32 %v1226, %v1179
          %v1228 = vadd.f32 %v1227, %v1181
          %v1229 = vadd.f32 %v1228, %v1183
          %v1230 = vadd.f32 %v1229, %v1185
          %v1231 = vadd.f32 %v1230, %v1187
          %v1232 = vadd.f32 %v1231, %v1189
          %v1233 = vadd.f32 %v1232, %v1191
          %v1234 = vadd.f32 %v1233, %v1193
          %v1235 = vadd.f32 %v1234, %v1195
          %v1236 = vadd.f32 %v1235, %v1197
          %v1237 = vadd.f32 %v1236, %v1199
          %v1238 = vadd.f32 %v1237, %v1201
          %v1239 = vrot.slane %v1238, 4
          %v1240 = vadd.f32 %v1238, %v1239
          %v1241 = vrot.slane %v1240, 2
          %v1242 = vadd.f32 %v1240, %v1241
          %v1243 = vrot.slane %v1242, 1
          %v1244 = vadd.f32 %v1242, %v1243
          %v1247 = vcombine.low %v1223, %v1244
          %v1249 = vunpack.c.l.s4 1966171168
          %v1250 = vunpack.c.0.s8 %v1249
          %v1251 = vlaneseq
          %v1252 = vshrl.u32 %v1251, 7
          %v1253 = vsub.s32 %v1250, %v1252
          %v1254 = vrot.slane %v1247, %v1253
          %v1256 = vunpack.c.l.s4 1966171168
          %v1257 = vunpack.c.0.s8 %v1256
          %v1258 = vlaneseq
          %v1259 = vshrl.u32 %v1258, 7
          %v1260 = vsub.s32 %v1257, %v1259
          %v1261 = vrot.slane %v1254, %v1260
          %v1263 = vadd.f32 %v1202, %v1261
          %v1264 = vlaneseq
          %vm1265 = vcmp.ge.s32.totalorder %v1264, 0
          %vm1266 = vcmp.lt.s32.totalorder %v1264, 256
          %vm1267 = vmand %vm1265, %vm1266
          %1268 = vst.msk [vmem:[#allocation2] sm:$0x3] %vm1267, %v1263
          %v1269 = vld [vmem:[#allocation3] sm:$0x3]
          %v1270 = vmul.f32 %v1170, %v1170
          %v1271 = vmul.f32 %v1171, %v1171
          %v1272 = vmul.f32 %v1172, %v1172
          %v1273 = vmul.f32 %v1173, %v1173
          %v1274 = vmul.f32 %v1174, %v1174
          %v1275 = vmul.f32 %v1175, %v1175
          %v1276 = vmul.f32 %v1176, %v1176
          %v1277 = vmul.f32 %v1177, %v1177
          %v1278 = vmul.f32 %v1178, %v1178
          %v1279 = vmul.f32 %v1179, %v1179
          %v1280 = vmul.f32 %v1180, %v1180
          %v1281 = vmul.f32 %v1181, %v1181
          %v1282 = vmul.f32 %v1182, %v1182
          %v1283 = vmul.f32 %v1183, %v1183
          %v1284 = vmul.f32 %v1184, %v1184
          %v1285 = vmul.f32 %v1185, %v1185
          %v1286 = vmul.f32 %v1186, %v1186
          %v1287 = vmul.f32 %v1187, %v1187
          %v1288 = vmul.f32 %v1188, %v1188
          %v1289 = vmul.f32 %v1189, %v1189
          %v1290 = vmul.f32 %v1190, %v1190
          %v1291 = vmul.f32 %v1191, %v1191
          %v1292 = vmul.f32 %v1192, %v1192
          %v1293 = vmul.f32 %v1193, %v1193
          %v1294 = vmul.f32 %v1194, %v1194
          %v1295 = vmul.f32 %v1195, %v1195
          %v1296 = vmul.f32 %v1196, %v1196
          %v1297 = vmul.f32 %v1197, %v1197
          %v1298 = vmul.f32 %v1198, %v1198
          %v1299 = vmul.f32 %v1199, %v1199
          %v1300 = vmul.f32 %v1200, %v1200
          %v1301 = vmul.f32 %v1201, %v1201
          %v1302 = vadd.f32 %v1270, %v1272
          %v1303 = vadd.f32 %v1302, %v1274
          %v1304 = vadd.f32 %v1303, %v1276
          %v1305 = vadd.f32 %v1304, %v1278
          %v1306 = vadd.f32 %v1305, %v1280
          %v1307 = vadd.f32 %v1306, %v1282
          %v1308 = vadd.f32 %v1307, %v1284
          %v1309 = vadd.f32 %v1308, %v1286
          %v1310 = vadd.f32 %v1309, %v1288
          %v1311 = vadd.f32 %v1310, %v1290
          %v1312 = vadd.f32 %v1311, %v1292
          %v1313 = vadd.f32 %v1312, %v1294
          %v1314 = vadd.f32 %v1313, %v1296
          %v1315 = vadd.f32 %v1314, %v1298
          %v1316 = vadd.f32 %v1315, %v1300
          %v1317 = vrot.slane %v1316, 4
          %v1318 = vadd.f32 %v1316, %v1317
          %v1319 = vrot.slane %v1318, 2
          %v1320 = vadd.f32 %v1318, %v1319
          %v1321 = vrot.slane %v1320, 1
          %v1322 = vadd.f32 %v1320, %v1321
          %v1323 = vadd.f32 %v1271, %v1273
          %v1324 = vadd.f32 %v1323, %v1275
          %v1325 = vadd.f32 %v1324, %v1277
          %v1326 = vadd.f32 %v1325, %v1279
          %v1327 = vadd.f32 %v1326, %v1281
          %v1328 = vadd.f32 %v1327, %v1283
          %v1329 = vadd.f32 %v1328, %v1285
          %v1330 = vadd.f32 %v1329, %v1287
          %v1331 = vadd.f32 %v1330, %v1289
          %v1332 = vadd.f32 %v1331, %v1291
          %v1333 = vadd.f32 %v1332, %v1293
          %v1334 = vadd.f32 %v1333, %v1295
          %v1335 = vadd.f32 %v1334, %v1297
          %v1336 = vadd.f32 %v1335, %v1299
          %v1337 = vadd.f32 %v1336, %v1301
          %v1338 = vrot.slane %v1337, 4
          %v1339 = vadd.f32 %v1337, %v1338
          %v1340 = vrot.slane %v1339, 2
          %v1341 = vadd.f32 %v1339, %v1340
          %v1342 = vrot.slane %v1341, 1
          %v1343 = vadd.f32 %v1341, %v1342
          %v1346 = vcombine.low %v1322, %v1343
          %v1348 = vunpack.c.l.s4 1966171168
          %v1349 = vunpack.c.0.s8 %v1348
          %v1350 = vlaneseq
          %v1351 = vshrl.u32 %v1350, 7
          %v1352 = vsub.s32 %v1349, %v1351
          %v1353 = vrot.slane %v1346, %v1352
          %v1355 = vunpack.c.l.s4 1966171168
          %v1356 = vunpack.c.0.s8 %v1355
          %v1357 = vlaneseq
          %v1358 = vshrl.u32 %v1357, 7
          %v1359 = vsub.s32 %v1356, %v1358
          %v1360 = vrot.slane %v1353, %v1359
          %v1362 = vadd.f32 %v1269, %v1360
          %1363 = vst.msk [vmem:[#allocation3] sm:$0x3] %vm1267, %v1362
        $region84: #{tpu_custom_call.1} parent=75 // pred_fallthru
          _
        %p1364 = scmp.eq.s32.totalorder %s34, 1
        %p1365 = pnand %p1364, %p489
        %p1366 = pneg %p1365
        // Predicated region
        $region85: #{tpu_custom_call.1} parent=75 // pred_check
          _
        $region86: #{tpu_custom_call.1} parent=75 // pred_check_branch
          %1368 = sbr.rel (%p1365) target = $region88
        $region87: #{tpu_custom_call.1} parent=75 // pred_region
          %v1369 = vld [vmem:[%s4] sm:$0x3]
          %v1370 = vld [vmem:[%s5] sm:$0x3]
          %v1371 = vld [vmem:[#allocation2] sm:$0x3]
          %v1372 = vmul.f32 %v1371, 0.125
          %v1373 = vld [vmem:[#allocation3] sm:$0x3]
          %v1374 = vmul.f32 %v1373, 0.125
          %v1375 = vmul.f32 %v1372, %v1372
          %v1376 = vsub.f32 %v1374, %v1375
          %v1377 = vmax.f32 %v1376, 0.0
          %v1378 = vadd.f32 %v1377, 1e-05
          %v1379 = vrsqrt.pop %v1378
          %v1380 = vmul.f32 %v1369, %v1379
          %v1381 = vmul.f32 %v1372, %v1380
          %v1382 = vsub.f32 %v1370, %v1381
          %v1383 = vld [vmem:[%s2] sm:$0xff]
          %v1384 = vld [vmem:[%s2 + $0x8] sm:$0xff]
          %v1385 = vld [vmem:[%s2 + $0x10] sm:$0xff]
          %v1386 = vld [vmem:[%s2 + $0x18] sm:$0xff]
          %v1387 = vld [vmem:[%s2 + $0x20] sm:$0xff]
          %v1388 = vld [vmem:[%s2 + $0x28] sm:$0xff]
          %v1389 = vld [vmem:[%s2 + $0x30] sm:$0xff]
          %v1390 = vld [vmem:[%s2 + $0x38] sm:$0xff]
          %v1391 = vunpack.c.l.bf16 %v1383
          %v1392 = vunpack.c.h.bf16 %v1383
          %v1393 = vunpack.c.l.bf16 %v1384
          %v1394 = vunpack.c.h.bf16 %v1384
          %v1395 = vunpack.c.l.bf16 %v1385
          %v1396 = vunpack.c.h.bf16 %v1385
          %v1397 = vunpack.c.l.bf16 %v1386
          %v1398 = vunpack.c.h.bf16 %v1386
          %v1399 = vunpack.c.l.bf16 %v1387
          %v1400 = vunpack.c.h.bf16 %v1387
          %v1401 = vunpack.c.l.bf16 %v1388
          %v1402 = vunpack.c.h.bf16 %v1388
          %v1403 = vunpack.c.l.bf16 %v1389
          %v1404 = vunpack.c.h.bf16 %v1389
          %v1405 = vunpack.c.l.bf16 %v1390
          %v1406 = vunpack.c.h.bf16 %v1390
          %v1408 = vlaneseq
          %v1409 = vshrl.u32 %v1408, 7
          %v1410 = vsub.s32 0, %v1409
          %v1411 = vrot.slane %v1380, %v1410
          %v1412 = vlaneseq
          %v1413 = vshrl.u32 %v1412, 7
          %v1414 = vsub.s32 1, %v1413
          %v1415 = vrot.slane %v1380, %v1414
          %v1418 = vmul.f32 %v1391, %v1411
          %v1419 = vmul.f32 %v1392, %v1415
          %v1420 = vmul.f32 %v1393, %v1411
          %v1421 = vmul.f32 %v1394, %v1415
          %v1422 = vmul.f32 %v1395, %v1411
          %v1423 = vmul.f32 %v1396, %v1415
          %v1424 = vmul.f32 %v1397, %v1411
          %v1425 = vmul.f32 %v1398, %v1415
          %v1426 = vmul.f32 %v1399, %v1411
          %v1427 = vmul.f32 %v1400, %v1415
          %v1428 = vmul.f32 %v1401, %v1411
          %v1429 = vmul.f32 %v1402, %v1415
          %v1430 = vmul.f32 %v1403, %v1411
          %v1431 = vmul.f32 %v1404, %v1415
          %v1432 = vmul.f32 %v1405, %v1411
          %v1433 = vmul.f32 %v1406, %v1415
          %v1434 = vpack.c.bf16 %v1420, %v1418
          %v1435 = vpack.c.bf16 %v1421, %v1419
          %v1436 = vpack.c.bf16 %v1424, %v1422
          %v1437 = vpack.c.bf16 %v1425, %v1423
          %v1438 = vpack.c.bf16 %v1428, %v1426
          %v1439 = vpack.c.bf16 %v1429, %v1427
          %v1440 = vpack.c.bf16 %v1432, %v1430
          %v1441 = vpack.c.bf16 %v1433, %v1431
          %v1450 = vunpack.c.l.b16 %v1434
          %v1451 = vunpack.c.l.b16 %v1435
          %v1452 = vunpack.c.h.b16 %v1434
          %v1453 = vunpack.c.h.b16 %v1435
          %v1454 = vunpack.c.l.b16 %v1436
          %v1455 = vunpack.c.l.b16 %v1437
          %v1456 = vunpack.c.h.b16 %v1436
          %v1457 = vunpack.c.h.b16 %v1437
          %v1458 = vunpack.c.l.b16 %v1438
          %v1459 = vunpack.c.l.b16 %v1439
          %v1460 = vunpack.c.h.b16 %v1438
          %v1461 = vunpack.c.h.b16 %v1439
          %v1462 = vunpack.c.l.b16 %v1440
          %v1463 = vunpack.c.l.b16 %v1441
          %v1464 = vunpack.c.h.b16 %v1440
          %v1465 = vunpack.c.h.b16 %v1441
          %v1466 = vpack.c.b16 %v1451, %v1450
          %v1467 = vpack.c.b16 %v1453, %v1452
          %v1468 = vpack.c.b16 %v1455, %v1454
          %v1469 = vpack.c.b16 %v1457, %v1456
          %v1470 = vpack.c.b16 %v1459, %v1458
          %v1471 = vpack.c.b16 %v1461, %v1460
          %v1472 = vpack.c.b16 %v1463, %v1462
          %v1473 = vpack.c.b16 %v1465, %v1464
          %1482 = vst [vmem:[#allocation6] sm:$0xff] %v1466
          %1483 = vst [vmem:[#allocation6 + $0x8] sm:$0xff] %v1467
          %1484 = vst [vmem:[#allocation6 + $0x10] sm:$0xff] %v1468
          %1485 = vst [vmem:[#allocation6 + $0x18] sm:$0xff] %v1469
          %1486 = vst [vmem:[#allocation6 + $0x20] sm:$0xff] %v1470
          %1487 = vst [vmem:[#allocation6 + $0x28] sm:$0xff] %v1471
          %1488 = vst [vmem:[#allocation6 + $0x30] sm:$0xff] %v1472
          %1489 = vst [vmem:[#allocation6 + $0x38] sm:$0xff] %v1473
          %v1490 = vld [vmem:[%s3] sm:$0x3]
          %v1491 = vmul.f32 %v1490, %v1380
          %v1492 = vadd.f32 %v1491, %v1382
          %v1493 = vlaneseq
          %vm1494 = vcmp.ge.s32.totalorder %v1493, 0
          %vm1495 = vcmp.lt.s32.totalorder %v1493, 256
          %vm1496 = vmand %vm1494, %vm1495
          %1497 = vst.msk [vmem:[#allocation7] sm:$0x3] %vm1496, %v1492
        $region88: #{tpu_custom_call.1} parent=75 // pred_fallthru
          _
        %p1498 = scmp.eq.s32.totalorder %s34, 2
        %p1499 = pnand %p1498, %p489
        %p1500 = pneg %p1499
        // Predicated region
        $region89: #{tpu_custom_call.1} parent=75 // pred_check
          _
        $region90: #{tpu_custom_call.1} parent=75 // pred_check_branch
          %1502 = sbr.rel (%p1499) target = $region92
        $region91: #{tpu_custom_call.1} parent=75 // pred_region
          %v1503 = vld [vmem:[%s8] sm:$0x1]
          %v1504 = vld [vmem:[%s9] sm:$0x1]
          %v1505 = vld [vmem:[#allocation4] sm:$0x1]
          %v1506 = vmul.f32 %v1505, 0.125
          %v1507 = vld [vmem:[#allocation5] sm:$0x1]
          %v1508 = vmul.f32 %v1507, 0.125
          %v1509 = vmul.f32 %v1506, %v1506
          %v1510 = vsub.f32 %v1508, %v1509
          %v1511 = vmax.f32 %v1510, 0.0
          %v1512 = vadd.f32 %v1511, 1e-05
          %v1513 = vrsqrt.pop %v1512
          %v1514 = vmul.f32 %v1503, %v1513
          %v1515 = vmul.f32 %v1506, %v1514
          %v1516 = vsub.f32 %v1504, %v1515
          %v1517 = vld [vmem:[%s6] sm:$0xf]
          %v1518 = vld [vmem:[%s6 + $0x4] sm:$0xf]
          %v1519 = vld [vmem:[%s6 + $0x8] sm:$0xf]
          %v1520 = vld [vmem:[%s6 + $0xc] sm:$0xf]
          %v1521 = vld [vmem:[%s6 + $0x10] sm:$0xf]
          %v1522 = vld [vmem:[%s6 + $0x14] sm:$0xf]
          %v1523 = vld [vmem:[%s6 + $0x18] sm:$0xf]
          %v1524 = vld [vmem:[%s6 + $0x1c] sm:$0xf]
          %v1525 = vld [vmem:[%s6 + $0x20] sm:$0xf]
          %v1526 = vld [vmem:[%s6 + $0x24] sm:$0xf]
          %v1527 = vld [vmem:[%s6 + $0x28] sm:$0xf]
          %v1528 = vld [vmem:[%s6 + $0x2c] sm:$0xf]
          %v1529 = vld [vmem:[%s6 + $0x30] sm:$0xf]
          %v1530 = vld [vmem:[%s6 + $0x34] sm:$0xf]
          %v1531 = vld [vmem:[%s6 + $0x38] sm:$0xf]
          %v1532 = vld [vmem:[%s6 + $0x3c] sm:$0xf]
          %v1533 = vld [vmem:[%s6 + $0x40] sm:$0xf]
          %v1534 = vld [vmem:[%s6 + $0x44] sm:$0xf]
          %v1535 = vld [vmem:[%s6 + $0x48] sm:$0xf]
          %v1536 = vld [vmem:[%s6 + $0x4c] sm:$0xf]
          %v1537 = vld [vmem:[%s6 + $0x50] sm:$0xf]
          %v1538 = vld [vmem:[%s6 + $0x54] sm:$0xf]
          %v1539 = vld [vmem:[%s6 + $0x58] sm:$0xf]
          %v1540 = vld [vmem:[%s6 + $0x5c] sm:$0xf]
          %v1541 = vld [vmem:[%s6 + $0x60] sm:$0xf]
          %v1542 = vld [vmem:[%s6 + $0x64] sm:$0xf]
          %v1543 = vld [vmem:[%s6 + $0x68] sm:$0xf]
          %v1544 = vld [vmem:[%s6 + $0x6c] sm:$0xf]
          %v1545 = vld [vmem:[%s6 + $0x70] sm:$0xf]
          %v1546 = vld [vmem:[%s6 + $0x74] sm:$0xf]
          %v1547 = vld [vmem:[%s6 + $0x78] sm:$0xf]
          %v1548 = vld [vmem:[%s6 + $0x7c] sm:$0xf]
          %v1549 = vunpack.c.l.bf16 %v1517
          %v1550 = vunpack.c.l.bf16 %v1518
          %v1551 = vunpack.c.l.bf16 %v1519
          %v1552 = vunpack.c.l.bf16 %v1520
          %v1553 = vunpack.c.l.bf16 %v1521
          %v1554 = vunpack.c.l.bf16 %v1522
          %v1555 = vunpack.c.l.bf16 %v1523
          %v1556 = vunpack.c.l.bf16 %v1524
          %v1557 = vunpack.c.l.bf16 %v1525
          %v1558 = vunpack.c.l.bf16 %v1526
          %v1559 = vunpack.c.l.bf16 %v1527
          %v1560 = vunpack.c.l.bf16 %v1528
          %v1561 = vunpack.c.l.bf16 %v1529
          %v1562 = vunpack.c.l.bf16 %v1530
          %v1563 = vunpack.c.l.bf16 %v1531
          %v1564 = vunpack.c.l.bf16 %v1532
          %v1565 = vunpack.c.l.bf16 %v1533
          %v1566 = vunpack.c.l.bf16 %v1534
          %v1567 = vunpack.c.l.bf16 %v1535
          %v1568 = vunpack.c.l.bf16 %v1536
          %v1569 = vunpack.c.l.bf16 %v1537
          %v1570 = vunpack.c.l.bf16 %v1538
          %v1571 = vunpack.c.l.bf16 %v1539
          %v1572 = vunpack.c.l.bf16 %v1540
          %v1573 = vunpack.c.l.bf16 %v1541
          %v1574 = vunpack.c.l.bf16 %v1542
          %v1575 = vunpack.c.l.bf16 %v1543
          %v1576 = vunpack.c.l.bf16 %v1544
          %v1577 = vunpack.c.l.bf16 %v1545
          %v1578 = vunpack.c.l.bf16 %v1546
          %v1579 = vunpack.c.l.bf16 %v1547
          %v1580 = vunpack.c.l.bf16 %v1548
          %v1582 = vlaneseq
          %v1583 = vshrl.u32 %v1582, 7
          %v1584 = vsub.s32 0, %v1583
          %v1585 = vrot.slane %v1514, %v1584
          %v1587 = vmul.f32 %v1549, %v1585
          %v1588 = vmul.f32 %v1550, %v1585
          %v1589 = vmul.f32 %v1551, %v1585
          %v1590 = vmul.f32 %v1552, %v1585
          %v1591 = vmul.f32 %v1553, %v1585
          %v1592 = vmul.f32 %v1554, %v1585
          %v1593 = vmul.f32 %v1555, %v1585
          %v1594 = vmul.f32 %v1556, %v1585
          %v1595 = vmul.f32 %v1557, %v1585
          %v1596 = vmul.f32 %v1558, %v1585
          %v1597 = vmul.f32 %v1559, %v1585
          %v1598 = vmul.f32 %v1560, %v1585
          %v1599 = vmul.f32 %v1561, %v1585
          %v1600 = vmul.f32 %v1562, %v1585
          %v1601 = vmul.f32 %v1563, %v1585
          %v1602 = vmul.f32 %v1564, %v1585
          %v1603 = vmul.f32 %v1565, %v1585
          %v1604 = vmul.f32 %v1566, %v1585
          %v1605 = vmul.f32 %v1567, %v1585
          %v1606 = vmul.f32 %v1568, %v1585
          %v1607 = vmul.f32 %v1569, %v1585
          %v1608 = vmul.f32 %v1570, %v1585
          %v1609 = vmul.f32 %v1571, %v1585
          %v1610 = vmul.f32 %v1572, %v1585
          %v1611 = vmul.f32 %v1573, %v1585
          %v1612 = vmul.f32 %v1574, %v1585
          %v1613 = vmul.f32 %v1575, %v1585
          %v1614 = vmul.f32 %v1576, %v1585
          %v1615 = vmul.f32 %v1577, %v1585
          %v1616 = vmul.f32 %v1578, %v1585
          %v1617 = vmul.f32 %v1579, %v1585
          %v1618 = vmul.f32 %v1580, %v1585
          %v1619 = vpack.c.bf16 %v1588, %v1587
          %v1620 = vpack.c.bf16 %v1590, %v1589
          %v1621 = vpack.c.bf16 %v1592, %v1591
          %v1622 = vpack.c.bf16 %v1594, %v1593
          %v1623 = vpack.c.bf16 %v1596, %v1595
          %v1624 = vpack.c.bf16 %v1598, %v1597
          %v1625 = vpack.c.bf16 %v1600, %v1599
          %v1626 = vpack.c.bf16 %v1602, %v1601
          %v1627 = vpack.c.bf16 %v1604, %v1603
          %v1628 = vpack.c.bf16 %v1606, %v1605
          %v1629 = vpack.c.bf16 %v1608, %v1607
          %v1630 = vpack.c.bf16 %v1610, %v1609
          %v1631 = vpack.c.bf16 %v1612, %v1611
          %v1632 = vpack.c.bf16 %v1614, %v1613
          %v1633 = vpack.c.bf16 %v1616, %v1615
          %v1634 = vpack.c.bf16 %v1618, %v1617
          %v1651 = vunpack.c.l.b16 %v1619
          %v1652 = vunpack.c.h.b16 %v1619
          %v1653 = vunpack.c.l.b16 %v1620
          %v1654 = vunpack.c.h.b16 %v1620
          %v1655 = vunpack.c.l.b16 %v1621
          %v1656 = vunpack.c.h.b16 %v1621
          %v1657 = vunpack.c.l.b16 %v1622
          %v1658 = vunpack.c.h.b16 %v1622
          %v1659 = vunpack.c.l.b16 %v1623
          %v1660 = vunpack.c.h.b16 %v1623
          %v1661 = vunpack.c.l.b16 %v1624
          %v1662 = vunpack.c.h.b16 %v1624
          %v1663 = vunpack.c.l.b16 %v1625
          %v1664 = vunpack.c.h.b16 %v1625
          %v1665 = vunpack.c.l.b16 %v1626
          %v1666 = vunpack.c.h.b16 %v1626
          %v1667 = vunpack.c.l.b16 %v1627
          %v1668 = vunpack.c.h.b16 %v1627
          %v1669 = vunpack.c.l.b16 %v1628
          %v1670 = vunpack.c.h.b16 %v1628
          %v1671 = vunpack.c.l.b16 %v1629
          %v1672 = vunpack.c.h.b16 %v1629
          %v1673 = vunpack.c.l.b16 %v1630
          %v1674 = vunpack.c.h.b16 %v1630
          %v1675 = vunpack.c.l.b16 %v1631
          %v1676 = vunpack.c.h.b16 %v1631
          %v1677 = vunpack.c.l.b16 %v1632
          %v1678 = vunpack.c.h.b16 %v1632
          %v1679 = vunpack.c.l.b16 %v1633
          %v1680 = vunpack.c.h.b16 %v1633
          %v1681 = vunpack.c.l.b16 %v1634
          %v1682 = vunpack.c.h.b16 %v1634
          %v1683 = vpack.c.b16 %v1651, %v1651
          %v1684 = vpack.c.b16 %v1652, %v1652
          %v1685 = vpack.c.b16 %v1653, %v1653
          %v1686 = vpack.c.b16 %v1654, %v1654
          %v1687 = vpack.c.b16 %v1655, %v1655
          %v1688 = vpack.c.b16 %v1656, %v1656
          %v1689 = vpack.c.b16 %v1657, %v1657
          %v1690 = vpack.c.b16 %v1658, %v1658
          %v1691 = vpack.c.b16 %v1659, %v1659
          %v1692 = vpack.c.b16 %v1660, %v1660
          %v1693 = vpack.c.b16 %v1661, %v1661
          %v1694 = vpack.c.b16 %v1662, %v1662
          %v1695 = vpack.c.b16 %v1663, %v1663
          %v1696 = vpack.c.b16 %v1664, %v1664
          %v1697 = vpack.c.b16 %v1665, %v1665
          %v1698 = vpack.c.b16 %v1666, %v1666
          %v1699 = vpack.c.b16 %v1667, %v1667
          %v1700 = vpack.c.b16 %v1668, %v1668
          %v1701 = vpack.c.b16 %v1669, %v1669
          %v1702 = vpack.c.b16 %v1670, %v1670
          %v1703 = vpack.c.b16 %v1671, %v1671
          %v1704 = vpack.c.b16 %v1672, %v1672
          %v1705 = vpack.c.b16 %v1673, %v1673
          %v1706 = vpack.c.b16 %v1674, %v1674
          %v1707 = vpack.c.b16 %v1675, %v1675
          %v1708 = vpack.c.b16 %v1676, %v1676
          %v1709 = vpack.c.b16 %v1677, %v1677
          %v1710 = vpack.c.b16 %v1678, %v1678
          %v1711 = vpack.c.b16 %v1679, %v1679
          %v1712 = vpack.c.b16 %v1680, %v1680
          %v1713 = vpack.c.b16 %v1681, %v1681
          %v1714 = vpack.c.b16 %v1682, %v1682
          %1747 = vst [vmem:[#allocation8] sm:$0xf] %v1683
          %1748 = vst [vmem:[#allocation8 + $0x4] sm:$0xf] %v1684
          %1749 = vst [vmem:[#allocation8 + $0x8] sm:$0xf] %v1685
          %1750 = vst [vmem:[#allocation8 + $0xc] sm:$0xf] %v1686
          %1751 = vst [vmem:[#allocation8 + $0x10] sm:$0xf] %v1687
          %1752 = vst [vmem:[#allocation8 + $0x14] sm:$0xf] %v1688
          %1753 = vst [vmem:[#allocation8 + $0x18] sm:$0xf] %v1689
          %1754 = vst [vmem:[#allocation8 + $0x1c] sm:$0xf] %v1690
          %1755 = vst [vmem:[#allocation8 + $0x20] sm:$0xf] %v1691
          %1756 = vst [vmem:[#allocation8 + $0x24] sm:$0xf] %v1692
          %1757 = vst [vmem:[#allocation8 + $0x28] sm:$0xf] %v1693
          %1758 = vst [vmem:[#allocation8 + $0x2c] sm:$0xf] %v1694
          %1759 = vst [vmem:[#allocation8 + $0x30] sm:$0xf] %v1695
          %1760 = vst [vmem:[#allocation8 + $0x34] sm:$0xf] %v1696
          %1761 = vst [vmem:[#allocation8 + $0x38] sm:$0xf] %v1697
          %1762 = vst [vmem:[#allocation8 + $0x3c] sm:$0xf] %v1698
          %1763 = vst [vmem:[#allocation8 + $0x40] sm:$0xf] %v1699
          %1764 = vst [vmem:[#allocation8 + $0x44] sm:$0xf] %v1700
          %1765 = vst [vmem:[#allocation8 + $0x48] sm:$0xf] %v1701
          %1766 = vst [vmem:[#allocation8 + $0x4c] sm:$0xf] %v1702
          %1767 = vst [vmem:[#allocation8 + $0x50] sm:$0xf] %v1703
          %1768 = vst [vmem:[#allocation8 + $0x54] sm:$0xf] %v1704
          %1769 = vst [vmem:[#allocation8 + $0x58] sm:$0xf] %v1705
          %1770 = vst [vmem:[#allocation8 + $0x5c] sm:$0xf] %v1706
          %1771 = vst [vmem:[#allocation8 + $0x60] sm:$0xf] %v1707
          %1772 = vst [vmem:[#allocation8 + $0x64] sm:$0xf] %v1708
          %1773 = vst [vmem:[#allocation8 + $0x68] sm:$0xf] %v1709
          %1774 = vst [vmem:[#allocation8 + $0x6c] sm:$0xf] %v1710
          %1775 = vst [vmem:[#allocation8 + $0x70] sm:$0xf] %v1711
          %1776 = vst [vmem:[#allocation8 + $0x74] sm:$0xf] %v1712
          %1777 = vst [vmem:[#allocation8 + $0x78] sm:$0xf] %v1713
          %1778 = vst [vmem:[#allocation8 + $0x7c] sm:$0xf] %v1714
          %v1779 = vld [vmem:[%s7] sm:$0x1]
          %v1780 = vmul.f32 %v1779, %v1514
          %v1781 = vadd.f32 %v1780, %v1516
          %1782 = vst [vmem:[#allocation9] sm:$0x1] %v1781
        $region92: #{tpu_custom_call.1} parent=75 // pred_fallthru
          _
        // Predicated region
        $region93: #{tpu_custom_call.1} parent=75 // pred_check
          %p1783 = pneg %p1364
        $region94: #{tpu_custom_call.1} parent=75 // pred_check_branch
          %1785 = sbr.rel (%p1783) target = $region96
        $region95: #{tpu_custom_call.1} parent=75 // pred_region
          %s1786 = smul.u32 %s35, 16
          %s1787 = smul.addr %s1786, 4
          %s1788 = scalar_lea.vmem [#allocation10], %s1787
          %v1789 = vld [vmem:[%s1788] sm:$0xf]
          %v1790 = vld [vmem:[%s1788 + $0x4] sm:$0xf]
          %v1791 = vld [vmem:[%s1788 + $0x8] sm:$0xf]
          %v1792 = vld [vmem:[%s1788 + $0xc] sm:$0xf]
          %v1793 = vld [vmem:[%s1788 + $0x10] sm:$0xf]
          %v1794 = vld [vmem:[%s1788 + $0x14] sm:$0xf]
          %v1795 = vld [vmem:[%s1788 + $0x18] sm:$0xf]
          %v1796 = vld [vmem:[%s1788 + $0x1c] sm:$0xf]
          %v1797 = vld [vmem:[%s1788 + $0x20] sm:$0xf]
          %v1798 = vld [vmem:[%s1788 + $0x24] sm:$0xf]
          %v1799 = vld [vmem:[%s1788 + $0x28] sm:$0xf]
          %v1800 = vld [vmem:[%s1788 + $0x2c] sm:$0xf]
          %v1801 = vld [vmem:[%s1788 + $0x30] sm:$0xf]
          %v1802 = vld [vmem:[%s1788 + $0x34] sm:$0xf]
          %v1803 = vld [vmem:[%s1788 + $0x38] sm:$0xf]
          %v1804 = vld [vmem:[%s1788 + $0x3c] sm:$0xf]
          %v1805 = vld [vmem:[#allocation6] sm:$0xff]
          %v1806 = vld [vmem:[#allocation6 + $0x8] sm:$0xff]
          %v1807 = vld [vmem:[#allocation6 + $0x10] sm:$0xff]
          %v1808 = vld [vmem:[#allocation6 + $0x18] sm:$0xff]
          %v1809 = vld [vmem:[#allocation6 + $0x20] sm:$0xff]
          %v1810 = vld [vmem:[#allocation6 + $0x28] sm:$0xff]
          %v1811 = vld [vmem:[#allocation6 + $0x30] sm:$0xff]
          %v1812 = vld [vmem:[#allocation6 + $0x38] sm:$0xff]
          %v1813 = vld [vmem:[#allocation7] sm:$0x3]
          %v1815 = vlaneseq
          %v1816 = vshrl.u32 %v1815, 7
          %v1817 = vsub.s32 0, %v1816
          %v1818 = vrot.slane %v1813, %v1817
          %v1819 = vlaneseq
          %v1820 = vshrl.u32 %v1819, 7
          %v1821 = vsub.s32 1, %v1820
          %v1822 = vrot.slane %v1813, %v1821
          %v1841 = vunpack.c.l.b16 %v1789
          %v1842 = vunpack.c.l.b16 %v1790
          %v1843 = vunpack.c.l.b16 %v1791
          %v1844 = vunpack.c.l.b16 %v1792
          %v1845 = vunpack.c.l.b16 %v1793
          %v1846 = vunpack.c.l.b16 %v1794
          %v1847 = vunpack.c.l.b16 %v1795
          %v1848 = vunpack.c.l.b16 %v1796
          %v1849 = vunpack.c.l.b16 %v1797
          %v1850 = vunpack.c.l.b16 %v1798
          %v1851 = vunpack.c.l.b16 %v1799
          %v1852 = vunpack.c.l.b16 %v1800
          %v1853 = vunpack.c.l.b16 %v1801
          %v1854 = vunpack.c.l.b16 %v1802
          %v1855 = vunpack.c.l.b16 %v1803
          %v1856 = vunpack.c.l.b16 %v1804
          %v1857 = vpack.c.b16 %v1842, %v1841
          %v1858 = vpack.c.b16 %v1844, %v1843
          %v1859 = vpack.c.b16 %v1846, %v1845
          %v1860 = vpack.c.b16 %v1848, %v1847
          %v1861 = vpack.c.b16 %v1850, %v1849
          %v1862 = vpack.c.b16 %v1852, %v1851
          %v1863 = vpack.c.b16 %v1854, %v1853
          %v1864 = vpack.c.b16 %v1856, %v1855
          %v1873 = vunpack.c.l.b16 %v1805
          %v1874 = vunpack.c.h.b16 %v1805
          %v1875 = vunpack.c.l.b16 %v1806
          %v1876 = vunpack.c.h.b16 %v1806
          %v1877 = vunpack.c.l.b16 %v1807
          %v1878 = vunpack.c.h.b16 %v1807
          %v1879 = vunpack.c.l.b16 %v1808
          %v1880 = vunpack.c.h.b16 %v1808
          %v1881 = vunpack.c.l.b16 %v1809
          %v1882 = vunpack.c.h.b16 %v1809
          %v1883 = vunpack.c.l.b16 %v1810
          %v1884 = vunpack.c.h.b16 %v1810
          %v1885 = vunpack.c.l.b16 %v1811
          %v1886 = vunpack.c.h.b16 %v1811
          %v1887 = vunpack.c.l.b16 %v1812
          %v1888 = vunpack.c.h.b16 %v1812
          %v1889 = vpack.c.b16 %v1875, %v1873
          %v1890 = vpack.c.b16 %v1876, %v1874
          %v1891 = vpack.c.b16 %v1879, %v1877
          %v1892 = vpack.c.b16 %v1880, %v1878
          %v1893 = vpack.c.b16 %v1883, %v1881
          %v1894 = vpack.c.b16 %v1884, %v1882
          %v1895 = vpack.c.b16 %v1887, %v1885
          %v1896 = vpack.c.b16 %v1888, %v1886
          %vm1905 = vcmask 523264
          %v1907 = vsel %vm1905, %v1857, 0
          %v1910 = vsel %vm1905, %v1858, 0
          %v1913 = vsel %vm1905, %v1859, 0
          %v1916 = vsel %vm1905, %v1860, 0
          %v1919 = vsel %vm1905, %v1861, 0
          %v1922 = vsel %vm1905, %v1862, 0
          %v1925 = vsel %vm1905, %v1863, 0
          %v1928 = vsel %vm1905, %v1864, 0
          %1930 = vmatprep.subr.bf16.mxu0 0
          %1931 = vmatpush1.bf16.msra.mxu0 0
          %1932 = vmatprep.subr.bf16.mxu0 0
          %1933 = vmatpush1.bf16.msra.mxu0 0
          %1934 = vmatprep.subr.bf16.mxu0 0
          %1935 = vmatpush1.bf16.msra.mxu0 0
          %1936 = vmatprep.subr.bf16.mxu0 0
          %1937 = vmatpush1.bf16.msra.mxu0 0
          %1938 = vmatprep.subr.bf16.mxu0 %v1896
          %1939 = vmatpush1.bf16.msra.mxu0 %v1895
          %1940 = vmatprep.subr.bf16.mxu0 %v1894
          %1941 = vmatpush1.bf16.msra.mxu0 %v1893
          %1942 = vmatprep.subr.bf16.mxu0 %v1892
          %1943 = vmatpush1.bf16.msra.mxu0 %v1891
          %1944 = vmatprep.subr.bf16.mxu0 %v1890
          %1945 = vmatpush1.bf16.msra.mxu0 %v1889
          %1946 = vmatprep.subr.bf16.mxu0 0
          %1947 = vmatpush2.bf16.msra.mxu0 0
          %1948 = vmatprep.subr.bf16.mxu0 0
          %1949 = vmatpush2.bf16.msra.mxu0 0
          %1950 = vmatprep.subr.bf16.mxu0 0
          %1951 = vmatpush2.bf16.msra.mxu0 0
          %1952 = vmatprep.subr.bf16.mxu0 0
          %1953 = vmatpush2.bf16.msra.mxu0 0
          %1954 = vmatprep.subr.bf16.mxu0 0
          %1955 = vmatpush2.bf16.msra.mxu0 0
          %1956 = vmatprep.subr.bf16.mxu0 0
          %1957 = vmatpush2.bf16.msra.mxu0 0
          %1958 = vmatprep.subr.bf16.mxu0 0
          %1959 = vmatpush2.bf16.msra.mxu0 0
          %1960 = vmatprep.subr.bf16.mxu0 0
          %1961 = vmatpush2.bf16.msra.mxu0 0
          %1962 = vmatprep.mubr.bf16.mxu0 0
          %1963 = vmatmul.mubr.bf16.gmra.mxu0 %v1907
          %v1964 = vpop.f32.mrf.mxu0
          %v1965 = vadd.f32 %v1818, %v1964
          %v1966 = vpop.f32.mrf.mxu0
          %v1967 = vadd.f32 %v1822, %v1966
          %v1968 = vpop.f32.mrf.mxu0
          %v1969 = vadd.f32 %v1818, %v1968
          %v1970 = vpop.f32.mrf.mxu0
          %v1971 = vadd.f32 %v1822, %v1970
          %1972 = vmatprep.mubr.bf16.mxu0 0
          %1973 = vmatmul.mubr.bf16.gmra.mxu0 %v1910
          %v1974 = vpop.f32.mrf.mxu0
          %v1975 = vadd.f32 %v1818, %v1974
          %v1976 = vpop.f32.mrf.mxu0
          %v1977 = vadd.f32 %v1822, %v1976
          %v1978 = vpop.f32.mrf.mxu0
          %v1979 = vadd.f32 %v1818, %v1978
          %v1980 = vpop.f32.mrf.mxu0
          %v1981 = vadd.f32 %v1822, %v1980
          %1982 = vmatprep.mubr.bf16.mxu0 0
          %1983 = vmatmul.mubr.bf16.gmra.mxu0 %v1913
          %v1984 = vpop.f32.mrf.mxu0
          %v1985 = vadd.f32 %v1818, %v1984
          %v1986 = vpop.f32.mrf.mxu0
          %v1987 = vadd.f32 %v1822, %v1986
          %v1988 = vpop.f32.mrf.mxu0
          %v1989 = vadd.f32 %v1818, %v1988
          %v1990 = vpop.f32.mrf.mxu0
          %v1991 = vadd.f32 %v1822, %v1990
          %1992 = vmatprep.mubr.bf16.mxu0 0
          %1993 = vmatmul.mubr.bf16.gmra.mxu0 %v1916
          %v1994 = vpop.f32.mrf.mxu0
          %v1995 = vadd.f32 %v1818, %v1994
          %v1996 = vpop.f32.mrf.mxu0
          %v1997 = vadd.f32 %v1822, %v1996
          %v1998 = vpop.f32.mrf.mxu0
          %v1999 = vadd.f32 %v1818, %v1998
          %v2000 = vpop.f32.mrf.mxu0
          %v2001 = vadd.f32 %v1822, %v2000
          %2002 = vmatprep.mubr.bf16.mxu0 0
          %2003 = vmatmul.mubr.bf16.gmra.mxu0 %v1919
          %v2004 = vpop.f32.mrf.mxu0
          %v2005 = vadd.f32 %v1818, %v2004
          %v2006 = vpop.f32.mrf.mxu0
          %v2007 = vadd.f32 %v1822, %v2006
          %v2008 = vpop.f32.mrf.mxu0
          %v2009 = vadd.f32 %v1818, %v2008
          %v2010 = vpop.f32.mrf.mxu0
          %v2011 = vadd.f32 %v1822, %v2010
          %2012 = vmatprep.mubr.bf16.mxu0 0
          %2013 = vmatmul.mubr.bf16.gmra.mxu0 %v1922
          %v2014 = vpop.f32.mrf.mxu0
          %v2015 = vadd.f32 %v1818, %v2014
          %v2016 = vpop.f32.mrf.mxu0
          %v2017 = vadd.f32 %v1822, %v2016
          %v2018 = vpop.f32.mrf.mxu0
          %v2019 = vadd.f32 %v1818, %v2018
          %v2020 = vpop.f32.mrf.mxu0
          %v2021 = vadd.f32 %v1822, %v2020
          %2022 = vmatprep.mubr.bf16.mxu0 0
          %2023 = vmatmul.mubr.bf16.gmra.mxu0 %v1925
          %v2024 = vpop.f32.mrf.mxu0
          %v2025 = vadd.f32 %v1818, %v2024
          %v2026 = vpop.f32.mrf.mxu0
          %v2027 = vadd.f32 %v1822, %v2026
          %v2028 = vpop.f32.mrf.mxu0
          %v2029 = vadd.f32 %v1818, %v2028
          %v2030 = vpop.f32.mrf.mxu0
          %v2031 = vadd.f32 %v1822, %v2030
          %2032 = vmatprep.mubr.bf16.mxu0 0
          %2033 = vmatmul.mubr.bf16.gmra.mxu0 %v1928
          %v2034 = vpop.f32.mrf.mxu0
          %v2035 = vadd.f32 %v1818, %v2034
          %v2036 = vpop.f32.mrf.mxu0
          %v2037 = vadd.f32 %v1822, %v2036
          %v2038 = vpop.f32.mrf.mxu0
          %v2039 = vadd.f32 %v1818, %v2038
          %v2040 = vpop.f32.mrf.mxu0
          %v2041 = vadd.f32 %v1822, %v2040
          %2042 = vdwg.mxu0
          %v2043 = vmax.f32 %v1965, 0.0
          %v2044 = vmax.f32 %v1967, 0.0
          %v2045 = vmax.f32 %v1969, 0.0
          %v2046 = vmax.f32 %v1971, 0.0
          %v2047 = vmax.f32 %v1975, 0.0
          %v2048 = vmax.f32 %v1977, 0.0
          %v2049 = vmax.f32 %v1979, 0.0
          %v2050 = vmax.f32 %v1981, 0.0
          %v2051 = vmax.f32 %v1985, 0.0
          %v2052 = vmax.f32 %v1987, 0.0
          %v2053 = vmax.f32 %v1989, 0.0
          %v2054 = vmax.f32 %v1991, 0.0
          %v2055 = vmax.f32 %v1995, 0.0
          %v2056 = vmax.f32 %v1997, 0.0
          %v2057 = vmax.f32 %v1999, 0.0
          %v2058 = vmax.f32 %v2001, 0.0
          %v2059 = vmax.f32 %v2005, 0.0
          %v2060 = vmax.f32 %v2007, 0.0
          %v2061 = vmax.f32 %v2009, 0.0
          %v2062 = vmax.f32 %v2011, 0.0
          %v2063 = vmax.f32 %v2015, 0.0
          %v2064 = vmax.f32 %v2017, 0.0
          %v2065 = vmax.f32 %v2019, 0.0
          %v2066 = vmax.f32 %v2021, 0.0
          %v2067 = vmax.f32 %v2025, 0.0
          %v2068 = vmax.f32 %v2027, 0.0
          %v2069 = vmax.f32 %v2029, 0.0
          %v2070 = vmax.f32 %v2031, 0.0
          %v2071 = vmax.f32 %v2035, 0.0
          %v2072 = vmax.f32 %v2037, 0.0
          %v2073 = vmax.f32 %v2039, 0.0
          %v2074 = vmax.f32 %v2041, 0.0
          %v2075 = vpack.c.bf16 %v2045, %v2043
          %v2076 = vpack.c.bf16 %v2046, %v2044
          %v2077 = vpack.c.bf16 %v2049, %v2047
          %v2078 = vpack.c.bf16 %v2050, %v2048
          %v2079 = vpack.c.bf16 %v2053, %v2051
          %v2080 = vpack.c.bf16 %v2054, %v2052
          %v2081 = vpack.c.bf16 %v2057, %v2055
          %v2082 = vpack.c.bf16 %v2058, %v2056
          %v2083 = vpack.c.bf16 %v2061, %v2059
          %v2084 = vpack.c.bf16 %v2062, %v2060
          %v2085 = vpack.c.bf16 %v2065, %v2063
          %v2086 = vpack.c.bf16 %v2066, %v2064
          %v2087 = vpack.c.bf16 %v2069, %v2067
          %v2088 = vpack.c.bf16 %v2070, %v2068
          %v2089 = vpack.c.bf16 %v2073, %v2071
          %v2090 = vpack.c.bf16 %v2074, %v2072
          %v2091 = vld [vmem:[%s6] sm:$0xf]
          %v2092 = vld [vmem:[%s6 + $0x4] sm:$0xf]
          %v2093 = vld [vmem:[%s6 + $0x8] sm:$0xf]
          %v2094 = vld [vmem:[%s6 + $0xc] sm:$0xf]
          %v2095 = vld [vmem:[%s6 + $0x10] sm:$0xf]
          %v2096 = vld [vmem:[%s6 + $0x14] sm:$0xf]
          %v2097 = vld [vmem:[%s6 + $0x18] sm:$0xf]
          %v2098 = vld [vmem:[%s6 + $0x1c] sm:$0xf]
          %v2099 = vld [vmem:[%s6 + $0x20] sm:$0xf]
          %v2100 = vld [vmem:[%s6 + $0x24] sm:$0xf]
          %v2101 = vld [vmem:[%s6 + $0x28] sm:$0xf]
          %v2102 = vld [vmem:[%s6 + $0x2c] sm:$0xf]
          %v2103 = vld [vmem:[%s6 + $0x30] sm:$0xf]
          %v2104 = vld [vmem:[%s6 + $0x34] sm:$0xf]
          %v2105 = vld [vmem:[%s6 + $0x38] sm:$0xf]
          %v2106 = vld [vmem:[%s6 + $0x3c] sm:$0xf]
          %v2107 = vld [vmem:[%s6 + $0x40] sm:$0xf]
          %v2108 = vld [vmem:[%s6 + $0x44] sm:$0xf]
          %v2109 = vld [vmem:[%s6 + $0x48] sm:$0xf]
          %v2110 = vld [vmem:[%s6 + $0x4c] sm:$0xf]
          %v2111 = vld [vmem:[%s6 + $0x50] sm:$0xf]
          %v2112 = vld [vmem:[%s6 + $0x54] sm:$0xf]
          %v2113 = vld [vmem:[%s6 + $0x58] sm:$0xf]
          %v2114 = vld [vmem:[%s6 + $0x5c] sm:$0xf]
          %v2115 = vld [vmem:[%s6 + $0x60] sm:$0xf]
          %v2116 = vld [vmem:[%s6 + $0x64] sm:$0xf]
          %v2117 = vld [vmem:[%s6 + $0x68] sm:$0xf]
          %v2118 = vld [vmem:[%s6 + $0x6c] sm:$0xf]
          %v2119 = vld [vmem:[%s6 + $0x70] sm:$0xf]
          %v2120 = vld [vmem:[%s6 + $0x74] sm:$0xf]
          %v2121 = vld [vmem:[%s6 + $0x78] sm:$0xf]
          %v2122 = vld [vmem:[%s6 + $0x7c] sm:$0xf]
          %v2123 = vld [vmem:[%s7] sm:$0x1]
          %v2125 = vlaneseq
          %v2126 = vshrl.u32 %v2125, 7
          %v2127 = vsub.s32 0, %v2126
          %v2128 = vrot.slane %v2123, %v2127
          %v2162 = vunpack.c.l.b16 %v2091
          %v2163 = vunpack.c.l.b16 %v2092
          %v2164 = vunpack.c.l.b16 %v2093
          %v2165 = vunpack.c.l.b16 %v2094
          %v2166 = vunpack.c.l.b16 %v2095
          %v2167 = vunpack.c.l.b16 %v2096
          %v2168 = vunpack.c.l.b16 %v2097
          %v2169 = vunpack.c.l.b16 %v2098
          %v2170 = vunpack.c.l.b16 %v2099
          %v2171 = vunpack.c.l.b16 %v2100
          %v2172 = vunpack.c.l.b16 %v2101
          %v2173 = vunpack.c.l.b16 %v2102
          %v2174 = vunpack.c.l.b16 %v2103
          %v2175 = vunpack.c.l.b16 %v2104
          %v2176 = vunpack.c.l.b16 %v2105
          %v2177 = vunpack.c.l.b16 %v2106
          %v2178 = vunpack.c.l.b16 %v2107
          %v2179 = vunpack.c.l.b16 %v2108
          %v2180 = vunpack.c.l.b16 %v2109
          %v2181 = vunpack.c.l.b16 %v2110
          %v2182 = vunpack.c.l.b16 %v2111
          %v2183 = vunpack.c.l.b16 %v2112
          %v2184 = vunpack.c.l.b16 %v2113
          %v2185 = vunpack.c.l.b16 %v2114
          %v2186 = vunpack.c.l.b16 %v2115
          %v2187 = vunpack.c.l.b16 %v2116
          %v2188 = vunpack.c.l.b16 %v2117
          %v2189 = vunpack.c.l.b16 %v2118
          %v2190 = vunpack.c.l.b16 %v2119
          %v2191 = vunpack.c.l.b16 %v2120
          %v2192 = vunpack.c.l.b16 %v2121
          %v2193 = vunpack.c.l.b16 %v2122
          %v2194 = vpack.c.b16 %v2163, %v2162
          %v2195 = vpack.c.b16 %v2165, %v2164
          %v2196 = vpack.c.b16 %v2167, %v2166
          %v2197 = vpack.c.b16 %v2169, %v2168
          %v2198 = vpack.c.b16 %v2171, %v2170
          %v2199 = vpack.c.b16 %v2173, %v2172
          %v2200 = vpack.c.b16 %v2175, %v2174
          %v2201 = vpack.c.b16 %v2177, %v2176
          %v2202 = vpack.c.b16 %v2179, %v2178
          %v2203 = vpack.c.b16 %v2181, %v2180
          %v2204 = vpack.c.b16 %v2183, %v2182
          %v2205 = vpack.c.b16 %v2185, %v2184
          %v2206 = vpack.c.b16 %v2187, %v2186
          %v2207 = vpack.c.b16 %v2189, %v2188
          %v2208 = vpack.c.b16 %v2191, %v2190
          %v2209 = vpack.c.b16 %v2193, %v2192
          %2226 = vmatprep.subr.bf16.mxu0 0
          %2227 = vmatpush1.bf16.msra.mxu0 %v2201
          %2228 = vmatprep.subr.bf16.mxu0 0
          %2229 = vmatpush1.bf16.msra.mxu0 %v2200
          %2230 = vmatprep.subr.bf16.mxu0 0
          %2231 = vmatpush1.bf16.msra.mxu0 %v2199
          %2232 = vmatprep.subr.bf16.mxu0 0
          %2233 = vmatpush1.bf16.msra.mxu0 %v2198
          %2234 = vmatprep.subr.bf16.mxu0 0
          %2235 = vmatpush1.bf16.msra.mxu0 %v2197
          %2236 = vmatprep.subr.bf16.mxu0 0
          %2237 = vmatpush1.bf16.msra.mxu0 %v2196
          %2238 = vmatprep.subr.bf16.mxu0 0
          %2239 = vmatpush1.bf16.msra.mxu0 %v2195
          %2240 = vmatprep.subr.bf16.mxu0 0
          %2241 = vmatpush1.bf16.msra.mxu0 %v2194
          %2242 = vmatprep.subr.bf16.mxu0 0
          %2243 = vmatpush2.bf16.msra.mxu0 %v2209
          %2244 = vmatprep.subr.bf16.mxu0 0
          %2245 = vmatpush2.bf16.msra.mxu0 %v2208
          %2246 = vmatprep.subr.bf16.mxu0 0
          %2247 = vmatpush2.bf16.msra.mxu0 %v2207
          %2248 = vmatprep.subr.bf16.mxu0 0
          %2249 = vmatpush2.bf16.msra.mxu0 %v2206
          %2250 = vmatprep.subr.bf16.mxu0 0
          %2251 = vmatpush2.bf16.msra.mxu0 %v2205
          %2252 = vmatprep.subr.bf16.mxu0 0
          %2253 = vmatpush2.bf16.msra.mxu0 %v2204
          %2254 = vmatprep.subr.bf16.mxu0 0
          %2255 = vmatpush2.bf16.msra.mxu0 %v2203
          %2256 = vmatprep.subr.bf16.mxu0 0
          %2257 = vmatpush2.bf16.msra.mxu0 %v2202
          %2258 = vmatprep.mubr.bf16.mxu0 %v2076
          %2259 = vmatmul.mubr.bf16.gmra.mxu0 %v2075
          %v2260 = vpop.f32.mrf.mxu0
          %v2261 = vadd.f32 %v2128, %v2260
          %v2262 = vpop.f32.mrf.mxu0
          %v2263 = vpop.f32.mrf.mxu0
          %v2264 = vadd.f32 %v2128, %v2263
          %v2265 = vpop.f32.mrf.mxu0
          %2266 = vmatprep.mubr.bf16.mxu0 %v2078
          %2267 = vmatmul.mubr.bf16.gmra.mxu0 %v2077
          %v2268 = vpop.f32.mrf.mxu0
          %v2269 = vadd.f32 %v2128, %v2268
          %v2270 = vpop.f32.mrf.mxu0
          %v2271 = vpop.f32.mrf.mxu0
          %v2272 = vadd.f32 %v2128, %v2271
          %v2273 = vpop.f32.mrf.mxu0
          %2274 = vmatprep.mubr.bf16.mxu0 %v2080
          %2275 = vmatmul.mubr.bf16.gmra.mxu0 %v2079
          %v2276 = vpop.f32.mrf.mxu0
          %v2277 = vadd.f32 %v2128, %v2276
          %v2278 = vpop.f32.mrf.mxu0
          %v2279 = vpop.f32.mrf.mxu0
          %v2280 = vadd.f32 %v2128, %v2279
          %v2281 = vpop.f32.mrf.mxu0
          %2282 = vmatprep.mubr.bf16.mxu0 %v2082
          %2283 = vmatmul.mubr.bf16.gmra.mxu0 %v2081
          %v2284 = vpop.f32.mrf.mxu0
          %v2285 = vadd.f32 %v2128, %v2284
          %v2286 = vpop.f32.mrf.mxu0
          %v2287 = vpop.f32.mrf.mxu0
          %v2288 = vadd.f32 %v2128, %v2287
          %v2289 = vpop.f32.mrf.mxu0
          %2290 = vmatprep.mubr.bf16.mxu0 %v2084
          %2291 = vmatmul.mubr.bf16.gmra.mxu0 %v2083
          %v2292 = vpop.f32.mrf.mxu0
          %v2293 = vadd.f32 %v2128, %v2292
          %v2294 = vpop.f32.mrf.mxu0
          %v2295 = vpop.f32.mrf.mxu0
          %v2296 = vadd.f32 %v2128, %v2295
          %v2297 = vpop.f32.mrf.mxu0
          %2298 = vmatprep.mubr.bf16.mxu0 %v2086
          %2299 = vmatmul.mubr.bf16.gmra.mxu0 %v2085
          %v2300 = vpop.f32.mrf.mxu0
          %v2301 = vadd.f32 %v2128, %v2300
          %v2302 = vpop.f32.mrf.mxu0
          %v2303 = vpop.f32.mrf.mxu0
          %v2304 = vadd.f32 %v2128, %v2303
          %v2305 = vpop.f32.mrf.mxu0
          %2306 = vmatprep.mubr.bf16.mxu0 %v2088
          %2307 = vmatmul.mubr.bf16.gmra.mxu0 %v2087
          %v2308 = vpop.f32.mrf.mxu0
          %v2309 = vadd.f32 %v2128, %v2308
          %v2310 = vpop.f32.mrf.mxu0
          %v2311 = vpop.f32.mrf.mxu0
          %v2312 = vadd.f32 %v2128, %v2311
          %v2313 = vpop.f32.mrf.mxu0
          %2314 = vmatprep.mubr.bf16.mxu0 %v2090
          %2315 = vmatmul.mubr.bf16.gmra.mxu0 %v2089
          %v2316 = vpop.f32.mrf.mxu0
          %v2317 = vadd.f32 %v2128, %v2316
          %v2318 = vpop.f32.mrf.mxu0
          %v2319 = vpop.f32.mrf.mxu0
          %v2320 = vadd.f32 %v2128, %v2319
          %v2321 = vpop.f32.mrf.mxu0
          %2322 = vdwg.mxu0
          %v2323 = vsel %vm537, 1, 0
          %v2324 = vsel %vm538, 1, 0
          %v2325 = vsel %vm539, 1, 0
          %v2326 = vsel %vm540, 1, 0
          %v2327 = vsel %vm541, 1, 0
          %v2328 = vsel %vm542, 1, 0
          %v2329 = vsel %vm543, 1, 0
          %v2330 = vsel %vm544, 1, 0
          %v2331 = vsel %vm545, 1, 0
          %v2332 = vsel %vm546, 1, 0
          %v2333 = vsel %vm547, 1, 0
          %v2334 = vsel %vm548, 1, 0
          %v2335 = vsel %vm549, 1, 0
          %v2336 = vsel %vm550, 1, 0
          %v2337 = vsel %vm551, 1, 0
          %v2338 = vsel %vm552, 1, 0
          %vm2339 = vcmp.eq.s32.totalorder %v2323, 1
          %vm2340 = vcmp.eq.s32.totalorder %v2324, 1
          %vm2341 = vcmp.eq.s32.totalorder %v2325, 1
          %vm2342 = vcmp.eq.s32.totalorder %v2326, 1
          %vm2343 = vcmp.eq.s32.totalorder %v2327, 1
          %vm2344 = vcmp.eq.s32.totalorder %v2328, 1
          %vm2345 = vcmp.eq.s32.totalorder %v2329, 1
          %vm2346 = vcmp.eq.s32.totalorder %v2330, 1
          %vm2347 = vcmp.eq.s32.totalorder %v2331, 1
          %vm2348 = vcmp.eq.s32.totalorder %v2332, 1
          %vm2349 = vcmp.eq.s32.totalorder %v2333, 1
          %vm2350 = vcmp.eq.s32.totalorder %v2334, 1
          %vm2351 = vcmp.eq.s32.totalorder %v2335, 1
          %vm2352 = vcmp.eq.s32.totalorder %v2336, 1
          %vm2353 = vcmp.eq.s32.totalorder %v2337, 1
          %vm2354 = vcmp.eq.s32.totalorder %v2338, 1
          %v2355 = vsel %vm2339, %v2261, 0.0
          %v2356 = vsel %vm2340, %v2264, 0.0
          %v2357 = vsel %vm2341, %v2269, 0.0
          %v2358 = vsel %vm2342, %v2272, 0.0
          %v2359 = vsel %vm2343, %v2277, 0.0
          %v2360 = vsel %vm2344, %v2280, 0.0
          %v2361 = vsel %vm2345, %v2285, 0.0
          %v2362 = vsel %vm2346, %v2288, 0.0
          %v2363 = vsel %vm2347, %v2293, 0.0
          %v2364 = vsel %vm2348, %v2296, 0.0
          %v2365 = vsel %vm2349, %v2301, 0.0
          %v2366 = vsel %vm2350, %v2304, 0.0
          %v2367 = vsel %vm2351, %v2309, 0.0
          %v2368 = vsel %vm2352, %v2312, 0.0
          %v2369 = vsel %vm2353, %v2317, 0.0
          %v2370 = vsel %vm2354, %v2320, 0.0
          %v2371 = vld [vmem:[#allocation4] sm:$0x1]
          %v2372 = vadd.f32 %v2355, %v2356
          %v2373 = vadd.f32 %v2372, %v2357
          %v2374 = vadd.f32 %v2373, %v2358
          %v2375 = vadd.f32 %v2374, %v2359
          %v2376 = vadd.f32 %v2375, %v2360
          %v2377 = vadd.f32 %v2376, %v2361
          %v2378 = vadd.f32 %v2377, %v2362
          %v2379 = vadd.f32 %v2378, %v2363
          %v2380 = vadd.f32 %v2379, %v2364
          %v2381 = vadd.f32 %v2380, %v2365
          %v2382 = vadd.f32 %v2381, %v2366
          %v2383 = vadd.f32 %v2382, %v2367
          %v2384 = vadd.f32 %v2383, %v2368
          %v2385 = vadd.f32 %v2384, %v2369
          %v2386 = vadd.f32 %v2385, %v2370
          %v2387 = vrot.slane %v2386, 4
          %v2388 = vadd.f32 %v2386, %v2387
          %v2389 = vrot.slane %v2388, 2
          %v2390 = vadd.f32 %v2388, %v2389
          %v2391 = vrot.slane %v2390, 1
          %v2392 = vadd.f32 %v2390, %v2391
          %v2393 = vadd.f32 %v2371, %v2392
          %2394 = vst [vmem:[#allocation4] sm:$0x1] %v2393
          %v2395 = vld [vmem:[#allocation5] sm:$0x1]
          %v2396 = vmul.f32 %v2355, %v2355
          %v2397 = vmul.f32 %v2356, %v2356
          %v2398 = vmul.f32 %v2357, %v2357
          %v2399 = vmul.f32 %v2358, %v2358
          %v2400 = vmul.f32 %v2359, %v2359
          %v2401 = vmul.f32 %v2360, %v2360
          %v2402 = vmul.f32 %v2361, %v2361
          %v2403 = vmul.f32 %v2362, %v2362
          %v2404 = vmul.f32 %v2363, %v2363
          %v2405 = vmul.f32 %v2364, %v2364
          %v2406 = vmul.f32 %v2365, %v2365
          %v2407 = vmul.f32 %v2366, %v2366
          %v2408 = vmul.f32 %v2367, %v2367
          %v2409 = vmul.f32 %v2368, %v2368
          %v2410 = vmul.f32 %v2369, %v2369
          %v2411 = vmul.f32 %v2370, %v2370
          %v2412 = vadd.f32 %v2396, %v2397
          %v2413 = vadd.f32 %v2412, %v2398
          %v2414 = vadd.f32 %v2413, %v2399
          %v2415 = vadd.f32 %v2414, %v2400
          %v2416 = vadd.f32 %v2415, %v2401
          %v2417 = vadd.f32 %v2416, %v2402
          %v2418 = vadd.f32 %v2417, %v2403
          %v2419 = vadd.f32 %v2418, %v2404
          %v2420 = vadd.f32 %v2419, %v2405
          %v2421 = vadd.f32 %v2420, %v2406
          %v2422 = vadd.f32 %v2421, %v2407
          %v2423 = vadd.f32 %v2422, %v2408
          %v2424 = vadd.f32 %v2423, %v2409
          %v2425 = vadd.f32 %v2424, %v2410
          %v2426 = vadd.f32 %v2425, %v2411
          %v2427 = vrot.slane %v2426, 4
          %v2428 = vadd.f32 %v2426, %v2427
          %v2429 = vrot.slane %v2428, 2
          %v2430 = vadd.f32 %v2428, %v2429
          %v2431 = vrot.slane %v2430, 1
          %v2432 = vadd.f32 %v2430, %v2431
          %v2433 = vadd.f32 %v2395, %v2432
          %2434 = vst [vmem:[#allocation5] sm:$0x1] %v2433
        $region96: #{tpu_custom_call.1} parent=75 // pred_fallthru
          _
        // Predicated region
        $region97: #{tpu_custom_call.1} parent=75 // pred_check
          %p2435 = pneg %p1498
        $region98: #{tpu_custom_call.1} parent=75 // pred_check_branch
          %2437 = sbr.rel (%p2435) target = $region100
        $region99: #{tpu_custom_call.1} parent=75 // pred_region
          %s2438 = smul.u32 %s35, 16
          %s2439 = smul.addr %s2438, 4
          %s2440 = scalar_lea.vmem [#allocation10], %s2439
          %v2441 = vld [vmem:[%s2440] sm:$0xf]
          %v2442 = vld [vmem:[%s2440 + $0x4] sm:$0xf]
          %v2443 = vld [vmem:[%s2440 + $0x8] sm:$0xf]
          %v2444 = vld [vmem:[%s2440 + $0xc] sm:$0xf]
          %v2445 = vld [vmem:[%s2440 + $0x10] sm:$0xf]
          %v2446 = vld [vmem:[%s2440 + $0x14] sm:$0xf]
          %v2447 = vld [vmem:[%s2440 + $0x18] sm:$0xf]
          %v2448 = vld [vmem:[%s2440 + $0x1c] sm:$0xf]
          %v2449 = vld [vmem:[%s2440 + $0x20] sm:$0xf]
          %v2450 = vld [vmem:[%s2440 + $0x24] sm:$0xf]
          %v2451 = vld [vmem:[%s2440 + $0x28] sm:$0xf]
          %v2452 = vld [vmem:[%s2440 + $0x2c] sm:$0xf]
          %v2453 = vld [vmem:[%s2440 + $0x30] sm:$0xf]
          %v2454 = vld [vmem:[%s2440 + $0x34] sm:$0xf]
          %v2455 = vld [vmem:[%s2440 + $0x38] sm:$0xf]
          %v2456 = vld [vmem:[%s2440 + $0x3c] sm:$0xf]
          %v2457 = vld [vmem:[#allocation6] sm:$0xff]
          %v2458 = vld [vmem:[#allocation6 + $0x8] sm:$0xff]
          %v2459 = vld [vmem:[#allocation6 + $0x10] sm:$0xff]
          %v2460 = vld [vmem:[#allocation6 + $0x18] sm:$0xff]
          %v2461 = vld [vmem:[#allocation6 + $0x20] sm:$0xff]
          %v2462 = vld [vmem:[#allocation6 + $0x28] sm:$0xff]
          %v2463 = vld [vmem:[#allocation6 + $0x30] sm:$0xff]
          %v2464 = vld [vmem:[#allocation6 + $0x38] sm:$0xff]
          %v2465 = vld [vmem:[#allocation7] sm:$0x3]
          %v2467 = vlaneseq
          %v2468 = vshrl.u32 %v2467, 7
          %v2469 = vsub.s32 0, %v2468
          %v2470 = vrot.slane %v2465, %v2469
          %v2471 = vlaneseq
          %v2472 = vshrl.u32 %v2471, 7
          %v2473 = vsub.s32 1, %v2472
          %v2474 = vrot.slane %v2465, %v2473
          %v2493 = vunpack.c.l.b16 %v2441
          %v2494 = vunpack.c.l.b16 %v2442
          %v2495 = vunpack.c.l.b16 %v2443
          %v2496 = vunpack.c.l.b16 %v2444
          %v2497 = vunpack.c.l.b16 %v2445
          %v2498 = vunpack.c.l.b16 %v2446
          %v2499 = vunpack.c.l.b16 %v2447
          %v2500 = vunpack.c.l.b16 %v2448
          %v2501 = vunpack.c.l.b16 %v2449
          %v2502 = vunpack.c.l.b16 %v2450
          %v2503 = vunpack.c.l.b16 %v2451
          %v2504 = vunpack.c.l.b16 %v2452
          %v2505 = vunpack.c.l.b16 %v2453
          %v2506 = vunpack.c.l.b16 %v2454
          %v2507 = vunpack.c.l.b16 %v2455
          %v2508 = vunpack.c.l.b16 %v2456
          %v2509 = vpack.c.b16 %v2494, %v2493
          %v2510 = vpack.c.b16 %v2496, %v2495
          %v2511 = vpack.c.b16 %v2498, %v2497
          %v2512 = vpack.c.b16 %v2500, %v2499
          %v2513 = vpack.c.b16 %v2502, %v2501
          %v2514 = vpack.c.b16 %v2504, %v2503
          %v2515 = vpack.c.b16 %v2506, %v2505
          %v2516 = vpack.c.b16 %v2508, %v2507
          %v2525 = vunpack.c.l.b16 %v2457
          %v2526 = vunpack.c.h.b16 %v2457
          %v2527 = vunpack.c.l.b16 %v2458
          %v2528 = vunpack.c.h.b16 %v2458
          %v2529 = vunpack.c.l.b16 %v2459
          %v2530 = vunpack.c.h.b16 %v2459
          %v2531 = vunpack.c.l.b16 %v2460
          %v2532 = vunpack.c.h.b16 %v2460
          %v2533 = vunpack.c.l.b16 %v2461
          %v2534 = vunpack.c.h.b16 %v2461
          %v2535 = vunpack.c.l.b16 %v2462
          %v2536 = vunpack.c.h.b16 %v2462
          %v2537 = vunpack.c.l.b16 %v2463
          %v2538 = vunpack.c.h.b16 %v2463
          %v2539 = vunpack.c.l.b16 %v2464
          %v2540 = vunpack.c.h.b16 %v2464
          %v2541 = vpack.c.b16 %v2527, %v2525
          %v2542 = vpack.c.b16 %v2528, %v2526
          %v2543 = vpack.c.b16 %v2531, %v2529
          %v2544 = vpack.c.b16 %v2532, %v2530
          %v2545 = vpack.c.b16 %v2535, %v2533
          %v2546 = vpack.c.b16 %v2536, %v2534
          %v2547 = vpack.c.b16 %v2539, %v2537
          %v2548 = vpack.c.b16 %v2540, %v2538
          %vm2557 = vcmask 523264
          %v2559 = vsel %vm2557, %v2509, 0
          %v2562 = vsel %vm2557, %v2510, 0
          %v2565 = vsel %vm2557, %v2511, 0
          %v2568 = vsel %vm2557, %v2512, 0
          %v2571 = vsel %vm2557, %v2513, 0
          %v2574 = vsel %vm2557, %v2514, 0
          %v2577 = vsel %vm2557, %v2515, 0
          %v2580 = vsel %vm2557, %v2516, 0
          %2582 = vmatprep.subr.bf16.mxu0 0
          %2583 = vmatpush1.bf16.msra.mxu0 0
          %2584 = vmatprep.subr.bf16.mxu0 0
          %2585 = vmatpush1.bf16.msra.mxu0 0
          %2586 = vmatprep.subr.bf16.mxu0 0
          %2587 = vmatpush1.bf16.msra.mxu0 0
          %2588 = vmatprep.subr.bf16.mxu0 0
          %2589 = vmatpush1.bf16.msra.mxu0 0
          %2590 = vmatprep.subr.bf16.mxu0 %v2548
          %2591 = vmatpush1.bf16.msra.mxu0 %v2547
          %2592 = vmatprep.subr.bf16.mxu0 %v2546
          %2593 = vmatpush1.bf16.msra.mxu0 %v2545
          %2594 = vmatprep.subr.bf16.mxu0 %v2544
          %2595 = vmatpush1.bf16.msra.mxu0 %v2543
          %2596 = vmatprep.subr.bf16.mxu0 %v2542
          %2597 = vmatpush1.bf16.msra.mxu0 %v2541
          %2598 = vmatprep.subr.bf16.mxu0 0
          %2599 = vmatpush2.bf16.msra.mxu0 0
          %2600 = vmatprep.subr.bf16.mxu0 0
          %2601 = vmatpush2.bf16.msra.mxu0 0
          %2602 = vmatprep.subr.bf16.mxu0 0
          %2603 = vmatpush2.bf16.msra.mxu0 0
          %2604 = vmatprep.subr.bf16.mxu0 0
          %2605 = vmatpush2.bf16.msra.mxu0 0
          %2606 = vmatprep.subr.bf16.mxu0 0
          %2607 = vmatpush2.bf16.msra.mxu0 0
          %2608 = vmatprep.subr.bf16.mxu0 0
          %2609 = vmatpush2.bf16.msra.mxu0 0
          %2610 = vmatprep.subr.bf16.mxu0 0
          %2611 = vmatpush2.bf16.msra.mxu0 0
          %2612 = vmatprep.subr.bf16.mxu0 0
          %2613 = vmatpush2.bf16.msra.mxu0 0
          %2614 = vmatprep.mubr.bf16.mxu0 0
          %2615 = vmatmul.mubr.bf16.gmra.mxu0 %v2559
          %v2616 = vpop.f32.mrf.mxu0
          %v2617 = vadd.f32 %v2470, %v2616
          %v2618 = vpop.f32.mrf.mxu0
          %v2619 = vadd.f32 %v2474, %v2618
          %v2620 = vpop.f32.mrf.mxu0
          %v2621 = vadd.f32 %v2470, %v2620
          %v2622 = vpop.f32.mrf.mxu0
          %v2623 = vadd.f32 %v2474, %v2622
          %2624 = vmatprep.mubr.bf16.mxu0 0
          %2625 = vmatmul.mubr.bf16.gmra.mxu0 %v2562
          %v2626 = vpop.f32.mrf.mxu0
          %v2627 = vadd.f32 %v2470, %v2626
          %v2628 = vpop.f32.mrf.mxu0
          %v2629 = vadd.f32 %v2474, %v2628
          %v2630 = vpop.f32.mrf.mxu0
          %v2631 = vadd.f32 %v2470, %v2630
          %v2632 = vpop.f32.mrf.mxu0
          %v2633 = vadd.f32 %v2474, %v2632
          %2634 = vmatprep.mubr.bf16.mxu0 0
          %2635 = vmatmul.mubr.bf16.gmra.mxu0 %v2565
          %v2636 = vpop.f32.mrf.mxu0
          %v2637 = vadd.f32 %v2470, %v2636
          %v2638 = vpop.f32.mrf.mxu0
          %v2639 = vadd.f32 %v2474, %v2638
          %v2640 = vpop.f32.mrf.mxu0
          %v2641 = vadd.f32 %v2470, %v2640
          %v2642 = vpop.f32.mrf.mxu0
          %v2643 = vadd.f32 %v2474, %v2642
          %2644 = vmatprep.mubr.bf16.mxu0 0
          %2645 = vmatmul.mubr.bf16.gmra.mxu0 %v2568
          %v2646 = vpop.f32.mrf.mxu0
          %v2647 = vadd.f32 %v2470, %v2646
          %v2648 = vpop.f32.mrf.mxu0
          %v2649 = vadd.f32 %v2474, %v2648
          %v2650 = vpop.f32.mrf.mxu0
          %v2651 = vadd.f32 %v2470, %v2650
          %v2652 = vpop.f32.mrf.mxu0
          %v2653 = vadd.f32 %v2474, %v2652
          %2654 = vmatprep.mubr.bf16.mxu0 0
          %2655 = vmatmul.mubr.bf16.gmra.mxu0 %v2571
          %v2656 = vpop.f32.mrf.mxu0
          %v2657 = vadd.f32 %v2470, %v2656
          %v2658 = vpop.f32.mrf.mxu0
          %v2659 = vadd.f32 %v2474, %v2658
          %v2660 = vpop.f32.mrf.mxu0
          %v2661 = vadd.f32 %v2470, %v2660
          %v2662 = vpop.f32.mrf.mxu0
          %v2663 = vadd.f32 %v2474, %v2662
          %2664 = vmatprep.mubr.bf16.mxu0 0
          %2665 = vmatmul.mubr.bf16.gmra.mxu0 %v2574
          %v2666 = vpop.f32.mrf.mxu0
          %v2667 = vadd.f32 %v2470, %v2666
          %v2668 = vpop.f32.mrf.mxu0
          %v2669 = vadd.f32 %v2474, %v2668
          %v2670 = vpop.f32.mrf.mxu0
          %v2671 = vadd.f32 %v2470, %v2670
          %v2672 = vpop.f32.mrf.mxu0
          %v2673 = vadd.f32 %v2474, %v2672
          %2674 = vmatprep.mubr.bf16.mxu0 0
          %2675 = vmatmul.mubr.bf16.gmra.mxu0 %v2577
          %v2676 = vpop.f32.mrf.mxu0
          %v2677 = vadd.f32 %v2470, %v2676
          %v2678 = vpop.f32.mrf.mxu0
          %v2679 = vadd.f32 %v2474, %v2678
          %v2680 = vpop.f32.mrf.mxu0
          %v2681 = vadd.f32 %v2470, %v2680
          %v2682 = vpop.f32.mrf.mxu0
          %v2683 = vadd.f32 %v2474, %v2682
          %2684 = vmatprep.mubr.bf16.mxu0 0
          %2685 = vmatmul.mubr.bf16.gmra.mxu0 %v2580
          %v2686 = vpop.f32.mrf.mxu0
          %v2687 = vadd.f32 %v2470, %v2686
          %v2688 = vpop.f32.mrf.mxu0
          %v2689 = vadd.f32 %v2474, %v2688
          %v2690 = vpop.f32.mrf.mxu0
          %v2691 = vadd.f32 %v2470, %v2690
          %v2692 = vpop.f32.mrf.mxu0
          %v2693 = vadd.f32 %v2474, %v2692
          %2694 = vdwg.mxu0
          %v2695 = vmax.f32 %v2617, 0.0
          %v2696 = vmax.f32 %v2619, 0.0
          %v2697 = vmax.f32 %v2621, 0.0
          %v2698 = vmax.f32 %v2623, 0.0
          %v2699 = vmax.f32 %v2627, 0.0
          %v2700 = vmax.f32 %v2629, 0.0
          %v2701 = vmax.f32 %v2631, 0.0
          %v2702 = vmax.f32 %v2633, 0.0
          %v2703 = vmax.f32 %v2637, 0.0
          %v2704 = vmax.f32 %v2639, 0.0
          %v2705 = vmax.f32 %v2641, 0.0
          %v2706 = vmax.f32 %v2643, 0.0
          %v2707 = vmax.f32 %v2647, 0.0
          %v2708 = vmax.f32 %v2649, 0.0
          %v2709 = vmax.f32 %v2651, 0.0
          %v2710 = vmax.f32 %v2653, 0.0
          %v2711 = vmax.f32 %v2657, 0.0
          %v2712 = vmax.f32 %v2659, 0.0
          %v2713 = vmax.f32 %v2661, 0.0
          %v2714 = vmax.f32 %v2663, 0.0
          %v2715 = vmax.f32 %v2667, 0.0
          %v2716 = vmax.f32 %v2669, 0.0
          %v2717 = vmax.f32 %v2671, 0.0
          %v2718 = vmax.f32 %v2673, 0.0
          %v2719 = vmax.f32 %v2677, 0.0
          %v2720 = vmax.f32 %v2679, 0.0
          %v2721 = vmax.f32 %v2681, 0.0
          %v2722 = vmax.f32 %v2683, 0.0
          %v2723 = vmax.f32 %v2687, 0.0
          %v2724 = vmax.f32 %v2689, 0.0
          %v2725 = vmax.f32 %v2691, 0.0
          %v2726 = vmax.f32 %v2693, 0.0
          %v2727 = vpack.c.bf16 %v2697, %v2695
          %v2728 = vpack.c.bf16 %v2698, %v2696
          %v2729 = vpack.c.bf16 %v2701, %v2699
          %v2730 = vpack.c.bf16 %v2702, %v2700
          %v2731 = vpack.c.bf16 %v2705, %v2703
          %v2732 = vpack.c.bf16 %v2706, %v2704
          %v2733 = vpack.c.bf16 %v2709, %v2707
          %v2734 = vpack.c.bf16 %v2710, %v2708
          %v2735 = vpack.c.bf16 %v2713, %v2711
          %v2736 = vpack.c.bf16 %v2714, %v2712
          %v2737 = vpack.c.bf16 %v2717, %v2715
          %v2738 = vpack.c.bf16 %v2718, %v2716
          %v2739 = vpack.c.bf16 %v2721, %v2719
          %v2740 = vpack.c.bf16 %v2722, %v2720
          %v2741 = vpack.c.bf16 %v2725, %v2723
          %v2742 = vpack.c.bf16 %v2726, %v2724
          %v2743 = vld [vmem:[#allocation8] sm:$0xf]
          %v2744 = vld [vmem:[#allocation8 + $0x4] sm:$0xf]
          %v2745 = vld [vmem:[#allocation8 + $0x8] sm:$0xf]
          %v2746 = vld [vmem:[#allocation8 + $0xc] sm:$0xf]
          %v2747 = vld [vmem:[#allocation8 + $0x10] sm:$0xf]
          %v2748 = vld [vmem:[#allocation8 + $0x14] sm:$0xf]
          %v2749 = vld [vmem:[#allocation8 + $0x18] sm:$0xf]
          %v2750 = vld [vmem:[#allocation8 + $0x1c] sm:$0xf]
          %v2751 = vld [vmem:[#allocation8 + $0x20] sm:$0xf]
          %v2752 = vld [vmem:[#allocation8 + $0x24] sm:$0xf]
          %v2753 = vld [vmem:[#allocation8 + $0x28] sm:$0xf]
          %v2754 = vld [vmem:[#allocation8 + $0x2c] sm:$0xf]
          %v2755 = vld [vmem:[#allocation8 + $0x30] sm:$0xf]
          %v2756 = vld [vmem:[#allocation8 + $0x34] sm:$0xf]
          %v2757 = vld [vmem:[#allocation8 + $0x38] sm:$0xf]
          %v2758 = vld [vmem:[#allocation8 + $0x3c] sm:$0xf]
          %v2759 = vld [vmem:[#allocation8 + $0x40] sm:$0xf]
          %v2760 = vld [vmem:[#allocation8 + $0x44] sm:$0xf]
          %v2761 = vld [vmem:[#allocation8 + $0x48] sm:$0xf]
          %v2762 = vld [vmem:[#allocation8 + $0x4c] sm:$0xf]
          %v2763 = vld [vmem:[#allocation8 + $0x50] sm:$0xf]
          %v2764 = vld [vmem:[#allocation8 + $0x54] sm:$0xf]
          %v2765 = vld [vmem:[#allocation8 + $0x58] sm:$0xf]
          %v2766 = vld [vmem:[#allocation8 + $0x5c] sm:$0xf]
          %v2767 = vld [vmem:[#allocation8 + $0x60] sm:$0xf]
          %v2768 = vld [vmem:[#allocation8 + $0x64] sm:$0xf]
          %v2769 = vld [vmem:[#allocation8 + $0x68] sm:$0xf]
          %v2770 = vld [vmem:[#allocation8 + $0x6c] sm:$0xf]
          %v2771 = vld [vmem:[#allocation8 + $0x70] sm:$0xf]
          %v2772 = vld [vmem:[#allocation8 + $0x74] sm:$0xf]
          %v2773 = vld [vmem:[#allocation8 + $0x78] sm:$0xf]
          %v2774 = vld [vmem:[#allocation8 + $0x7c] sm:$0xf]
          %v2775 = vld [vmem:[#allocation9] sm:$0x1]
          %v2777 = vlaneseq
          %v2778 = vshrl.u32 %v2777, 7
          %v2779 = vsub.s32 0, %v2778
          %v2780 = vrot.slane %v2775, %v2779
          %v2814 = vunpack.c.l.b16 %v2743
          %v2815 = vunpack.c.l.b16 %v2744
          %v2816 = vunpack.c.l.b16 %v2745
          %v2817 = vunpack.c.l.b16 %v2746
          %v2818 = vunpack.c.l.b16 %v2747
          %v2819 = vunpack.c.l.b16 %v2748
          %v2820 = vunpack.c.l.b16 %v2749
          %v2821 = vunpack.c.l.b16 %v2750
          %v2822 = vunpack.c.l.b16 %v2751
          %v2823 = vunpack.c.l.b16 %v2752
          %v2824 = vunpack.c.l.b16 %v2753
          %v2825 = vunpack.c.l.b16 %v2754
          %v2826 = vunpack.c.l.b16 %v2755
          %v2827 = vunpack.c.l.b16 %v2756
          %v2828 = vunpack.c.l.b16 %v2757
          %v2829 = vunpack.c.l.b16 %v2758
          %v2830 = vunpack.c.l.b16 %v2759
          %v2831 = vunpack.c.l.b16 %v2760
          %v2832 = vunpack.c.l.b16 %v2761
          %v2833 = vunpack.c.l.b16 %v2762
          %v2834 = vunpack.c.l.b16 %v2763
          %v2835 = vunpack.c.l.b16 %v2764
          %v2836 = vunpack.c.l.b16 %v2765
          %v2837 = vunpack.c.l.b16 %v2766
          %v2838 = vunpack.c.l.b16 %v2767
          %v2839 = vunpack.c.l.b16 %v2768
          %v2840 = vunpack.c.l.b16 %v2769
          %v2841 = vunpack.c.l.b16 %v2770
          %v2842 = vunpack.c.l.b16 %v2771
          %v2843 = vunpack.c.l.b16 %v2772
          %v2844 = vunpack.c.l.b16 %v2773
          %v2845 = vunpack.c.l.b16 %v2774
          %v2846 = vpack.c.b16 %v2815, %v2814
          %v2847 = vpack.c.b16 %v2817, %v2816
          %v2848 = vpack.c.b16 %v2819, %v2818
          %v2849 = vpack.c.b16 %v2821, %v2820
          %v2850 = vpack.c.b16 %v2823, %v2822
          %v2851 = vpack.c.b16 %v2825, %v2824
          %v2852 = vpack.c.b16 %v2827, %v2826
          %v2853 = vpack.c.b16 %v2829, %v2828
          %v2854 = vpack.c.b16 %v2831, %v2830
          %v2855 = vpack.c.b16 %v2833, %v2832
          %v2856 = vpack.c.b16 %v2835, %v2834
          %v2857 = vpack.c.b16 %v2837, %v2836
          %v2858 = vpack.c.b16 %v2839, %v2838
          %v2859 = vpack.c.b16 %v2841, %v2840
          %v2860 = vpack.c.b16 %v2843, %v2842
          %v2861 = vpack.c.b16 %v2845, %v2844
          %2878 = vmatprep.subr.bf16.mxu0 0
          %2879 = vmatpush1.bf16.msra.mxu0 %v2853
          %2880 = vmatprep.subr.bf16.mxu0 0
          %2881 = vmatpush1.bf16.msra.mxu0 %v2852
          %2882 = vmatprep.subr.bf16.mxu0 0
          %2883 = vmatpush1.bf16.msra.mxu0 %v2851
          %2884 = vmatprep.subr.bf16.mxu0 0
          %2885 = vmatpush1.bf16.msra.mxu0 %v2850
          %2886 = vmatprep.subr.bf16.mxu0 0
          %2887 = vmatpush1.bf16.msra.mxu0 %v2849
          %2888 = vmatprep.subr.bf16.mxu0 0
          %2889 = vmatpush1.bf16.msra.mxu0 %v2848
          %2890 = vmatprep.subr.bf16.mxu0 0
          %2891 = vmatpush1.bf16.msra.mxu0 %v2847
          %2892 = vmatprep.subr.bf16.mxu0 0
          %2893 = vmatpush1.bf16.msra.mxu0 %v2846
          %2894 = vmatprep.subr.bf16.mxu0 0
          %2895 = vmatpush2.bf16.msra.mxu0 %v2861
          %2896 = vmatprep.subr.bf16.mxu0 0
          %2897 = vmatpush2.bf16.msra.mxu0 %v2860
          %2898 = vmatprep.subr.bf16.mxu0 0
          %2899 = vmatpush2.bf16.msra.mxu0 %v2859
          %2900 = vmatprep.subr.bf16.mxu0 0
          %2901 = vmatpush2.bf16.msra.mxu0 %v2858
          %2902 = vmatprep.subr.bf16.mxu0 0
          %2903 = vmatpush2.bf16.msra.mxu0 %v2857
          %2904 = vmatprep.subr.bf16.mxu0 0
          %2905 = vmatpush2.bf16.msra.mxu0 %v2856
          %2906 = vmatprep.subr.bf16.mxu0 0
          %2907 = vmatpush2.bf16.msra.mxu0 %v2855
          %2908 = vmatprep.subr.bf16.mxu0 0
          %2909 = vmatpush2.bf16.msra.mxu0 %v2854
          %2910 = vmatprep.mubr.bf16.mxu0 %v2728
          %2911 = vmatmul.mubr.bf16.gmra.mxu0 %v2727
          %v2912 = vpop.f32.mrf.mxu0
          %v2913 = vadd.f32 %v2780, %v2912
          %v2914 = vpop.f32.mrf.mxu0
          %v2915 = vpop.f32.mrf.mxu0
          %v2916 = vadd.f32 %v2780, %v2915
          %v2917 = vpop.f32.mrf.mxu0
          %2918 = vmatprep.mubr.bf16.mxu0 %v2730
          %2919 = vmatmul.mubr.bf16.gmra.mxu0 %v2729
          %v2920 = vpop.f32.mrf.mxu0
          %v2921 = vadd.f32 %v2780, %v2920
          %v2922 = vpop.f32.mrf.mxu0
          %v2923 = vpop.f32.mrf.mxu0
          %v2924 = vadd.f32 %v2780, %v2923
          %v2925 = vpop.f32.mrf.mxu0
          %2926 = vmatprep.mubr.bf16.mxu0 %v2732
          %2927 = vmatmul.mubr.bf16.gmra.mxu0 %v2731
          %v2928 = vpop.f32.mrf.mxu0
          %v2929 = vadd.f32 %v2780, %v2928
          %v2930 = vpop.f32.mrf.mxu0
          %v2931 = vpop.f32.mrf.mxu0
          %v2932 = vadd.f32 %v2780, %v2931
          %v2933 = vpop.f32.mrf.mxu0
          %2934 = vmatprep.mubr.bf16.mxu0 %v2734
          %2935 = vmatmul.mubr.bf16.gmra.mxu0 %v2733
          %v2936 = vpop.f32.mrf.mxu0
          %v2937 = vadd.f32 %v2780, %v2936
          %v2938 = vpop.f32.mrf.mxu0
          %v2939 = vpop.f32.mrf.mxu0
          %v2940 = vadd.f32 %v2780, %v2939
          %v2941 = vpop.f32.mrf.mxu0
          %2942 = vmatprep.mubr.bf16.mxu0 %v2736
          %2943 = vmatmul.mubr.bf16.gmra.mxu0 %v2735
          %v2944 = vpop.f32.mrf.mxu0
          %v2945 = vadd.f32 %v2780, %v2944
          %v2946 = vpop.f32.mrf.mxu0
          %v2947 = vpop.f32.mrf.mxu0
          %v2948 = vadd.f32 %v2780, %v2947
          %v2949 = vpop.f32.mrf.mxu0
          %2950 = vmatprep.mubr.bf16.mxu0 %v2738
          %2951 = vmatmul.mubr.bf16.gmra.mxu0 %v2737
          %v2952 = vpop.f32.mrf.mxu0
          %v2953 = vadd.f32 %v2780, %v2952
          %v2954 = vpop.f32.mrf.mxu0
          %v2955 = vpop.f32.mrf.mxu0
          %v2956 = vadd.f32 %v2780, %v2955
          %v2957 = vpop.f32.mrf.mxu0
          %2958 = vmatprep.mubr.bf16.mxu0 %v2740
          %2959 = vmatmul.mubr.bf16.gmra.mxu0 %v2739
          %v2960 = vpop.f32.mrf.mxu0
          %v2961 = vadd.f32 %v2780, %v2960
          %v2962 = vpop.f32.mrf.mxu0
          %v2963 = vpop.f32.mrf.mxu0
          %v2964 = vadd.f32 %v2780, %v2963
          %v2965 = vpop.f32.mrf.mxu0
          %2966 = vmatprep.mubr.bf16.mxu0 %v2742
          %2967 = vmatmul.mubr.bf16.gmra.mxu0 %v2741
          %v2968 = vpop.f32.mrf.mxu0
          %v2969 = vadd.f32 %v2780, %v2968
          %v2970 = vpop.f32.mrf.mxu0
          %v2971 = vpop.f32.mrf.mxu0
          %v2972 = vadd.f32 %v2780, %v2971
          %v2973 = vpop.f32.mrf.mxu0
          %2974 = vdwg.mxu0
          %v2975 = vmax.f32 %v2913, 0.0
          %v2976 = vmax.f32 %v2916, 0.0
          %v2977 = vmax.f32 %v2921, 0.0
          %v2978 = vmax.f32 %v2924, 0.0
          %v2979 = vmax.f32 %v2929, 0.0
          %v2980 = vmax.f32 %v2932, 0.0
          %v2981 = vmax.f32 %v2937, 0.0
          %v2982 = vmax.f32 %v2940, 0.0
          %v2983 = vmax.f32 %v2945, 0.0
          %v2984 = vmax.f32 %v2948, 0.0
          %v2985 = vmax.f32 %v2953, 0.0
          %v2986 = vmax.f32 %v2956, 0.0
          %v2987 = vmax.f32 %v2961, 0.0
          %v2988 = vmax.f32 %v2964, 0.0
          %v2989 = vmax.f32 %v2969, 0.0
          %v2990 = vmax.f32 %v2972, 0.0
          %v2991 = vpack.c.bf16 %v2976, %v2975
          %v2992 = vpack.c.bf16 %v2978, %v2977
          %v2993 = vpack.c.bf16 %v2980, %v2979
          %v2994 = vpack.c.bf16 %v2982, %v2981
          %v2995 = vpack.c.bf16 %v2984, %v2983
          %v2996 = vpack.c.bf16 %v2986, %v2985
          %v2997 = vpack.c.bf16 %v2988, %v2987
          %v2998 = vpack.c.bf16 %v2990, %v2989
          %v2999 = vld [vmem:[%s10] sm:$0xf]
          %v3000 = vld [vmem:[%s10 + $0x4] sm:$0xf]
          %v3001 = vld [vmem:[%s10 + $0x8] sm:$0xf]
          %v3002 = vld [vmem:[%s10 + $0xc] sm:$0xf]
          %v3003 = vld [vmem:[%s10 + $0x10] sm:$0xf]
          %v3004 = vld [vmem:[%s10 + $0x14] sm:$0xf]
          %v3005 = vld [vmem:[%s10 + $0x18] sm:$0xf]
          %v3006 = vld [vmem:[%s10 + $0x1c] sm:$0xf]
          %v3007 = vld [vmem:[%s10 + $0x20] sm:$0xf]
          %v3008 = vld [vmem:[%s10 + $0x24] sm:$0xf]
          %v3009 = vld [vmem:[%s10 + $0x28] sm:$0xf]
          %v3010 = vld [vmem:[%s10 + $0x2c] sm:$0xf]
          %v3011 = vld [vmem:[%s10 + $0x30] sm:$0xf]
          %v3012 = vld [vmem:[%s10 + $0x34] sm:$0xf]
          %v3013 = vld [vmem:[%s10 + $0x38] sm:$0xf]
          %v3014 = vld [vmem:[%s10 + $0x3c] sm:$0xf]
          %v3015 = vld [vmem:[%s11] sm:$0x1]
          %v3017 = vlaneseq
          %v3018 = vshrl.u32 %v3017, 7
          %v3019 = vsub.s32 0, %v3018
          %v3020 = vrot.slane %v3015, %v3019
          %v3038 = vunpack.c.l.b16 %v2999
          %v3039 = vunpack.c.l.b16 %v3000
          %v3040 = vunpack.c.l.b16 %v3001
          %v3041 = vunpack.c.l.b16 %v3002
          %v3042 = vunpack.c.l.b16 %v3003
          %v3043 = vunpack.c.l.b16 %v3004
          %v3044 = vunpack.c.l.b16 %v3005
          %v3045 = vunpack.c.l.b16 %v3006
          %v3046 = vunpack.c.l.b16 %v3007
          %v3047 = vunpack.c.l.b16 %v3008
          %v3048 = vunpack.c.l.b16 %v3009
          %v3049 = vunpack.c.l.b16 %v3010
          %v3050 = vunpack.c.l.b16 %v3011
          %v3051 = vunpack.c.l.b16 %v3012
          %v3052 = vunpack.c.l.b16 %v3013
          %v3053 = vunpack.c.l.b16 %v3014
          %v3054 = vpack.c.b16 %v3039, %v3038
          %v3055 = vpack.c.b16 %v3041, %v3040
          %v3056 = vpack.c.b16 %v3043, %v3042
          %v3057 = vpack.c.b16 %v3045, %v3044
          %v3058 = vpack.c.b16 %v3047, %v3046
          %v3059 = vpack.c.b16 %v3049, %v3048
          %v3060 = vpack.c.b16 %v3051, %v3050
          %v3061 = vpack.c.b16 %v3053, %v3052
          %3070 = vmatprep.subr.bf16.mxu0 0
          %3071 = vmatpush1.bf16.msra.mxu0 %v3061
          %3072 = vmatprep.subr.bf16.mxu0 0
          %3073 = vmatpush1.bf16.msra.mxu0 %v3060
          %3074 = vmatprep.subr.bf16.mxu0 0
          %3075 = vmatpush1.bf16.msra.mxu0 %v3059
          %3076 = vmatprep.subr.bf16.mxu0 0
          %3077 = vmatpush1.bf16.msra.mxu0 %v3058
          %3078 = vmatprep.subr.bf16.mxu0 0
          %3079 = vmatpush1.bf16.msra.mxu0 %v3057
          %3080 = vmatprep.subr.bf16.mxu0 0
          %3081 = vmatpush1.bf16.msra.mxu0 %v3056
          %3082 = vmatprep.subr.bf16.mxu0 0
          %3083 = vmatpush1.bf16.msra.mxu0 %v3055
          %3084 = vmatprep.subr.bf16.mxu0 0
          %3085 = vmatpush1.bf16.msra.mxu0 %v3054
          %3086 = vmatprep.subr.bf16.mxu0 0
          %3087 = vmatpush2.bf16.msra.mxu0 0
          %3088 = vmatprep.subr.bf16.mxu0 0
          %3089 = vmatpush2.bf16.msra.mxu0 0
          %3090 = vmatprep.subr.bf16.mxu0 0
          %3091 = vmatpush2.bf16.msra.mxu0 0
          %3092 = vmatprep.subr.bf16.mxu0 0
          %3093 = vmatpush2.bf16.msra.mxu0 0
          %3094 = vmatprep.subr.bf16.mxu0 0
          %3095 = vmatpush2.bf16.msra.mxu0 0
          %3096 = vmatprep.subr.bf16.mxu0 0
          %3097 = vmatpush2.bf16.msra.mxu0 0
          %3098 = vmatprep.subr.bf16.mxu0 0
          %3099 = vmatpush2.bf16.msra.mxu0 0
          %3100 = vmatprep.subr.bf16.mxu0 0
          %3101 = vmatpush2.bf16.msra.mxu0 0
          %3102 = vmatprep.mubr.bf16.mxu0 0
          %3103 = vmatmul.mubr.bf16.gmra.mxu0 %v2991
          %v3104 = vpop.f32.mrf.mxu0
          %v3105 = vadd.f32 %v3020, %v3104
          %v3106 = vpop.f32.mrf.mxu0
          %v3107 = vpop.f32.mrf.mxu0
          %v3108 = vadd.f32 %v3020, %v3107
          %v3109 = vpop.f32.mrf.mxu0
          %3110 = vmatprep.mubr.bf16.mxu0 0
          %3111 = vmatmul.mubr.bf16.gmra.mxu0 %v2992
          %v3112 = vpop.f32.mrf.mxu0
          %v3113 = vadd.f32 %v3020, %v3112
          %v3114 = vpop.f32.mrf.mxu0
          %v3115 = vpop.f32.mrf.mxu0
          %v3116 = vadd.f32 %v3020, %v3115
          %v3117 = vpop.f32.mrf.mxu0
          %3118 = vmatprep.mubr.bf16.mxu0 0
          %3119 = vmatmul.mubr.bf16.gmra.mxu0 %v2993
          %v3120 = vpop.f32.mrf.mxu0
          %v3121 = vadd.f32 %v3020, %v3120
          %v3122 = vpop.f32.mrf.mxu0
          %v3123 = vpop.f32.mrf.mxu0
          %v3124 = vadd.f32 %v3020, %v3123
          %v3125 = vpop.f32.mrf.mxu0
          %3126 = vmatprep.mubr.bf16.mxu0 0
          %3127 = vmatmul.mubr.bf16.gmra.mxu0 %v2994
          %v3128 = vpop.f32.mrf.mxu0
          %v3129 = vadd.f32 %v3020, %v3128
          %v3130 = vpop.f32.mrf.mxu0
          %v3131 = vpop.f32.mrf.mxu0
          %v3132 = vadd.f32 %v3020, %v3131
          %v3133 = vpop.f32.mrf.mxu0
          %3134 = vmatprep.mubr.bf16.mxu0 0
          %3135 = vmatmul.mubr.bf16.gmra.mxu0 %v2995
          %v3136 = vpop.f32.mrf.mxu0
          %v3137 = vadd.f32 %v3020, %v3136
          %v3138 = vpop.f32.mrf.mxu0
          %v3139 = vpop.f32.mrf.mxu0
          %v3140 = vadd.f32 %v3020, %v3139
          %v3141 = vpop.f32.mrf.mxu0
          %3142 = vmatprep.mubr.bf16.mxu0 0
          %3143 = vmatmul.mubr.bf16.gmra.mxu0 %v2996
          %v3144 = vpop.f32.mrf.mxu0
          %v3145 = vadd.f32 %v3020, %v3144
          %v3146 = vpop.f32.mrf.mxu0
          %v3147 = vpop.f32.mrf.mxu0
          %v3148 = vadd.f32 %v3020, %v3147
          %v3149 = vpop.f32.mrf.mxu0
          %3150 = vmatprep.mubr.bf16.mxu0 0
          %3151 = vmatmul.mubr.bf16.gmra.mxu0 %v2997
          %v3152 = vpop.f32.mrf.mxu0
          %v3153 = vadd.f32 %v3020, %v3152
          %v3154 = vpop.f32.mrf.mxu0
          %v3155 = vpop.f32.mrf.mxu0
          %v3156 = vadd.f32 %v3020, %v3155
          %v3157 = vpop.f32.mrf.mxu0
          %3158 = vmatprep.mubr.bf16.mxu0 0
          %3159 = vmatmul.mubr.bf16.gmra.mxu0 %v2998
          %v3160 = vpop.f32.mrf.mxu0
          %v3161 = vadd.f32 %v3020, %v3160
          %v3162 = vpop.f32.mrf.mxu0
          %v3163 = vpop.f32.mrf.mxu0
          %v3164 = vadd.f32 %v3020, %v3163
          %v3165 = vpop.f32.mrf.mxu0
          %3166 = vdwg.mxu0
          %v3167 = vmax.f32 %v3105, 0.0
          %v3168 = vmax.f32 %v3108, 0.0
          %v3169 = vmax.f32 %v3113, 0.0
          %v3170 = vmax.f32 %v3116, 0.0
          %v3171 = vmax.f32 %v3121, 0.0
          %v3172 = vmax.f32 %v3124, 0.0
          %v3173 = vmax.f32 %v3129, 0.0
          %v3174 = vmax.f32 %v3132, 0.0
          %v3175 = vmax.f32 %v3137, 0.0
          %v3176 = vmax.f32 %v3140, 0.0
          %v3177 = vmax.f32 %v3145, 0.0
          %v3178 = vmax.f32 %v3148, 0.0
          %v3179 = vmax.f32 %v3153, 0.0
          %v3180 = vmax.f32 %v3156, 0.0
          %v3181 = vmax.f32 %v3161, 0.0
          %v3182 = vmax.f32 %v3164, 0.0
          %v3183 = vld [vmem:[%s12] sm:$0x1]
          %v3185 = vlaneseq
          %v3186 = vshrl.u32 %v3185, 7
          %v3187 = vsub.s32 0, %v3186
          %v3188 = vrot.slane %v3183, %v3187
          %v3190 = vmul.f32 %v3167, %v3188
          %v3191 = vmul.f32 %v3168, %v3188
          %v3192 = vmul.f32 %v3169, %v3188
          %v3193 = vmul.f32 %v3170, %v3188
          %v3194 = vmul.f32 %v3171, %v3188
          %v3195 = vmul.f32 %v3172, %v3188
          %v3196 = vmul.f32 %v3173, %v3188
          %v3197 = vmul.f32 %v3174, %v3188
          %v3198 = vmul.f32 %v3175, %v3188
          %v3199 = vmul.f32 %v3176, %v3188
          %v3200 = vmul.f32 %v3177, %v3188
          %v3201 = vmul.f32 %v3178, %v3188
          %v3202 = vmul.f32 %v3179, %v3188
          %v3203 = vmul.f32 %v3180, %v3188
          %v3204 = vmul.f32 %v3181, %v3188
          %v3205 = vmul.f32 %v3182, %v3188
          %v3206 = vsel %vm2557, %v3190, 0.0
          %3207 = vadd.xlane.f32.xlu0 %v3206
          %v3208 = vpop.xlane.xlu0 %3207
          %v3209 = vsel %vm2557, %v3191, 0.0
          %3210 = vadd.xlane.f32.xlu0 %v3209
          %v3211 = vpop.xlane.xlu0 %3210
          %v3212 = vsel %vm2557, %v3192, 0.0
          %3213 = vadd.xlane.f32.xlu0 %v3212
          %v3214 = vpop.xlane.xlu0 %3213
          %v3215 = vsel %vm2557, %v3193, 0.0
          %3216 = vadd.xlane.f32.xlu0 %v3215
          %v3217 = vpop.xlane.xlu0 %3216
          %v3218 = vsel %vm2557, %v3194, 0.0
          %3219 = vadd.xlane.f32.xlu0 %v3218
          %v3220 = vpop.xlane.xlu0 %3219
          %v3221 = vsel %vm2557, %v3195, 0.0
          %3222 = vadd.xlane.f32.xlu0 %v3221
          %v3223 = vpop.xlane.xlu0 %3222
          %v3224 = vsel %vm2557, %v3196, 0.0
          %3225 = vadd.xlane.f32.xlu0 %v3224
          %v3226 = vpop.xlane.xlu0 %3225
          %v3227 = vsel %vm2557, %v3197, 0.0
          %3228 = vadd.xlane.f32.xlu0 %v3227
          %v3229 = vpop.xlane.xlu0 %3228
          %v3230 = vsel %vm2557, %v3198, 0.0
          %3231 = vadd.xlane.f32.xlu0 %v3230
          %v3232 = vpop.xlane.xlu0 %3231
          %v3233 = vsel %vm2557, %v3199, 0.0
          %3234 = vadd.xlane.f32.xlu0 %v3233
          %v3235 = vpop.xlane.xlu0 %3234
          %v3236 = vsel %vm2557, %v3200, 0.0
          %3237 = vadd.xlane.f32.xlu0 %v3236
          %v3238 = vpop.xlane.xlu0 %3237
          %v3239 = vsel %vm2557, %v3201, 0.0
          %3240 = vadd.xlane.f32.xlu0 %v3239
          %v3241 = vpop.xlane.xlu0 %3240
          %v3242 = vsel %vm2557, %v3202, 0.0
          %3243 = vadd.xlane.f32.xlu0 %v3242
          %v3244 = vpop.xlane.xlu0 %3243
          %v3245 = vsel %vm2557, %v3203, 0.0
          %3246 = vadd.xlane.f32.xlu0 %v3245
          %v3247 = vpop.xlane.xlu0 %3246
          %v3248 = vsel %vm2557, %v3204, 0.0
          %3249 = vadd.xlane.f32.xlu0 %v3248
          %v3250 = vpop.xlane.xlu0 %3249
          %v3251 = vsel %vm2557, %v3205, 0.0
          %3252 = vadd.xlane.f32.xlu0 %v3251
          %v3253 = vpop.xlane.xlu0 %3252
          %v3254 = vld [vmem:[#allocation11] sm:$0x1]
          %v3256 = vlaneseq
          %v3257 = vshrl.u32 %v3256, 7
          %v3258 = vsub.s32 0, %v3257
          %v3259 = vrot.slane %v3254, %v3258
          %v3261 = vadd.f32 %v3208, %v3259
          %v3262 = vadd.f32 %v3211, %v3259
          %v3263 = vadd.f32 %v3214, %v3259
          %v3264 = vadd.f32 %v3217, %v3259
          %v3265 = vadd.f32 %v3220, %v3259
          %v3266 = vadd.f32 %v3223, %v3259
          %v3267 = vadd.f32 %v3226, %v3259
          %v3268 = vadd.f32 %v3229, %v3259
          %v3269 = vadd.f32 %v3232, %v3259
          %v3270 = vadd.f32 %v3235, %v3259
          %v3271 = vadd.f32 %v3238, %v3259
          %v3272 = vadd.f32 %v3241, %v3259
          %v3273 = vadd.f32 %v3244, %v3259
          %v3274 = vadd.f32 %v3247, %v3259
          %v3275 = vadd.f32 %v3250, %v3259
          %v3276 = vadd.f32 %v3253, %v3259
          %v3277 = vxor.u32 %v3261, 2147483648
          %v3278 = vxor.u32 %v3262, 2147483648
          %v3279 = vxor.u32 %v3263, 2147483648
          %v3280 = vxor.u32 %v3264, 2147483648
          %v3281 = vxor.u32 %v3265, 2147483648
          %v3282 = vxor.u32 %v3266, 2147483648
          %v3283 = vxor.u32 %v3267, 2147483648
          %v3284 = vxor.u32 %v3268, 2147483648
          %v3285 = vxor.u32 %v3269, 2147483648
          %v3286 = vxor.u32 %v3270, 2147483648
          %v3287 = vxor.u32 %v3271, 2147483648
          %v3288 = vxor.u32 %v3272, 2147483648
          %v3289 = vxor.u32 %v3273, 2147483648
          %v3290 = vxor.u32 %v3274, 2147483648
          %v3291 = vxor.u32 %v3275, 2147483648
          %v3292 = vxor.u32 %v3276, 2147483648
          %v3293 = vmul.f32 %v3277, 1.442695
          %v3294 = vpow.pop %v3293
          %v3295 = vmul.f32 %v3278, 1.442695
          %v3296 = vpow.pop %v3295
          %v3297 = vmul.f32 %v3279, 1.442695
          %v3298 = vpow.pop %v3297
          %v3299 = vmul.f32 %v3280, 1.442695
          %v3300 = vpow.pop %v3299
          %v3301 = vmul.f32 %v3281, 1.442695
          %v3302 = vpow.pop %v3301
          %v3303 = vmul.f32 %v3282, 1.442695
          %v3304 = vpow.pop %v3303
          %v3305 = vmul.f32 %v3283, 1.442695
          %v3306 = vpow.pop %v3305
          %v3307 = vmul.f32 %v3284, 1.442695
          %v3308 = vpow.pop %v3307
          %v3309 = vmul.f32 %v3285, 1.442695
          %v3310 = vpow.pop %v3309
          %v3311 = vmul.f32 %v3286, 1.442695
          %v3312 = vpow.pop %v3311
          %v3313 = vmul.f32 %v3287, 1.442695
          %v3314 = vpow.pop %v3313
          %v3315 = vmul.f32 %v3288, 1.442695
          %v3316 = vpow.pop %v3315
          %v3317 = vmul.f32 %v3289, 1.442695
          %v3318 = vpow.pop %v3317
          %v3319 = vmul.f32 %v3290, 1.442695
          %v3320 = vpow.pop %v3319
          %v3321 = vmul.f32 %v3291, 1.442695
          %v3322 = vpow.pop %v3321
          %v3323 = vmul.f32 %v3292, 1.442695
          %v3324 = vpow.pop %v3323
          %v3325 = vadd.f32 %v3294, 1.0
          %v3326 = vadd.f32 %v3296, 1.0
          %v3327 = vadd.f32 %v3298, 1.0
          %v3328 = vadd.f32 %v3300, 1.0
          %v3329 = vadd.f32 %v3302, 1.0
          %v3330 = vadd.f32 %v3304, 1.0
          %v3331 = vadd.f32 %v3306, 1.0
          %v3332 = vadd.f32 %v3308, 1.0
          %v3333 = vadd.f32 %v3310, 1.0
          %v3334 = vadd.f32 %v3312, 1.0
          %v3335 = vadd.f32 %v3314, 1.0
          %v3336 = vadd.f32 %v3316, 1.0
          %v3337 = vadd.f32 %v3318, 1.0
          %v3338 = vadd.f32 %v3320, 1.0
          %v3339 = vadd.f32 %v3322, 1.0
          %v3340 = vadd.f32 %v3324, 1.0
          %v3341 = vrcp.pop %v3325
          %v3342 = vmul.f32 1.0, %v3341
          %v3343 = vrcp.pop %v3326
          %v3344 = vmul.f32 1.0, %v3343
          %v3345 = vrcp.pop %v3327
          %v3346 = vmul.f32 1.0, %v3345
          %v3347 = vrcp.pop %v3328
          %v3348 = vmul.f32 1.0, %v3347
          %v3349 = vrcp.pop %v3329
          %v3350 = vmul.f32 1.0, %v3349
          %v3351 = vrcp.pop %v3330
          %v3352 = vmul.f32 1.0, %v3351
          %v3353 = vrcp.pop %v3331
          %v3354 = vmul.f32 1.0, %v3353
          %v3355 = vrcp.pop %v3332
          %v3356 = vmul.f32 1.0, %v3355
          %v3357 = vrcp.pop %v3333
          %v3358 = vmul.f32 1.0, %v3357
          %v3359 = vrcp.pop %v3334
          %v3360 = vmul.f32 1.0, %v3359
          %v3361 = vrcp.pop %v3335
          %v3362 = vmul.f32 1.0, %v3361
          %v3363 = vrcp.pop %v3336
          %v3364 = vmul.f32 1.0, %v3363
          %v3365 = vrcp.pop %v3337
          %v3366 = vmul.f32 1.0, %v3365
          %v3367 = vrcp.pop %v3338
          %v3368 = vmul.f32 1.0, %v3367
          %v3369 = vrcp.pop %v3339
          %v3370 = vmul.f32 1.0, %v3369
          %v3371 = vrcp.pop %v3340
          %v3372 = vmul.f32 1.0, %v3371
          %3373 = vxpose.xlu0.b32.start [1/16] %v3342, 128
          %3374 = vxpose.xlu0.b32.cont [2/16] %v3344, 128
          %3375 = vxpose.xlu0.b32.cont [3/16] %v3346, 128
          %3376 = vxpose.xlu0.b32.cont [4/16] %v3348, 128
          %3377 = vxpose.xlu0.b32.cont [5/16] %v3350, 128
          %3378 = vxpose.xlu0.b32.cont [6/16] %v3352, 128
          %3379 = vxpose.xlu0.b32.cont [7/16] %v3354, 128
          %3380 = vxpose.xlu0.b32.cont [8/16] %v3356, 128
          %3381 = vxpose.xlu0.b32.cont [9/16] %v3358, 128
          %3382 = vxpose.xlu0.b32.cont [10/16] %v3360, 128
          %3383 = vxpose.xlu0.b32.cont [11/16] %v3362, 128
          %3384 = vxpose.xlu0.b32.cont [12/16] %v3364, 128
          %3385 = vxpose.xlu0.b32.cont [13/16] %v3366, 128
          %3386 = vxpose.xlu0.b32.cont [14/16] %v3368, 128
          %3387 = vxpose.xlu0.b32.cont [15/16] %v3370, 128
          %3388 = vxpose.xlu0.b32.end [16/16] %v3372, 128
          %v3389 = vpop.trf.xlu0
          %v3390 = vpop.trf.xlu0
          %v3391 = vpop.trf.xlu0
          %v3392 = vpop.trf.xlu0
          %v3393 = vpop.trf.xlu0
          %v3394 = vpop.trf.xlu0
          %v3395 = vpop.trf.xlu0
          %v3396 = vpop.trf.xlu0
          %v3397 = vpop.trf.xlu0
          %v3398 = vpop.trf.xlu0
          %v3399 = vpop.trf.xlu0
          %v3400 = vpop.trf.xlu0
          %v3401 = vpop.trf.xlu0
          %v3402 = vpop.trf.xlu0
          %v3403 = vpop.trf.xlu0
          %v3404 = vpop.trf.xlu0
          %3405 = vst [vmem:[%s478] sm:$0x1] %v3389
        $region100: #{tpu_custom_call.1} parent=75 // pred_fallthru
          _
        %s3406 = sand.u32 %s353, 1
        %s3407 = scalar_lea.sflag [#allocation13], %s3406
        %s3408 = sand.u32 %s353, 1
        %s3409 = scalar_lea.vmem [#allocation12], %s3408
        // Predicated region
        $region101: #{tpu_custom_call.1} parent=75 // pred_check
          %p3410 = pneg %p363
        $region102: #{tpu_custom_call.1} parent=75 // pred_check_branch
          %3412 = sbr.rel (%p3410) target = $region104
        $region103: #{tpu_custom_call.1} parent=75 // pred_region
          %p3413 = scmp.eq.s32.totalorder %s34, 2
          %s3414 = scalar_select %p3413, %s35, 0
          %s3416 = ssub.s32 16, 16
          %3417 = vsyncadd %s3407, %s3416
          %s3418 = smul.addr %s3414, 16
          %s3419 = scalar_lea.hbm %s14, %s3418
          %s3421 = sshll.u32 %s3409, 4
          %s3422 = int_to_ptr.vmem [resolvable:$true] %s3421
          %3424 = dma.vmem_to_hbm [thread:$0]  %s3422, 16, %s3419, %s3407
        $region104: #{tpu_custom_call.1} parent=75 // pred_fallthru
          _
      $region76: #{tpu_custom_call.1} parent=5 // pred_fallthru
        _
      %p3425 = scmp.le.s32.totalorder 2, %s25
      // Predicated region
      $region105: #{tpu_custom_call.1} parent=5 // pred_check
        %p3426 = pneg %p3425
      $region106: #{tpu_custom_call.1} parent=5 // pred_check_branch
        %3428 = sbr.rel (%p3426) target = $region108
      $region107: #{tpu_custom_call.1} parent=5 // pred_region
        %s3429 = ssub.s32 %s25, 2
        // Predicated region
        $region109: #{tpu_custom_call.1} parent=107 // pred_check
          %p3430 = pneg %p369
        $region110: #{tpu_custom_call.1} parent=107 // pred_check_branch
          %3432 = sbr.rel (%p3430) target = $region112
        $region111: #{tpu_custom_call.1} parent=107 // pred_region
          %s3433 = sand.u32 %s354, 1
          %s3434 = scalar_lea.sflag [#allocation13], %s3433
          %s3435 = sand.u32 %s354, 1
          %s3436 = scalar_lea.vmem [#allocation12], %s3435
          %3437 = dma.done %s3434, 16
        $region112: #{tpu_custom_call.1} parent=107 // pred_fallthru
          _
      $region108: #{tpu_custom_call.1} parent=5 // pred_fallthru
        _
    $region6: #{tpu_custom_call.1} parent=1 // loop_footer
      %s29 = sadd.s32 1, %s25
    $region7: #{tpu_custom_call.1} parent=1 // loop_footer_branch
      %24 = sbr.rel target = $region3
    $region8: #{tpu_custom_call.1} parent=1 // loop_exit
      _
    %3438 = vsyncpa [#allocation13], 1
    %s3439 = scalar_lea.sflag [#allocation13], 1
    %3440 = vsyncpa %s3439, 1

</llo_original>
